<compile_context>
chip_gen: v7x
topology: tpu7x:2x2x1
jax: 0.10.0
libtpu: 0.0.40
codegen_flags: <defaults>
</compile_context>

<pallas_src>
import jax
import jax.numpy as jnp
import numpy as np
from jax.experimental import pallas as pl
from jax.experimental.pallas import tpu as pltpu

L = 3   # num_features == conv length == kernel size window count


def _round_up(x, m):
    return ((x + m - 1) // m) * m


def _tile_vmem_bytes(b_tile, s_pad):
    """Rough per-step VMEM footprint of the batch tile (double-buffered I/O + intermediates)."""
    io = 2 * b_tile * (3 * s_pad * 2      # bf16 input slab
                       + s_pad * 2        # bf16 visited plane
                       + s_pad * 4)       # f32 output
    inter = b_tile * 3 * 256 * (4 + 2)    # widest live slab (conv2, f32 + bf16 copies)
    return io + inter


def _pick_batch_tile(B, block_b, s_pad, weight_bytes, vmem_budget=40 << 20):
    """Multiple of 16 (bf16 sublane packing), minimal padding, >=2 grid steps for
    big batches (v7x megacore), clamped to a VMEM budget."""
    B_al = _round_up(B, 16)
    if B_al <= block_b:
        b_tile = B_al
        if B_al >= 256:                                   # split so both v7x TCs get work
            b_tile = _round_up((B_al + 1) // 2, 16)
    else:
        cands = [c for c in (512, 384, 256, 128, 64) if c <= block_b] or [_round_up(block_b, 16)]
        b_tile = min(cands, key=lambda c: (_round_up(B, c) - B, -c))
    while b_tile > 16 and weight_bytes + _tile_vmem_bytes(b_tile, s_pad) > vmem_budget:
        b_tile = _round_up(b_tile // 2, 16)
    return b_tile


def cnn_kernel(x_ref, v_ref,              # bf16 slab (Bt, 3*S_pad) + exact 0/1 visited (Bt, S_pad)
               w1, b1, w2, b2, w3, b3,    # banded conv weights (bf16) + tiled biases (f32)
               f1w, f1b, f2w, f2b,        # fc weights (bf16, padded) + biases (f32)
               p, thr, pt,                # merged mask projections (bf16) + thresholds (f32)
               out_ref):                  # (Bt, S_pad) f32
    x = x_ref[...]                                                  # bf16

    def mm(a, w):                                                   # bf16 MXU, f32 accumulate
        return jnp.dot(a, w[...], preferred_element_type=jnp.float32)

    # bias-add / ReLU in f32 (exact, v5e-safe VPU), slabs carried in bf16 between layers
    h = jnp.maximum(mm(x, w1) + b1[...], 0.0).astype(jnp.bfloat16)   # conv1: (Bt, 3*128)
    h = jnp.maximum(mm(h, w2) + b2[...], 0.0).astype(jnp.bfloat16)   # conv2: (Bt, 3*256)
    h = jnp.maximum(mm(h, w3) + b3[...], 0.0).astype(jnp.bfloat16)   # conv3: (Bt, 3*128) == flatten
    y = jnp.maximum(mm(h, f1w) + f1b[...], 0.0).astype(jnp.bfloat16) # fc1:   (Bt, 256)
    logits = mm(y, f2w) + f2b[...]                                   # fc2:   (Bt, S_pad) f32

    # ---- action mask (dense reformulation of get_mask) ----
    visited = v_ref[...]                                            # exact 0/1 (bf16)
    counts = mm(visited, p)                                         # (Bt, 128) exact integer counts
    hit = (counts > thr[...]).astype(jnp.bfloat16)                  # user>=1 | channel>=2 (padded cols never fire)
    expand = mm(hit, pt)                                            # (Bt, S_pad)
    mask = (visited.astype(jnp.float32) + expand) > 0.5
    out_ref[...] = jnp.where(mask, jnp.float32(-jnp.inf), logits)


def make_kernel_params(tp, num_users, num_channels):
    """Torch-layout params -> banded/slab kernel layouts + merged, padded mask projections."""
    N, K = num_users, num_channels
    S = N * K
    S_pad = _round_up(S, 128)

    def banded_conv(cw, cin_pad):
        cw = np.asarray(cw, np.float32)                  # (Cout, Cin, 3)
        cout, cin, _ = cw.shape
        taps = np.transpose(cw, (2, 1, 0))               # (tap, Cin, Cout)
        wb = np.zeros((L * cin_pad, L * cout), np.float32)
        for t in range(L):                               # output time step
            for dk in range(3):                          # kernel tap (padding=1 -> zero blocks OOB)
                s = t + dk - 1
                if 0 <= s < L:
                    wb[s * cin_pad:s * cin_pad + cin, t * cout:(t + 1) * cout] = taps[dk]
        return jnp.asarray(wb, jnp.bfloat16)

    def tiled_bias(b):
        return jnp.asarray(np.tile(np.asarray(b, np.float32), L)[None, :], jnp.float32)

    # fc1: torch flatten index is c*3+t, slab index is t*128+c -> permute; output
    # width padded 192 -> 256 for clean 256-wide MXU tiles (zero columns).
    f1w_t = np.asarray(tp['f1w'], np.float32)                        # (192, 384)
    fc1_out = f1w_t.shape[0]
    fc1_pad = _round_up(fc1_out, 256)
    f1w_slab = np.transpose(f1w_t.reshape(fc1_out, 128, L), (2, 1, 0)).reshape(L * 128, fc1_out)
    f1w_p = np.zeros((L * 128, fc1_pad), np.float32)
    f1w_p[:, :fc1_out] = f1w_slab
    f1b_p = np.zeros((1, fc1_pad), np.float32)
    f1b_p[0, :fc1_out] = np.asarray(tp['f1b'], np.float32)

    f2w_t = np.asarray(tp['f2w'], np.float32)                        # (S, 192)
    f2w_p = np.zeros((fc1_pad, S_pad), np.float32)                   # extra rows are zeros
    f2w_p[:fc1_out, :S] = f2w_t.T
    f2b_p = np.zeros((1, S_pad), np.float32)
    f2b_p[0, :S] = np.asarray(tp['f2b'], np.float32)

    # Merged one-hot mask projections: visited -> [user | channel] counts -> expand.
    # Count width N+K padded up to 128; padded thresholds are huge so they never fire.
    NK_pad = _round_up(N + K, 128)
    s_idx = np.arange(S)
    pu = (s_idx[:, None] % N == np.arange(N)[None, :]).astype(np.float32)   # (S, N)
    pc = (s_idx[:, None] // N == np.arange(K)[None, :]).astype(np.float32)  # (S, K)
    p = np.zeros((S_pad, NK_pad), np.float32)
    p[:S, :N], p[:S, N:N + K] = pu, pc
    pt = np.zeros((NK_pad, S_pad), np.float32)
    pt[:N, :S], pt[N:N + K, :S] = pu.T, pc.T
    thr = np.full((1, NK_pad), 1e9, np.float32)
    thr[0, :N] = 0.5            # user visited anywhere  -> count >= 1
    thr[0, N:N + K] = 1.5       # channel assigned twice -> count >= 2

    return dict(
        w1=banded_conv(tp['c1w'], S_pad), b1=tiled_bias(tp['c1b']),
        w2=banded_conv(tp['c2w'], 128),   b2=tiled_bias(tp['c2b']),
        w3=banded_conv(tp['c3w'], 256),   b3=tiled_bias(tp['c3b']),
        f1w=jnp.asarray(f1w_p, jnp.bfloat16), f1b=jnp.asarray(f1b_p, jnp.float32),
        f2w=jnp.asarray(f2w_p, jnp.bfloat16), f2b=jnp.asarray(f2b_p, jnp.float32),
        p=jnp.asarray(p, jnp.bfloat16), thr=jnp.asarray(thr, jnp.float32),
        pt=jnp.asarray(pt, jnp.bfloat16),
    )


def cnn_forward(state, kp, *, block_b=512):
    B, S, F = state.shape
    assert F == L
    S_pad = kp['f2w'].shape[1]

    names = ('w1', 'b1', 'w2', 'b2', 'w3', 'b3',
             'f1w', 'f1b', 'f2w', 'f2b', 'p', 'thr', 'pt')
    weights = [kp[n] for n in names]
    weight_bytes = 2 * sum(int(np.prod(w.shape)) * w.dtype.itemsize for w in weights)

    b_tile = _pick_batch_tile(B, block_b, S_pad, weight_bytes)
    B_pad = _round_up(B, b_tile)

    # Exact visited plane taken from the f32 status column BEFORE any bf16 cast.
    vis = (state[:, :, 2] != 0).astype(jnp.bfloat16)                 # (B, S) 0/1
    vis = jnp.pad(vis, ((0, B_pad - B), (0, S_pad - S)))

    # Time-major bf16 slab: column index = t * S_pad + s.  (Ideally the producer
    # emits this layout directly; doing the transpose in bf16 halves its bytes.)
    xt = jnp.transpose(state.astype(jnp.bfloat16), (0, 2, 1))        # (B, 3, S)
    xt = jnp.pad(xt, ((0, B_pad - B), (0, 0), (0, S_pad - S)))
    x = xt.reshape(B_pad, L * S_pad)

    def resident(w):                                                 # constant block -> VMEM-resident
        return pl.BlockSpec(w.shape, lambda i: (0,) * w.ndim)

    vmem_limit = int(min(max(32 << 20,
                             2 * (weight_bytes + _tile_vmem_bytes(b_tile, S_pad))),
                         64 << 20))

    out = pl.pallas_call(
        cnn_kernel,
        out_shape=jax.ShapeDtypeStruct((B_pad, S_pad), jnp.float32),
        grid=(B_pad // b_tile,),
        in_specs=[pl.BlockSpec((b_tile, L * S_pad), lambda i: (i, 0)),
                  pl.BlockSpec((b_tile, S_pad), lambda i: (i, 0))] +
                 [resident(w) for w in weights],
        out_specs=pl.BlockSpec((b_tile, S_pad), lambda i: (i, 0)),
        compiler_params=pltpu.CompilerParams(
            dimension_semantics=("parallel",),
            vmem_limit_bytes=vmem_limit),
    )(x, vis, *weights)
    return out[:B, :S]


def reference_forward(state, tp, num_users, num_channels):
    """Pure-JAX f32 reference mirroring the PyTorch module."""
    B, S, F = state.shape

    def conv1d(x, w, b):  # x (B, Cin, Lx), w (Cout, Cin, 3), padding=1
        xp = jnp.pad(x, ((0, 0), (0, 0), (1, 1)))
        cols = [jnp.einsum('bck,ock->bo', xp[:, :, t:t + 3], w) for t in range(x.shape[-1])]
        return jnp.stack(cols, axis=-1) + b[None, :, None]

    h = jax.nn.relu(conv1d(state, tp['c1w'], tp['c1b']))
    h = jax.nn.relu(conv1d(h, tp['c2w'], tp['c2b']))
    h = jax.nn.relu(conv1d(h, tp['c3w'], tp['c3b']))
    flat = h.reshape(B, -1)                                   # flatten index c*3+t
    y = jax.nn.relu(flat @ tp['f1w'].T + tp['f1b'])
    logits = y @ tp['f2w'].T + tp['f2b']

    visited = state[:, :, -1] != 0
    v3 = visited.reshape(B, num_channels, num_users)
    user_any = v3.any(axis=1)                                 # (B, N)
    chan_full = v3.sum(axis=2) >= 2                           # (B, K)
    mask = visited | jnp.tile(user_any, (1, num_channels)) \
                   | jnp.repeat(chan_full, num_users, axis=1)
    return jnp.where(mask, -jnp.inf, logits)


if __name__ == "__main__":
    # Small but architecture-consistent shapes (hidden conv widths 128/256 are
    # hard-coded in the torch module; users/channels shrunk).
    B, num_users, num_channels, F = 2, 8, 4, 3
    S = num_users * num_channels                      # state_size = 32
    FC1_IN, FC1_OUT = 128 * F, 64 * F                 # 384 -> 192

    keys = jax.random.split(jax.random.PRNGKey(0), 12)

    def winit(key, shape, fan_in):
        return (jax.random.normal(key, shape, jnp.float32) / np.sqrt(fan_in)).astype(jnp.float32)

    torch_params = {
        'c1w': winit(keys[0], (128, S, 3), S * 3),     'c1b': winit(keys[1], (128,), S * 3),
        'c2w': winit(keys[2], (256, 128, 3), 128 * 3), 'c2b': winit(keys[3], (256,), 128 * 3),
        'c3w': winit(keys[4], (128, 256, 3), 256 * 3), 'c3b': winit(keys[5], (128,), 256 * 3),
        'f1w': winit(keys[6], (FC1_OUT, FC1_IN), FC1_IN), 'f1b': winit(keys[7], (FC1_OUT,), FC1_IN),
        'f2w': winit(keys[8], (S, FC1_OUT), FC1_OUT),     'f2b': winit(keys[9], (S,), FC1_OUT),
    }
    kernel_params = make_kernel_params(torch_params, num_users, num_channels)

    kx, kb, kv = jax.random.split(keys[10], 3)
    state = jax.random.normal(kx, (B, S, F), jnp.float32)
    occupied = jax.random.uniform(kb, (B, S)) < 0.25
    status = jnp.where(occupied, jax.random.uniform(kv, (B, S), minval=0.1, maxval=3.0), 0.0)
    state = state.at[:, :, 2].set(status)             # status column: nonzero == visited

    out = jax.block_until_ready(jax.jit(cnn_forward)(state, kernel_params))
    ref = reference_forward(state, torch_params, num_users, num_channels)

    finite_ref = np.isfinite(np.asarray(ref))
    finite_out = np.isfinite(np.asarray(out))
    assert np.array_equal(finite_ref, finite_out), "mask (-inf pattern) mismatch"
    a = np.where(finite_out, np.asarray(out), 0.0)
    b = np.where(finite_ref, np.asarray(ref), 0.0)
    assert np.allclose(a, b, rtol=5e-2, atol=5e-2), "value mismatch vs reference"

    print("KERNEL_OK")
</pallas_src>

<mosaic_0001>
module attributes {stable_mosaic.version = 11 : i64} {
  func.func @cnn_kernel(%arg0: i32, %arg1: memref<16x384xbf16, #tpu.memory_space<vmem>>, %arg2: memref<16x128xbf16, #tpu.memory_space<vmem>>, %arg3: memref<384x384xbf16, #tpu.memory_space<vmem>>, %arg4: memref<1x384xf32, #tpu.memory_space<vmem>>, %arg5: memref<384x768xbf16, #tpu.memory_space<vmem>>, %arg6: memref<1x768xf32, #tpu.memory_space<vmem>>, %arg7: memref<768x384xbf16, #tpu.memory_space<vmem>>, %arg8: memref<1x384xf32, #tpu.memory_space<vmem>>, %arg9: memref<384x256xbf16, #tpu.memory_space<vmem>>, %arg10: memref<1x256xf32, #tpu.memory_space<vmem>>, %arg11: memref<256x128xbf16, #tpu.memory_space<vmem>>, %arg12: memref<1x128xf32, #tpu.memory_space<vmem>>, %arg13: memref<128x128xbf16, #tpu.memory_space<vmem>>, %arg14: memref<1x128xf32, #tpu.memory_space<vmem>>, %arg15: memref<128x128xbf16, #tpu.memory_space<vmem>>, %arg16: memref<16x128xf32, #tpu.memory_space<vmem>>) attributes {dimension_semantics = [#tpu.dimension_semantics<parallel>], iteration_bounds = array<i64: 1>, scalar_prefetch = 0 : i64, scratch_operands = 0 : i64, tpu.core_type = #tpu.core_type<tc>, window_params = [{transform_indices = @transform_0, window_bounds = array<i64: 16, 384>}, {transform_indices = @transform_1, window_bounds = array<i64: 16, 128>}, {pipeline_mode = #tpu.pipeline_mode<synchronous>, transform_indices = @transform_2, window_bounds = array<i64: 384, 384>}, {pipeline_mode = #tpu.pipeline_mode<synchronous>, transform_indices = @transform_3, window_bounds = array<i64: 1, 384>}, {pipeline_mode = #tpu.pipeline_mode<synchronous>, transform_indices = @transform_4, window_bounds = array<i64: 384, 768>}, {pipeline_mode = #tpu.pipeline_mode<synchronous>, transform_indices = @transform_5, window_bounds = array<i64: 1, 768>}, {pipeline_mode = #tpu.pipeline_mode<synchronous>, transform_indices = @transform_6, window_bounds = array<i64: 768, 384>}, {pipeline_mode = #tpu.pipeline_mode<synchronous>, transform_indices = @transform_7, window_bounds = array<i64: 1, 384>}, {pipeline_mode = #tpu.pipeline_mode<synchronous>, transform_indices = @transform_8, window_bounds = array<i64: 384, 256>}, {pipeline_mode = #tpu.pipeline_mode<synchronous>, transform_indices = @transform_9, window_bounds = array<i64: 1, 256>}, {pipeline_mode = #tpu.pipeline_mode<synchronous>, transform_indices = @transform_10, window_bounds = array<i64: 256, 128>}, {pipeline_mode = #tpu.pipeline_mode<synchronous>, transform_indices = @transform_11, window_bounds = array<i64: 1, 128>}, {pipeline_mode = #tpu.pipeline_mode<synchronous>, transform_indices = @transform_12, window_bounds = array<i64: 128, 128>}, {pipeline_mode = #tpu.pipeline_mode<synchronous>, transform_indices = @transform_13, window_bounds = array<i64: 1, 128>}, {pipeline_mode = #tpu.pipeline_mode<synchronous>, transform_indices = @transform_14, window_bounds = array<i64: 128, 128>}, {transform_indices = @transform_15, window_bounds = array<i64: 16, 128>}]} {
    %c0 = arith.constant 0 : index
    %c0_0 = arith.constant 0 : index
    %0 = vector.load %arg1[%c0, %c0_0] : memref<16x384xbf16, #tpu.memory_space<vmem>>, vector<16x384xbf16>
    %c0_1 = arith.constant 0 : index
    %c0_2 = arith.constant 0 : index
    %1 = vector.load %arg3[%c0_1, %c0_2] : memref<384x384xbf16, #tpu.memory_space<vmem>>, vector<384x384xbf16>
    %cst = arith.constant dense<0.000000e+00> : vector<16x384xf32>
    %2 = tpu.matmul %0, %1, %cst {dimension_numbers = #tpu.dot_dimension_numbers<[1], [0], [0], [1], [0, 0, 1, 1], [], []>} : vector<16x384xbf16>, vector<384x384xbf16>, vector<16x384xf32> -> vector<16x384xf32>
    %c0_3 = arith.constant 0 : index
    %c0_4 = arith.constant 0 : index
    %3 = vector.load %arg4[%c0_3, %c0_4] : memref<1x384xf32, #tpu.memory_space<vmem>>, vector<1x384xf32>
    %4 = vector.broadcast %3 : vector<1x384xf32> to vector<16x384xf32>
    %5 = arith.addf %2, %4 : vector<16x384xf32>
    %cst_5 = arith.constant 0.000000e+00 : f32
    %6 = vector.broadcast %cst_5 : f32 to vector<16x384xf32>
    %7 = arith.maximumf %5, %6 : vector<16x384xf32>
    %8 = arith.truncf %7 : vector<16x384xf32> to vector<16x384xbf16>
    %c0_6 = arith.constant 0 : index
    %c0_7 = arith.constant 0 : index
    %9 = vector.load %arg5[%c0_6, %c0_7] : memref<384x768xbf16, #tpu.memory_space<vmem>>, vector<384x768xbf16>
    %cst_8 = arith.constant dense<0.000000e+00> : vector<16x768xf32>
    %10 = tpu.matmul %8, %9, %cst_8 {dimension_numbers = #tpu.dot_dimension_numbers<[1], [0], [0], [1], [0, 0, 1, 1], [], []>} : vector<16x384xbf16>, vector<384x768xbf16>, vector<16x768xf32> -> vector<16x768xf32>
    %c0_9 = arith.constant 0 : index
    %c0_10 = arith.constant 0 : index
    %11 = vector.load %arg6[%c0_9, %c0_10] : memref<1x768xf32, #tpu.memory_space<vmem>>, vector<1x768xf32>
    %12 = vector.broadcast %11 : vector<1x768xf32> to vector<16x768xf32>
    %13 = arith.addf %10, %12 : vector<16x768xf32>
    %cst_11 = arith.constant 0.000000e+00 : f32
    %14 = vector.broadcast %cst_11 : f32 to vector<16x768xf32>
    %15 = arith.maximumf %13, %14 : vector<16x768xf32>
    %16 = arith.truncf %15 : vector<16x768xf32> to vector<16x768xbf16>
    %c0_12 = arith.constant 0 : index
    %c0_13 = arith.constant 0 : index
    %17 = vector.load %arg7[%c0_12, %c0_13] : memref<768x384xbf16, #tpu.memory_space<vmem>>, vector<768x384xbf16>
    %cst_14 = arith.constant dense<0.000000e+00> : vector<16x384xf32>
    %18 = tpu.matmul %16, %17, %cst_14 {dimension_numbers = #tpu.dot_dimension_numbers<[1], [0], [0], [1], [0, 0, 1, 1], [], []>} : vector<16x768xbf16>, vector<768x384xbf16>, vector<16x384xf32> -> vector<16x384xf32>
    %c0_15 = arith.constant 0 : index
    %c0_16 = arith.constant 0 : index
    %19 = vector.load %arg8[%c0_15, %c0_16] : memref<1x384xf32, #tpu.memory_space<vmem>>, vector<1x384xf32>
    %20 = vector.broadcast %19 : vector<1x384xf32> to vector<16x384xf32>
    %21 = arith.addf %18, %20 : vector<16x384xf32>
    %cst_17 = arith.constant 0.000000e+00 : f32
    %22 = vector.broadcast %cst_17 : f32 to vector<16x384xf32>
    %23 = arith.maximumf %21, %22 : vector<16x384xf32>
    %24 = arith.truncf %23 : vector<16x384xf32> to vector<16x384xbf16>
    %c0_18 = arith.constant 0 : index
    %c0_19 = arith.constant 0 : index
    %25 = vector.load %arg9[%c0_18, %c0_19] : memref<384x256xbf16, #tpu.memory_space<vmem>>, vector<384x256xbf16>
    %cst_20 = arith.constant dense<0.000000e+00> : vector<16x256xf32>
    %26 = tpu.matmul %24, %25, %cst_20 {dimension_numbers = #tpu.dot_dimension_numbers<[1], [0], [0], [1], [0, 0, 1, 1], [], []>} : vector<16x384xbf16>, vector<384x256xbf16>, vector<16x256xf32> -> vector<16x256xf32>
    %c0_21 = arith.constant 0 : index
    %c0_22 = arith.constant 0 : index
    %27 = vector.load %arg10[%c0_21, %c0_22] : memref<1x256xf32, #tpu.memory_space<vmem>>, vector<1x256xf32>
    %28 = vector.broadcast %27 : vector<1x256xf32> to vector<16x256xf32>
    %29 = arith.addf %26, %28 : vector<16x256xf32>
    %cst_23 = arith.constant 0.000000e+00 : f32
    %30 = vector.broadcast %cst_23 : f32 to vector<16x256xf32>
    %31 = arith.maximumf %29, %30 : vector<16x256xf32>
    %32 = arith.truncf %31 : vector<16x256xf32> to vector<16x256xbf16>
    %c0_24 = arith.constant 0 : index
    %c0_25 = arith.constant 0 : index
    %33 = vector.load %arg11[%c0_24, %c0_25] : memref<256x128xbf16, #tpu.memory_space<vmem>>, vector<256x128xbf16>
    %cst_26 = arith.constant dense<0.000000e+00> : vector<16x128xf32>
    %34 = tpu.matmul %32, %33, %cst_26 {dimension_numbers = #tpu.dot_dimension_numbers<[1], [0], [0], [1], [0, 0, 1, 1], [], []>} : vector<16x256xbf16>, vector<256x128xbf16>, vector<16x128xf32> -> vector<16x128xf32>
    %c0_27 = arith.constant 0 : index
    %c0_28 = arith.constant 0 : index
    %35 = vector.load %arg12[%c0_27, %c0_28] : memref<1x128xf32, #tpu.memory_space<vmem>>, vector<1x128xf32>
    %36 = vector.broadcast %35 : vector<1x128xf32> to vector<16x128xf32>
    %37 = arith.addf %34, %36 : vector<16x128xf32>
    %c0_29 = arith.constant 0 : index
    %c0_30 = arith.constant 0 : index
    %38 = vector.load %arg2[%c0_29, %c0_30] : memref<16x128xbf16, #tpu.memory_space<vmem>>, vector<16x128xbf16>
    %c0_31 = arith.constant 0 : index
    %c0_32 = arith.constant 0 : index
    %39 = vector.load %arg13[%c0_31, %c0_32] : memref<128x128xbf16, #tpu.memory_space<vmem>>, vector<128x128xbf16>
    %cst_33 = arith.constant dense<0.000000e+00> : vector<16x128xf32>
    %40 = tpu.matmul %38, %39, %cst_33 {dimension_numbers = #tpu.dot_dimension_numbers<[1], [0], [0], [1], [0, 0, 1, 1], [], []>} : vector<16x128xbf16>, vector<128x128xbf16>, vector<16x128xf32> -> vector<16x128xf32>
    %c0_34 = arith.constant 0 : index
    %c0_35 = arith.constant 0 : index
    %41 = vector.load %arg14[%c0_34, %c0_35] : memref<1x128xf32, #tpu.memory_space<vmem>>, vector<1x128xf32>
    %42 = vector.broadcast %41 : vector<1x128xf32> to vector<16x128xf32>
    %43 = arith.cmpf ogt, %40, %42 : vector<16x128xf32>
    %44 = arith.extui %43 : vector<16x128xi1> to vector<16x128xi32>
    %45 = arith.sitofp %44 : vector<16x128xi32> to vector<16x128xf32>
    %46 = arith.truncf %45 : vector<16x128xf32> to vector<16x128xbf16>
    %c0_36 = arith.constant 0 : index
    %c0_37 = arith.constant 0 : index
    %47 = vector.load %arg15[%c0_36, %c0_37] : memref<128x128xbf16, #tpu.memory_space<vmem>>, vector<128x128xbf16>
    %cst_38 = arith.constant dense<0.000000e+00> : vector<16x128xf32>
    %48 = tpu.matmul %46, %47, %cst_38 {dimension_numbers = #tpu.dot_dimension_numbers<[1], [0], [0], [1], [0, 0, 1, 1], [], []>} : vector<16x128xbf16>, vector<128x128xbf16>, vector<16x128xf32> -> vector<16x128xf32>
    %49 = arith.extf %38 : vector<16x128xbf16> to vector<16x128xf32>
    %50 = arith.addf %49, %48 : vector<16x128xf32>
    %cst_39 = arith.constant 5.000000e-01 : f32
    %51 = vector.broadcast %cst_39 : f32 to vector<16x128xf32>
    %52 = arith.cmpf ogt, %50, %51 : vector<16x128xf32>
    %cst_40 = arith.constant 0xFF800000 : f32
    %53 = vector.broadcast %cst_40 : f32 to vector<16x128xf32>
    %54 = arith.select %52, %53, %37 : vector<16x128xi1>, vector<16x128xf32>
    %c0_41 = arith.constant 0 : index
    %c0_42 = arith.constant 0 : index
    %55 = vector.load %arg16[%c0_41, %c0_42] : memref<16x128xf32, #tpu.memory_space<vmem>>, vector<16x128xf32>
    tpu.vector_store %arg16[%c0_41, %c0_42], %54 {strides = array<i32>} : memref<16x128xf32, #tpu.memory_space<vmem>>, vector<16x128xf32>,
    return
  }
  func.func @transform_0(%arg0: i32) -> (i32, i32) {
    %c0_i32 = arith.constant 0 : i32
    %c0_i32_0 = arith.constant 0 : i32
    return %arg0, %c0_i32 : i32, i32
  }
  func.func @transform_1(%arg0: i32) -> (i32, i32) {
    %c0_i32 = arith.constant 0 : i32
    %c0_i32_0 = arith.constant 0 : i32
    return %arg0, %c0_i32 : i32, i32
  }
  func.func @transform_2(%arg0: i32) -> (i32, i32) {
    %c0_i32 = arith.constant 0 : i32
    %c0_i32_0 = arith.constant 0 : i32
    %c0_i32_1 = arith.constant 0 : i32
    return %c0_i32, %c0_i32_0 : i32, i32
  }
  func.func @transform_3(%arg0: i32) -> (i32, i32) {
    %c0_i32 = arith.constant 0 : i32
    %c0_i32_0 = arith.constant 0 : i32
    %c0_i32_1 = arith.constant 0 : i32
    return %c0_i32, %c0_i32_0 : i32, i32
  }
  func.func @transform_4(%arg0: i32) -> (i32, i32) {
    %c0_i32 = arith.constant 0 : i32
    %c0_i32_0 = arith.constant 0 : i32
    %c0_i32_1 = arith.constant 0 : i32
    return %c0_i32, %c0_i32_0 : i32, i32
  }
  func.func @transform_5(%arg0: i32) -> (i32, i32) {
    %c0_i32 = arith.constant 0 : i32
    %c0_i32_0 = arith.constant 0 : i32
    %c0_i32_1 = arith.constant 0 : i32
    return %c0_i32, %c0_i32_0 : i32, i32
  }
  func.func @transform_6(%arg0: i32) -> (i32, i32) {
    %c0_i32 = arith.constant 0 : i32
    %c0_i32_0 = arith.constant 0 : i32
    %c0_i32_1 = arith.constant 0 : i32
    return %c0_i32, %c0_i32_0 : i32, i32
  }
  func.func @transform_7(%arg0: i32) -> (i32, i32) {
    %c0_i32 = arith.constant 0 : i32
    %c0_i32_0 = arith.constant 0 : i32
    %c0_i32_1 = arith.constant 0 : i32
    return %c0_i32, %c0_i32_0 : i32, i32
  }
  func.func @transform_8(%arg0: i32) -> (i32, i32) {
    %c0_i32 = arith.constant 0 : i32
    %c0_i32_0 = arith.constant 0 : i32
    %c0_i32_1 = arith.constant 0 : i32
    return %c0_i32, %c0_i32_0 : i32, i32
  }
  func.func @transform_9(%arg0: i32) -> (i32, i32) {
    %c0_i32 = arith.constant 0 : i32
    %c0_i32_0 = arith.constant 0 : i32
    %c0_i32_1 = arith.constant 0 : i32
    return %c0_i32, %c0_i32_0 : i32, i32
  }
  func.func @transform_10(%arg0: i32) -> (i32, i32) {
    %c0_i32 = arith.constant 0 : i32
    %c0_i32_0 = arith.constant 0 : i32
    %c0_i32_1 = arith.constant 0 : i32
    return %c0_i32, %c0_i32_0 : i32, i32
  }
  func.func @transform_11(%arg0: i32) -> (i32, i32) {
    %c0_i32 = arith.constant 0 : i32
    %c0_i32_0 = arith.constant 0 : i32
    %c0_i32_1 = arith.constant 0 : i32
    return %c0_i32, %c0_i32_0 : i32, i32
  }
  func.func @transform_12(%arg0: i32) -> (i32, i32) {
    %c0_i32 = arith.constant 0 : i32
    %c0_i32_0 = arith.constant 0 : i32
    %c0_i32_1 = arith.constant 0 : i32
    return %c0_i32, %c0_i32_0 : i32, i32
  }
  func.func @transform_13(%arg0: i32) -> (i32, i32) {
    %c0_i32 = arith.constant 0 : i32
    %c0_i32_0 = arith.constant 0 : i32
    %c0_i32_1 = arith.constant 0 : i32
    return %c0_i32, %c0_i32_0 : i32, i32
  }
  func.func @transform_14(%arg0: i32) -> (i32, i32) {
    %c0_i32 = arith.constant 0 : i32
    %c0_i32_0 = arith.constant 0 : i32
    %c0_i32_1 = arith.constant 0 : i32
    return %c0_i32, %c0_i32_0 : i32, i32
  }
  func.func @transform_15(%arg0: i32) -> (i32, i32) {
    %c0_i32 = arith.constant 0 : i32
    %c0_i32_0 = arith.constant 0 : i32
    return %arg0, %c0_i32 : i32, i32
  }
}

</mosaic_0001>

<llo_original>
// kernel: cnn_forward.1
$region0: #{cnn_forward.1}
  #allocation0 [shape = 'u32[]', space=smem, size = 0x4, offset = 0x4, fixed_abs, tag = 'smem constant byte address 0x4 - core index']
  #allocation1 [shape = 'u32[144,128]{1,0:T(1,128)}', space=vmem, size = 0x12000, scoped, tag = 'internal scratch']
  %s0 = inlined_call_operand.vmem [shape: bf16[16,384], index: 0, kind: input, shape index: {}]
  %s1 = inlined_call_operand.vmem [shape: bf16[16,128], index: 1, kind: input, shape index: {}]
  %s2 = inlined_call_operand.hbm [shape: bf16[384,384], index: 2, kind: input, shape index: {}]
  %s3 = inlined_call_operand.vmem [shape: f32[1,384], index: 3, kind: input, shape index: {}]
  %s4 = inlined_call_operand.hbm [shape: bf16[384,768], index: 4, kind: input, shape index: {}]
  %s5 = inlined_call_operand.vmem [shape: f32[1,768], index: 5, kind: input, shape index: {}]
  %s6 = inlined_call_operand.hbm [shape: bf16[768,384], index: 6, kind: input, shape index: {}]
  %s7 = inlined_call_operand.vmem [shape: f32[1,384], index: 7, kind: input, shape index: {}]
  %s8 = inlined_call_operand.hbm [shape: bf16[384,256], index: 8, kind: input, shape index: {}]
  %s9 = inlined_call_operand.vmem [shape: f32[1,256], index: 9, kind: input, shape index: {}]
  %s10 = inlined_call_operand.vmem [shape: bf16[256,128], index: 10, kind: input, shape index: {}]
  %s11 = inlined_call_operand.vmem [shape: f32[1,128], index: 11, kind: input, shape index: {}]
  %s12 = inlined_call_operand.hbm [shape: bf16[128,128], index: 12, kind: input, shape index: {}]
  %s13 = inlined_call_operand.vmem [shape: f32[1,128], index: 13, kind: input, shape index: {}]
  %s14 = inlined_call_operand.hbm [shape: bf16[128,128], index: 14, kind: input, shape index: {}]
  %s15 = inlined_call_operand.vmem [shape: f32[16,128], index: 15, kind: output, shape index: {}]
  %s16 = sld [smem:[#allocation0]]
  $region94: #{cnn_forward.1} parent=0
    _
  %s18 = ssub.s32 1, %s16
  %s19 = scalar_select 0, %s18, %s16
  $region1: #{cnn_forward.1} parent=0
    #allocation2 [shape = 'u8[294912]{0}', space=vmem, size = 0x48000, scoped, tag = 'input window, operand 2, single buffered']
    #allocation3 [shape = 's32[1]{0}', space=sflag, size = 0x4, scoped, tag = 'scoped memory for cnn_forward.1']
    #allocation4 [shape = 'u8[589824]{0}', space=vmem, size = 0x90000, scoped, tag = 'input window, operand 4, single buffered']
    #allocation5 [shape = 's32[1]{0}', space=sflag, size = 0x4, scoped, tag = 'scoped memory for cnn_forward.1']
    #allocation6 [shape = 'u8[589824]{0}', space=vmem, size = 0x90000, scoped, tag = 'input window, operand 6, single buffered']
    #allocation7 [shape = 'u8[196608]{0}', space=vmem, size = 0x30000, scoped, tag = 'input window, operand 8, single buffered']
    #allocation8 [shape = 's32[1]{0}', space=sflag, size = 0x4, scoped, tag = 'scoped memory for cnn_forward.1']
    #allocation9 [shape = 'u8[32768]{0}', space=vmem, size = 0x8000, scoped, tag = 'input window, operand 12, single buffered']
    #allocation10 [shape = 'u8[32768]{0}', space=vmem, size = 0x8000, scoped, tag = 'input window, operand 14, single buffered']
    #allocation11 [shape = 's32[1]{0}', space=sflag, size = 0x4, scoped, tag = 'scoped memory for cnn_forward.1']
    %20 = vsyncpa [#allocation3], 0
    %21 = vsyncpa [#allocation5], 0
    %22 = vsyncpa [#allocation8], 0
    %23 = vsyncpa [#allocation11], 0
    // Predicated region
    $region2: #{cnn_forward.1} parent=1 // pred_check
      _
    $region3: #{cnn_forward.1} parent=1 // pred_check_branch
      %25 = sbr.rel (0) target = $region5
    $region4: #{cnn_forward.1} parent=1 // pred_region
      _
    $region5: #{cnn_forward.1} parent=1 // pred_fallthru
      _
    // Predicated region
    $region6: #{cnn_forward.1} parent=1 // pred_check
      _
    $region7: #{cnn_forward.1} parent=1 // pred_check_branch
      %27 = sbr.rel (0) target = $region9
    $region8: #{cnn_forward.1} parent=1 // pred_region
      _
    $region9: #{cnn_forward.1} parent=1 // pred_fallthru
      _
    // Predicated region
    $region10: #{cnn_forward.1} parent=1 // pred_check
      _
    $region11: #{cnn_forward.1} parent=1 // pred_check_branch
      %29 = sbr.rel (0) target = $region13
    $region12: #{cnn_forward.1} parent=1 // pred_region
      %s31 = ssub.s32 9216, 9216
      %32 = vsyncadd [#allocation3], %s31
      %s33 = sshll.u32 [#allocation2], 4
      %s34 = int_to_ptr.vmem [resolvable:$true] %s33
      %39 = dma.hbm_to_vmem [thread:$0]  %s2, 9216, %s34, [#allocation3], 192, 192, 12
    $region13: #{cnn_forward.1} parent=1 // pred_fallthru
      _
    // Predicated region
    $region14: #{cnn_forward.1} parent=1 // pred_check
      _
    $region15: #{cnn_forward.1} parent=1 // pred_check_branch
      %41 = sbr.rel (0) target = $region17
    $region16: #{cnn_forward.1} parent=1 // pred_region
      _
    $region17: #{cnn_forward.1} parent=1 // pred_fallthru
      _
    // Predicated region
    $region18: #{cnn_forward.1} parent=1 // pred_check
      _
    $region19: #{cnn_forward.1} parent=1 // pred_check_branch
      %43 = sbr.rel (0) target = $region21
    $region20: #{cnn_forward.1} parent=1 // pred_region
      %s45 = ssub.s32 18432, 18432
      %46 = vsyncadd [#allocation5], %s45
      %s47 = sshll.u32 [#allocation4], 4
      %s48 = int_to_ptr.vmem [resolvable:$true] %s47
      %53 = dma.hbm_to_vmem [thread:$0]  %s4, 18432, %s48, [#allocation5], 384, 384, 24
    $region21: #{cnn_forward.1} parent=1 // pred_fallthru
      _
    // Predicated region
    $region22: #{cnn_forward.1} parent=1 // pred_check
      _
    $region23: #{cnn_forward.1} parent=1 // pred_check_branch
      %55 = sbr.rel (0) target = $region25
    $region24: #{cnn_forward.1} parent=1 // pred_region
      _
    $region25: #{cnn_forward.1} parent=1 // pred_fallthru
      _
    // Predicated region
    $region26: #{cnn_forward.1} parent=1 // pred_check
      _
    $region27: #{cnn_forward.1} parent=1 // pred_check_branch
      %57 = sbr.rel (0) target = $region29
    $region28: #{cnn_forward.1} parent=1 // pred_region
      %s59 = ssub.s32 18432, 18432
      %60 = vsyncadd [#allocation5], %s59
      %s61 = sshll.u32 [#allocation6], 4
      %s62 = int_to_ptr.vmem [resolvable:$true] %s61
      %67 = dma.hbm_to_vmem [thread:$0]  %s6, 18432, %s62, [#allocation5], 192, 192, 12
    $region29: #{cnn_forward.1} parent=1 // pred_fallthru
      _
    // Predicated region
    $region30: #{cnn_forward.1} parent=1 // pred_check
      _
    $region31: #{cnn_forward.1} parent=1 // pred_check_branch
      %69 = sbr.rel (0) target = $region33
    $region32: #{cnn_forward.1} parent=1 // pred_region
      _
    $region33: #{cnn_forward.1} parent=1 // pred_fallthru
      _
    // Predicated region
    $region34: #{cnn_forward.1} parent=1 // pred_check
      _
    $region35: #{cnn_forward.1} parent=1 // pred_check_branch
      %71 = sbr.rel (0) target = $region37
    $region36: #{cnn_forward.1} parent=1 // pred_region
      %s73 = ssub.s32 6144, 6144
      %74 = vsyncadd [#allocation8], %s73
      %s75 = sshll.u32 [#allocation7], 4
      %s76 = int_to_ptr.vmem [resolvable:$true] %s75
      %81 = dma.hbm_to_vmem [thread:$0]  %s8, 6144, %s76, [#allocation8], 128, 128, 8
    $region37: #{cnn_forward.1} parent=1 // pred_fallthru
      _
    // Predicated region
    $region38: #{cnn_forward.1} parent=1 // pred_check
      _
    $region39: #{cnn_forward.1} parent=1 // pred_check_branch
      %83 = sbr.rel (0) target = $region41
    $region40: #{cnn_forward.1} parent=1 // pred_region
      _
    $region41: #{cnn_forward.1} parent=1 // pred_fallthru
      _
    // Predicated region
    $region42: #{cnn_forward.1} parent=1 // pred_check
      _
    $region43: #{cnn_forward.1} parent=1 // pred_check_branch
      %85 = sbr.rel (0) target = $region45
    $region44: #{cnn_forward.1} parent=1 // pred_region
      _
    $region45: #{cnn_forward.1} parent=1 // pred_fallthru
      _
    // Predicated region
    $region46: #{cnn_forward.1} parent=1 // pred_check
      _
    $region47: #{cnn_forward.1} parent=1 // pred_check_branch
      %87 = sbr.rel (0) target = $region49
    $region48: #{cnn_forward.1} parent=1 // pred_region
      _
    $region49: #{cnn_forward.1} parent=1 // pred_fallthru
      _
    // Predicated region
    $region50: #{cnn_forward.1} parent=1 // pred_check
      _
    $region51: #{cnn_forward.1} parent=1 // pred_check_branch
      %89 = sbr.rel (0) target = $region53
    $region52: #{cnn_forward.1} parent=1 // pred_region
      %s91 = ssub.s32 1024, 1024
      %92 = vsyncadd [#allocation8], %s91
      %s93 = sshll.u32 [#allocation9], 4
      %s94 = int_to_ptr.vmem [resolvable:$true] %s93
      %99 = dma.hbm_to_vmem [thread:$0]  %s12, 1024, %s94, [#allocation8], 64, 64, 4
    $region53: #{cnn_forward.1} parent=1 // pred_fallthru
      _
    // Predicated region
    $region54: #{cnn_forward.1} parent=1 // pred_check
      _
    $region55: #{cnn_forward.1} parent=1 // pred_check_branch
      %101 = sbr.rel (0) target = $region57
    $region56: #{cnn_forward.1} parent=1 // pred_region
      _
    $region57: #{cnn_forward.1} parent=1 // pred_fallthru
      _
    // Predicated region
    $region58: #{cnn_forward.1} parent=1 // pred_check
      _
    $region59: #{cnn_forward.1} parent=1 // pred_check_branch
      %103 = sbr.rel (0) target = $region61
    $region60: #{cnn_forward.1} parent=1 // pred_region
      %s105 = ssub.s32 1024, 1024
      %106 = vsyncadd [#allocation11], %s105
      %s107 = sshll.u32 [#allocation10], 4
      %s108 = int_to_ptr.vmem [resolvable:$true] %s107
      %113 = dma.hbm_to_vmem [thread:$0]  %s14, 1024, %s108, [#allocation11], 64, 64, 4
    $region61: #{cnn_forward.1} parent=1 // pred_fallthru
      _
    // Predicated region
    $region62: #{cnn_forward.1} parent=1 // pred_check
      _
    $region63: #{cnn_forward.1} parent=1 // pred_check_branch
      %115 = sbr.rel (0) target = $region65
    $region64: #{cnn_forward.1} parent=1 // pred_region
      %116 = dma.done [#allocation3], 9216
    $region65: #{cnn_forward.1} parent=1 // pred_fallthru
      _
    // Predicated region
    $region66: #{cnn_forward.1} parent=1 // pred_check
      _
    $region67: #{cnn_forward.1} parent=1 // pred_check_branch
      %118 = sbr.rel (0) target = $region69
    $region68: #{cnn_forward.1} parent=1 // pred_region
      %119 = dma.done [#allocation5], 18432
    $region69: #{cnn_forward.1} parent=1 // pred_fallthru
      _
    // Predicated region
    $region70: #{cnn_forward.1} parent=1 // pred_check
      _
    $region71: #{cnn_forward.1} parent=1 // pred_check_branch
      %121 = sbr.rel (0) target = $region73
    $region72: #{cnn_forward.1} parent=1 // pred_region
      %122 = dma.done [#allocation5], 18432
    $region73: #{cnn_forward.1} parent=1 // pred_fallthru
      _
    // Predicated region
    $region74: #{cnn_forward.1} parent=1 // pred_check
      _
    $region75: #{cnn_forward.1} parent=1 // pred_check_branch
      %124 = sbr.rel (0) target = $region77
    $region76: #{cnn_forward.1} parent=1 // pred_region
      %125 = dma.done [#allocation8], 6144
    $region77: #{cnn_forward.1} parent=1 // pred_fallthru
      _
    // Predicated region
    $region78: #{cnn_forward.1} parent=1 // pred_check
      _
    $region79: #{cnn_forward.1} parent=1 // pred_check_branch
      %127 = sbr.rel (0) target = $region81
    $region80: #{cnn_forward.1} parent=1 // pred_region
      %128 = dma.done [#allocation8], 1024
    $region81: #{cnn_forward.1} parent=1 // pred_fallthru
      _
    // Predicated region
    $region82: #{cnn_forward.1} parent=1 // pred_check
      _
    $region83: #{cnn_forward.1} parent=1 // pred_check_branch
      %130 = sbr.rel (0) target = $region85
    $region84: #{cnn_forward.1} parent=1 // pred_region
      %131 = dma.done [#allocation11], 1024
    $region85: #{cnn_forward.1} parent=1 // pred_fallthru
      _
    %v133 = vld [vmem:[%s0] sm:$0xff]
    %v134 = vld [vmem:[%s0 + $0x8] sm:$0xf]
    %v135 = vld [vmem:[%s0 + $0xc] sm:$0xff]
    %v136 = vld [vmem:[%s0 + $0x14] sm:$0xf]
    %v137 = vld [vmem:[#allocation2] sm:$0xff]
    %v138 = vld [vmem:[#allocation2 + $0x8] sm:$0xf]
    %v139 = vld [vmem:[#allocation2 + $0xc] sm:$0xff]
    %v140 = vld [vmem:[#allocation2 + $0x14] sm:$0xf]
    %v141 = vld [vmem:[#allocation2 + $0x18] sm:$0xff]
    %v142 = vld [vmem:[#allocation2 + $0x20] sm:$0xf]
    %v143 = vld [vmem:[#allocation2 + $0x24] sm:$0xff]
    %v144 = vld [vmem:[#allocation2 + $0x2c] sm:$0xf]
    %v145 = vld [vmem:[#allocation2 + $0x30] sm:$0xff]
    %v146 = vld [vmem:[#allocation2 + $0x38] sm:$0xf]
    %v147 = vld [vmem:[#allocation2 + $0x3c] sm:$0xff]
    %v148 = vld [vmem:[#allocation2 + $0x44] sm:$0xf]
    %v149 = vld [vmem:[#allocation2 + $0x48] sm:$0xff]
    %v150 = vld [vmem:[#allocation2 + $0x50] sm:$0xf]
    %v151 = vld [vmem:[#allocation2 + $0x54] sm:$0xff]
    %v152 = vld [vmem:[#allocation2 + $0x5c] sm:$0xf]
    %v153 = vld [vmem:[#allocation2 + $0x60] sm:$0xff]
    %v154 = vld [vmem:[#allocation2 + $0x68] sm:$0xf]
    %v155 = vld [vmem:[#allocation2 + $0x6c] sm:$0xff]
    %v156 = vld [vmem:[#allocation2 + $0x74] sm:$0xf]
    %v157 = vld [vmem:[#allocation2 + $0x78] sm:$0xff]
    %v158 = vld [vmem:[#allocation2 + $0x80] sm:$0xf]
    %v159 = vld [vmem:[#allocation2 + $0x84] sm:$0xff]
    %v160 = vld [vmem:[#allocation2 + $0x8c] sm:$0xf]
    %v161 = vld [vmem:[#allocation2 + $0x90] sm:$0xff]
    %v162 = vld [vmem:[#allocation2 + $0x98] sm:$0xf]
    %v163 = vld [vmem:[#allocation2 + $0x9c] sm:$0xff]
    %v164 = vld [vmem:[#allocation2 + $0xa4] sm:$0xf]
    %v165 = vld [vmem:[#allocation2 + $0xa8] sm:$0xff]
    %v166 = vld [vmem:[#allocation2 + $0xb0] sm:$0xf]
    %v167 = vld [vmem:[#allocation2 + $0xb4] sm:$0xff]
    %v168 = vld [vmem:[#allocation2 + $0xbc] sm:$0xf]
    %v169 = vld [vmem:[#allocation2 + $0xc0] sm:$0xff]
    %v170 = vld [vmem:[#allocation2 + $0xc8] sm:$0xf]
    %v171 = vld [vmem:[#allocation2 + $0xcc] sm:$0xff]
    %v172 = vld [vmem:[#allocation2 + $0xd4] sm:$0xf]
    %v173 = vld [vmem:[#allocation2 + $0xd8] sm:$0xff]
    %v174 = vld [vmem:[#allocation2 + $0xe0] sm:$0xf]
    %v175 = vld [vmem:[#allocation2 + $0xe4] sm:$0xff]
    %v176 = vld [vmem:[#allocation2 + $0xec] sm:$0xf]
    %v177 = vld [vmem:[#allocation2 + $0xf0] sm:$0xff]
    %v178 = vld [vmem:[#allocation2 + $0xf8] sm:$0xf]
    %v179 = vld [vmem:[#allocation2 + $0xfc] sm:$0xff]
    %v180 = vld [vmem:[#allocation2 + $0x104] sm:$0xf]
    %v181 = vld [vmem:[#allocation2 + $0x108] sm:$0xff]
    %v182 = vld [vmem:[#allocation2 + $0x110] sm:$0xf]
    %v183 = vld [vmem:[#allocation2 + $0x114] sm:$0xff]
    %v184 = vld [vmem:[#allocation2 + $0x11c] sm:$0xf]
    %v185 = vld [vmem:[#allocation2 + $0x120] sm:$0xff]
    %v186 = vld [vmem:[#allocation2 + $0x128] sm:$0xf]
    %v187 = vld [vmem:[#allocation2 + $0x12c] sm:$0xff]
    %v188 = vld [vmem:[#allocation2 + $0x134] sm:$0xf]
    %v189 = vld [vmem:[#allocation2 + $0x138] sm:$0xff]
    %v190 = vld [vmem:[#allocation2 + $0x140] sm:$0xf]
    %v191 = vld [vmem:[#allocation2 + $0x144] sm:$0xff]
    %v192 = vld [vmem:[#allocation2 + $0x14c] sm:$0xf]
    %v193 = vld [vmem:[#allocation2 + $0x150] sm:$0xff]
    %v194 = vld [vmem:[#allocation2 + $0x158] sm:$0xf]
    %v195 = vld [vmem:[#allocation2 + $0x15c] sm:$0xff]
    %v196 = vld [vmem:[#allocation2 + $0x164] sm:$0xf]
    %v197 = vld [vmem:[#allocation2 + $0x168] sm:$0xff]
    %v198 = vld [vmem:[#allocation2 + $0x170] sm:$0xf]
    %v199 = vld [vmem:[#allocation2 + $0x174] sm:$0xff]
    %v200 = vld [vmem:[#allocation2 + $0x17c] sm:$0xf]
    %v201 = vld [vmem:[#allocation2 + $0x180] sm:$0xff]
    %v202 = vld [vmem:[#allocation2 + $0x188] sm:$0xf]
    %v203 = vld [vmem:[#allocation2 + $0x18c] sm:$0xff]
    %v204 = vld [vmem:[#allocation2 + $0x194] sm:$0xf]
    %v205 = vld [vmem:[#allocation2 + $0x198] sm:$0xff]
    %v206 = vld [vmem:[#allocation2 + $0x1a0] sm:$0xf]
    %v207 = vld [vmem:[#allocation2 + $0x1a4] sm:$0xff]
    %v208 = vld [vmem:[#allocation2 + $0x1ac] sm:$0xf]
    %v209 = vld [vmem:[#allocation2 + $0x1b0] sm:$0xff]
    %v210 = vld [vmem:[#allocation2 + $0x1b8] sm:$0xf]
    %v211 = vld [vmem:[#allocation2 + $0x1bc] sm:$0xff]
    %v212 = vld [vmem:[#allocation2 + $0x1c4] sm:$0xf]
    %v213 = vld [vmem:[#allocation2 + $0x1c8] sm:$0xff]
    %v214 = vld [vmem:[#allocation2 + $0x1d0] sm:$0xf]
    %v215 = vld [vmem:[#allocation2 + $0x1d4] sm:$0xff]
    %v216 = vld [vmem:[#allocation2 + $0x1dc] sm:$0xf]
    %v217 = vld [vmem:[#allocation2 + $0x1e0] sm:$0xff]
    %v218 = vld [vmem:[#allocation2 + $0x1e8] sm:$0xf]
    %v219 = vld [vmem:[#allocation2 + $0x1ec] sm:$0xff]
    %v220 = vld [vmem:[#allocation2 + $0x1f4] sm:$0xf]
    %v221 = vld [vmem:[#allocation2 + $0x1f8] sm:$0xff]
    %v222 = vld [vmem:[#allocation2 + $0x200] sm:$0xf]
    %v223 = vld [vmem:[#allocation2 + $0x204] sm:$0xff]
    %v224 = vld [vmem:[#allocation2 + $0x20c] sm:$0xf]
    %v225 = vld [vmem:[#allocation2 + $0x210] sm:$0xff]
    %v226 = vld [vmem:[#allocation2 + $0x218] sm:$0xf]
    %v227 = vld [vmem:[#allocation2 + $0x21c] sm:$0xff]
    %v228 = vld [vmem:[#allocation2 + $0x224] sm:$0xf]
    %v229 = vld [vmem:[#allocation2 + $0x228] sm:$0xff]
    %v230 = vld [vmem:[#allocation2 + $0x230] sm:$0xf]
    %v231 = vld [vmem:[#allocation2 + $0x234] sm:$0xff]
    %v232 = vld [vmem:[#allocation2 + $0x23c] sm:$0xf]
    %v233 = vld [vmem:[%s3] sm:$0x7]
    %v235 = vlaneseq
    %v236 = vshrl.u32 %v235, 7
    %v237 = vsub.s32 0, %v236
    %v238 = vrot.slane %v233, %v237
    %v239 = vlaneseq
    %v240 = vshrl.u32 %v239, 7
    %v241 = vsub.s32 1, %v240
    %v242 = vrot.slane %v233, %v241
    %v243 = vlaneseq
    %v244 = vshrl.u32 %v243, 7
    %v245 = vsub.s32 2, %v244
    %v246 = vrot.slane %v233, %v245
    %v254 = vunpack.c.l.b16 %v133
    %v255 = vunpack.c.h.b16 %v133
    %v256 = vunpack.c.l.b16 %v134
    %v257 = vunpack.c.l.b16 %v135
    %v258 = vunpack.c.h.b16 %v135
    %v259 = vunpack.c.l.b16 %v136
    %v260 = vpack.c.b16 %v257, %v254
    %v261 = vpack.c.b16 %v258, %v255
    %v262 = vpack.c.b16 %v259, %v256
    %v362 = vunpack.c.l.b16 %v137
    %v363 = vunpack.c.h.b16 %v137
    %v364 = vunpack.c.l.b16 %v138
    %v365 = vunpack.c.l.b16 %v139
    %v366 = vunpack.c.h.b16 %v139
    %v367 = vunpack.c.l.b16 %v140
    %v368 = vunpack.c.l.b16 %v141
    %v369 = vunpack.c.h.b16 %v141
    %v370 = vunpack.c.l.b16 %v142
    %v371 = vunpack.c.l.b16 %v143
    %v372 = vunpack.c.h.b16 %v143
    %v373 = vunpack.c.l.b16 %v144
    %v374 = vunpack.c.l.b16 %v145
    %v375 = vunpack.c.h.b16 %v145
    %v376 = vunpack.c.l.b16 %v146
    %v377 = vunpack.c.l.b16 %v147
    %v378 = vunpack.c.h.b16 %v147
    %v379 = vunpack.c.l.b16 %v148
    %v380 = vunpack.c.l.b16 %v149
    %v381 = vunpack.c.h.b16 %v149
    %v382 = vunpack.c.l.b16 %v150
    %v383 = vunpack.c.l.b16 %v151
    %v384 = vunpack.c.h.b16 %v151
    %v385 = vunpack.c.l.b16 %v152
    %v386 = vunpack.c.l.b16 %v153
    %v387 = vunpack.c.h.b16 %v153
    %v388 = vunpack.c.l.b16 %v154
    %v389 = vunpack.c.l.b16 %v155
    %v390 = vunpack.c.h.b16 %v155
    %v391 = vunpack.c.l.b16 %v156
    %v392 = vunpack.c.l.b16 %v157
    %v393 = vunpack.c.h.b16 %v157
    %v394 = vunpack.c.l.b16 %v158
    %v395 = vunpack.c.l.b16 %v159
    %v396 = vunpack.c.h.b16 %v159
    %v397 = vunpack.c.l.b16 %v160
    %v398 = vunpack.c.l.b16 %v161
    %v399 = vunpack.c.h.b16 %v161
    %v400 = vunpack.c.l.b16 %v162
    %v401 = vunpack.c.l.b16 %v163
    %v402 = vunpack.c.h.b16 %v163
    %v403 = vunpack.c.l.b16 %v164
    %v404 = vunpack.c.l.b16 %v165
    %v405 = vunpack.c.h.b16 %v165
    %v406 = vunpack.c.l.b16 %v166
    %v407 = vunpack.c.l.b16 %v167
    %v408 = vunpack.c.h.b16 %v167
    %v409 = vunpack.c.l.b16 %v168
    %v410 = vunpack.c.l.b16 %v169
    %v411 = vunpack.c.h.b16 %v169
    %v412 = vunpack.c.l.b16 %v170
    %v413 = vunpack.c.l.b16 %v171
    %v414 = vunpack.c.h.b16 %v171
    %v415 = vunpack.c.l.b16 %v172
    %v416 = vunpack.c.l.b16 %v173
    %v417 = vunpack.c.h.b16 %v173
    %v418 = vunpack.c.l.b16 %v174
    %v419 = vunpack.c.l.b16 %v175
    %v420 = vunpack.c.h.b16 %v175
    %v421 = vunpack.c.l.b16 %v176
    %v422 = vunpack.c.l.b16 %v177
    %v423 = vunpack.c.h.b16 %v177
    %v424 = vunpack.c.l.b16 %v178
    %v425 = vunpack.c.l.b16 %v179
    %v426 = vunpack.c.h.b16 %v179
    %v427 = vunpack.c.l.b16 %v180
    %v428 = vunpack.c.l.b16 %v181
    %v429 = vunpack.c.h.b16 %v181
    %v430 = vunpack.c.l.b16 %v182
    %v431 = vunpack.c.l.b16 %v183
    %v432 = vunpack.c.h.b16 %v183
    %v433 = vunpack.c.l.b16 %v184
    %v434 = vunpack.c.l.b16 %v185
    %v435 = vunpack.c.h.b16 %v185
    %v436 = vunpack.c.l.b16 %v186
    %v437 = vunpack.c.l.b16 %v187
    %v438 = vunpack.c.h.b16 %v187
    %v439 = vunpack.c.l.b16 %v188
    %v440 = vunpack.c.l.b16 %v189
    %v441 = vunpack.c.h.b16 %v189
    %v442 = vunpack.c.l.b16 %v190
    %v443 = vunpack.c.l.b16 %v191
    %v444 = vunpack.c.h.b16 %v191
    %v445 = vunpack.c.l.b16 %v192
    %v446 = vunpack.c.l.b16 %v193
    %v447 = vunpack.c.h.b16 %v193
    %v448 = vunpack.c.l.b16 %v194
    %v449 = vunpack.c.l.b16 %v195
    %v450 = vunpack.c.h.b16 %v195
    %v451 = vunpack.c.l.b16 %v196
    %v452 = vunpack.c.l.b16 %v197
    %v453 = vunpack.c.h.b16 %v197
    %v454 = vunpack.c.l.b16 %v198
    %v455 = vunpack.c.l.b16 %v199
    %v456 = vunpack.c.h.b16 %v199
    %v457 = vunpack.c.l.b16 %v200
    %v458 = vunpack.c.l.b16 %v201
    %v459 = vunpack.c.h.b16 %v201
    %v460 = vunpack.c.l.b16 %v202
    %v461 = vunpack.c.l.b16 %v203
    %v462 = vunpack.c.h.b16 %v203
    %v463 = vunpack.c.l.b16 %v204
    %v464 = vunpack.c.l.b16 %v205
    %v465 = vunpack.c.h.b16 %v205
    %v466 = vunpack.c.l.b16 %v206
    %v467 = vunpack.c.l.b16 %v207
    %v468 = vunpack.c.h.b16 %v207
    %v469 = vunpack.c.l.b16 %v208
    %v470 = vunpack.c.l.b16 %v209
    %v471 = vunpack.c.h.b16 %v209
    %v472 = vunpack.c.l.b16 %v210
    %v473 = vunpack.c.l.b16 %v211
    %v474 = vunpack.c.h.b16 %v211
    %v475 = vunpack.c.l.b16 %v212
    %v476 = vunpack.c.l.b16 %v213
    %v477 = vunpack.c.h.b16 %v213
    %v478 = vunpack.c.l.b16 %v214
    %v479 = vunpack.c.l.b16 %v215
    %v480 = vunpack.c.h.b16 %v215
    %v481 = vunpack.c.l.b16 %v216
    %v482 = vunpack.c.l.b16 %v217
    %v483 = vunpack.c.h.b16 %v217
    %v484 = vunpack.c.l.b16 %v218
    %v485 = vunpack.c.l.b16 %v219
    %v486 = vunpack.c.h.b16 %v219
    %v487 = vunpack.c.l.b16 %v220
    %v488 = vunpack.c.l.b16 %v221
    %v489 = vunpack.c.h.b16 %v221
    %v490 = vunpack.c.l.b16 %v222
    %v491 = vunpack.c.l.b16 %v223
    %v492 = vunpack.c.h.b16 %v223
    %v493 = vunpack.c.l.b16 %v224
    %v494 = vunpack.c.l.b16 %v225
    %v495 = vunpack.c.h.b16 %v225
    %v496 = vunpack.c.l.b16 %v226
    %v497 = vunpack.c.l.b16 %v227
    %v498 = vunpack.c.h.b16 %v227
    %v499 = vunpack.c.l.b16 %v228
    %v500 = vunpack.c.l.b16 %v229
    %v501 = vunpack.c.h.b16 %v229
    %v502 = vunpack.c.l.b16 %v230
    %v503 = vunpack.c.l.b16 %v231
    %v504 = vunpack.c.h.b16 %v231
    %v505 = vunpack.c.l.b16 %v232
    %v506 = vpack.c.b16 %v365, %v362
    %v507 = vpack.c.b16 %v366, %v363
    %v508 = vpack.c.b16 %v367, %v364
    %v509 = vpack.c.b16 %v371, %v368
    %v510 = vpack.c.b16 %v372, %v369
    %v511 = vpack.c.b16 %v373, %v370
    %v512 = vpack.c.b16 %v377, %v374
    %v513 = vpack.c.b16 %v378, %v375
    %v514 = vpack.c.b16 %v379, %v376
    %v515 = vpack.c.b16 %v383, %v380
    %v516 = vpack.c.b16 %v384, %v381
    %v517 = vpack.c.b16 %v385, %v382
    %v518 = vpack.c.b16 %v389, %v386
    %v519 = vpack.c.b16 %v390, %v387
    %v520 = vpack.c.b16 %v391, %v388
    %v521 = vpack.c.b16 %v395, %v392
    %v522 = vpack.c.b16 %v396, %v393
    %v523 = vpack.c.b16 %v397, %v394
    %v524 = vpack.c.b16 %v401, %v398
    %v525 = vpack.c.b16 %v402, %v399
    %v526 = vpack.c.b16 %v403, %v400
    %v527 = vpack.c.b16 %v407, %v404
    %v528 = vpack.c.b16 %v408, %v405
    %v529 = vpack.c.b16 %v409, %v406
    %v530 = vpack.c.b16 %v413, %v410
    %v531 = vpack.c.b16 %v414, %v411
    %v532 = vpack.c.b16 %v415, %v412
    %v533 = vpack.c.b16 %v419, %v416
    %v534 = vpack.c.b16 %v420, %v417
    %v535 = vpack.c.b16 %v421, %v418
    %v536 = vpack.c.b16 %v425, %v422
    %v537 = vpack.c.b16 %v426, %v423
    %v538 = vpack.c.b16 %v427, %v424
    %v539 = vpack.c.b16 %v431, %v428
    %v540 = vpack.c.b16 %v432, %v429
    %v541 = vpack.c.b16 %v433, %v430
    %v542 = vpack.c.b16 %v437, %v434
    %v543 = vpack.c.b16 %v438, %v435
    %v544 = vpack.c.b16 %v439, %v436
    %v545 = vpack.c.b16 %v443, %v440
    %v546 = vpack.c.b16 %v444, %v441
    %v547 = vpack.c.b16 %v445, %v442
    %v548 = vpack.c.b16 %v449, %v446
    %v549 = vpack.c.b16 %v450, %v447
    %v550 = vpack.c.b16 %v451, %v448
    %v551 = vpack.c.b16 %v455, %v452
    %v552 = vpack.c.b16 %v456, %v453
    %v553 = vpack.c.b16 %v457, %v454
    %v554 = vpack.c.b16 %v461, %v458
    %v555 = vpack.c.b16 %v462, %v459
    %v556 = vpack.c.b16 %v463, %v460
    %v557 = vpack.c.b16 %v467, %v464
    %v558 = vpack.c.b16 %v468, %v465
    %v559 = vpack.c.b16 %v469, %v466
    %v560 = vpack.c.b16 %v473, %v470
    %v561 = vpack.c.b16 %v474, %v471
    %v562 = vpack.c.b16 %v475, %v472
    %v563 = vpack.c.b16 %v479, %v476
    %v564 = vpack.c.b16 %v480, %v477
    %v565 = vpack.c.b16 %v481, %v478
    %v566 = vpack.c.b16 %v485, %v482
    %v567 = vpack.c.b16 %v486, %v483
    %v568 = vpack.c.b16 %v487, %v484
    %v569 = vpack.c.b16 %v491, %v488
    %v570 = vpack.c.b16 %v492, %v489
    %v571 = vpack.c.b16 %v493, %v490
    %v572 = vpack.c.b16 %v497, %v494
    %v573 = vpack.c.b16 %v498, %v495
    %v574 = vpack.c.b16 %v499, %v496
    %v575 = vpack.c.b16 %v503, %v500
    %v576 = vpack.c.b16 %v504, %v501
    %v577 = vpack.c.b16 %v505, %v502
    %650 = vmatprep.subr.bf16.mxu0 %v507
    %651 = vmatpush1.bf16.msra.mxu0 %v506
    %652 = vmatprep.subr.bf16.mxu0 %v510
    %653 = vmatpush1.bf16.msra.mxu0 %v509
    %654 = vmatprep.subr.bf16.mxu0 %v513
    %655 = vmatpush1.bf16.msra.mxu0 %v512
    %656 = vmatprep.subr.bf16.mxu0 %v516
    %657 = vmatpush1.bf16.msra.mxu0 %v515
    %658 = vmatprep.subr.bf16.mxu0 %v519
    %659 = vmatpush1.bf16.msra.mxu0 %v518
    %660 = vmatprep.subr.bf16.mxu0 %v522
    %661 = vmatpush1.bf16.msra.mxu0 %v521
    %662 = vmatprep.subr.bf16.mxu0 %v525
    %663 = vmatpush1.bf16.msra.mxu0 %v524
    %664 = vmatprep.subr.bf16.mxu0 %v528
    %665 = vmatpush1.bf16.msra.mxu0 %v527
    %666 = vmatprep.subr.bf16.mxu0 %v531
    %667 = vmatpush1.bf16.msra.mxu0 %v530
    %668 = vmatprep.subr.bf16.mxu0 %v534
    %669 = vmatpush1.bf16.msra.mxu0 %v533
    %670 = vmatprep.subr.bf16.mxu0 %v537
    %671 = vmatpush1.bf16.msra.mxu0 %v536
    %672 = vmatprep.subr.bf16.mxu0 %v540
    %673 = vmatpush1.bf16.msra.mxu0 %v539
    %674 = vmatprep.subr.bf16.mxu0 %v543
    %675 = vmatpush1.bf16.msra.mxu0 %v542
    %676 = vmatprep.subr.bf16.mxu0 %v546
    %677 = vmatpush1.bf16.msra.mxu0 %v545
    %678 = vmatprep.subr.bf16.mxu0 %v549
    %679 = vmatpush1.bf16.msra.mxu0 %v548
    %680 = vmatprep.subr.bf16.mxu0 %v552
    %681 = vmatpush1.bf16.msra.mxu0 %v551
    %682 = vmatprep.mubr.bf16.mxu0 %v261
    %683 = vmatmul.mubr.bf16.gmra.mrb[0].mxu0 %v260
    %v684 = vpop.f32.mrb[0].mxu0
    %v685 = vadd.f32 %v238, %v684
    %v686 = vpop.f32.mrb[0].mxu0
    %v687 = vadd.f32 %v242, %v686
    %v688 = vpop.f32.mrb[0].mxu0
    %v689 = vadd.f32 %v238, %v688
    %v690 = vpop.f32.mrb[0].mxu0
    %v691 = vadd.f32 %v242, %v690
    %692 = vdwg.mxu0
    %693 = vmatprep.subr.bf16.mxu0 %v555
    %694 = vmatpush1.bf16.msra.mxu0 %v554
    %695 = vmatprep.subr.bf16.mxu0 %v558
    %696 = vmatpush1.bf16.msra.mxu0 %v557
    %697 = vmatprep.subr.bf16.mxu0 %v561
    %698 = vmatpush1.bf16.msra.mxu0 %v560
    %699 = vmatprep.subr.bf16.mxu0 %v564
    %700 = vmatpush1.bf16.msra.mxu0 %v563
    %701 = vmatprep.subr.bf16.mxu0 %v567
    %702 = vmatpush1.bf16.msra.mxu0 %v566
    %703 = vmatprep.subr.bf16.mxu0 %v570
    %704 = vmatpush1.bf16.msra.mxu0 %v569
    %705 = vmatprep.subr.bf16.mxu0 %v573
    %706 = vmatpush1.bf16.msra.mxu0 %v572
    %707 = vmatprep.subr.bf16.mxu0 %v576
    %708 = vmatpush1.bf16.msra.mxu0 %v575
    %709 = vmatprep.subr.bf16.mxu0 0
    %710 = vmatpush1.bf16.msra.mxu0 0
    %711 = vmatprep.subr.bf16.mxu0 0
    %712 = vmatpush1.bf16.msra.mxu0 0
    %713 = vmatprep.subr.bf16.mxu0 0
    %714 = vmatpush1.bf16.msra.mxu0 0
    %715 = vmatprep.subr.bf16.mxu0 0
    %716 = vmatpush1.bf16.msra.mxu0 0
    %717 = vmatprep.subr.bf16.mxu0 0
    %718 = vmatpush1.bf16.msra.mxu0 0
    %719 = vmatprep.subr.bf16.mxu0 0
    %720 = vmatpush1.bf16.msra.mxu0 0
    %721 = vmatprep.subr.bf16.mxu0 0
    %722 = vmatpush1.bf16.msra.mxu0 0
    %723 = vmatprep.subr.bf16.mxu0 0
    %724 = vmatpush1.bf16.msra.mxu0 0
    %725 = vmatprep.mubr.bf16.mxu0 0
    %726 = vmatmul.mubr.bf16.gmra.mrb[0].mxu0 %v262
    %v727 = vpop.f32.mrb[0].mxu0
    %v728 = vadd.f32 %v685, %v727
    %v729 = vpop.f32.mrb[0].mxu0
    %v730 = vadd.f32 %v687, %v729
    %v731 = vpop.f32.mrb[0].mxu0
    %v732 = vadd.f32 %v689, %v731
    %v733 = vpop.f32.mrb[0].mxu0
    %v734 = vadd.f32 %v691, %v733
    %735 = vdwg.mxu0
    %736 = vmatprep.subr.bf16.mxu0 0
    %737 = vmatpush1.bf16.msra.mxu0 %v508
    %738 = vmatprep.subr.bf16.mxu0 0
    %739 = vmatpush1.bf16.msra.mxu0 %v511
    %740 = vmatprep.subr.bf16.mxu0 0
    %741 = vmatpush1.bf16.msra.mxu0 %v514
    %742 = vmatprep.subr.bf16.mxu0 0
    %743 = vmatpush1.bf16.msra.mxu0 %v517
    %744 = vmatprep.subr.bf16.mxu0 0
    %745 = vmatpush1.bf16.msra.mxu0 %v520
    %746 = vmatprep.subr.bf16.mxu0 0
    %747 = vmatpush1.bf16.msra.mxu0 %v523
    %748 = vmatprep.subr.bf16.mxu0 0
    %749 = vmatpush1.bf16.msra.mxu0 %v526
    %750 = vmatprep.subr.bf16.mxu0 0
    %751 = vmatpush1.bf16.msra.mxu0 %v529
    %752 = vmatprep.subr.bf16.mxu0 0
    %753 = vmatpush1.bf16.msra.mxu0 %v532
    %754 = vmatprep.subr.bf16.mxu0 0
    %755 = vmatpush1.bf16.msra.mxu0 %v535
    %756 = vmatprep.subr.bf16.mxu0 0
    %757 = vmatpush1.bf16.msra.mxu0 %v538
    %758 = vmatprep.subr.bf16.mxu0 0
    %759 = vmatpush1.bf16.msra.mxu0 %v541
    %760 = vmatprep.subr.bf16.mxu0 0
    %761 = vmatpush1.bf16.msra.mxu0 %v544
    %762 = vmatprep.subr.bf16.mxu0 0
    %763 = vmatpush1.bf16.msra.mxu0 %v547
    %764 = vmatprep.subr.bf16.mxu0 0
    %765 = vmatpush1.bf16.msra.mxu0 %v550
    %766 = vmatprep.subr.bf16.mxu0 0
    %767 = vmatpush1.bf16.msra.mxu0 %v553
    %768 = vmatprep.mubr.bf16.mxu0 %v261
    %769 = vmatmul.mubr.bf16.gmra.mrb[0].mxu0 %v260
    %v770 = vpop.f32.mrb[0].mxu0
    %v771 = vadd.f32 %v246, %v770
    %v772 = vpop.f32.mrb[0].mxu0
    %v773 = vpop.f32.mrb[0].mxu0
    %v774 = vadd.f32 %v246, %v773
    %v775 = vpop.f32.mrb[0].mxu0
    %776 = vdwg.mxu0
    %777 = vmatprep.subr.bf16.mxu0 0
    %778 = vmatpush1.bf16.msra.mxu0 %v556
    %779 = vmatprep.subr.bf16.mxu0 0
    %780 = vmatpush1.bf16.msra.mxu0 %v559
    %781 = vmatprep.subr.bf16.mxu0 0
    %782 = vmatpush1.bf16.msra.mxu0 %v562
    %783 = vmatprep.subr.bf16.mxu0 0
    %784 = vmatpush1.bf16.msra.mxu0 %v565
    %785 = vmatprep.subr.bf16.mxu0 0
    %786 = vmatpush1.bf16.msra.mxu0 %v568
    %787 = vmatprep.subr.bf16.mxu0 0
    %788 = vmatpush1.bf16.msra.mxu0 %v571
    %789 = vmatprep.subr.bf16.mxu0 0
    %790 = vmatpush1.bf16.msra.mxu0 %v574
    %791 = vmatprep.subr.bf16.mxu0 0
    %792 = vmatpush1.bf16.msra.mxu0 %v577
    %793 = vmatprep.subr.bf16.mxu0 0
    %794 = vmatpush1.bf16.msra.mxu0 0
    %795 = vmatprep.subr.bf16.mxu0 0
    %796 = vmatpush1.bf16.msra.mxu0 0
    %797 = vmatprep.subr.bf16.mxu0 0
    %798 = vmatpush1.bf16.msra.mxu0 0
    %799 = vmatprep.subr.bf16.mxu0 0
    %800 = vmatpush1.bf16.msra.mxu0 0
    %801 = vmatprep.subr.bf16.mxu0 0
    %802 = vmatpush1.bf16.msra.mxu0 0
    %803 = vmatprep.subr.bf16.mxu0 0
    %804 = vmatpush1.bf16.msra.mxu0 0
    %805 = vmatprep.subr.bf16.mxu0 0
    %806 = vmatpush1.bf16.msra.mxu0 0
    %807 = vmatprep.subr.bf16.mxu0 0
    %808 = vmatpush1.bf16.msra.mxu0 0
    %809 = vmatprep.mubr.bf16.mxu0 0
    %810 = vmatmul.mubr.bf16.gmra.mrb[0].mxu0 %v262
    %v811 = vpop.f32.mrb[0].mxu0
    %v812 = vadd.f32 %v771, %v811
    %v813 = vpop.f32.mrb[0].mxu0
    %v814 = vpop.f32.mrb[0].mxu0
    %v815 = vadd.f32 %v774, %v814
    %v816 = vpop.f32.mrb[0].mxu0
    %817 = vdwg.mxu0
    %v818 = vmax.f32 %v728, 0.0
    %v819 = vmax.f32 %v730, 0.0
    %v820 = vmax.f32 %v812, 0.0
    %v821 = vmax.f32 %v732, 0.0
    %v822 = vmax.f32 %v734, 0.0
    %v823 = vmax.f32 %v815, 0.0
    %v824 = vpack.c.bf16 %v821, %v818
    %v825 = vpack.c.bf16 %v822, %v819
    %v826 = vpack.c.bf16 %v823, %v820
    %v827 = vld [vmem:[#allocation4] sm:$0xff]
    %v828 = vld [vmem:[#allocation4 + $0x8] sm:$0xff]
    %v829 = vld [vmem:[#allocation4 + $0x10] sm:$0xff]
    %v830 = vld [vmem:[#allocation4 + $0x18] sm:$0xff]
    %v831 = vld [vmem:[#allocation4 + $0x20] sm:$0xff]
    %v832 = vld [vmem:[#allocation4 + $0x28] sm:$0xff]
    %v833 = vld [vmem:[#allocation4 + $0x30] sm:$0xff]
    %v834 = vld [vmem:[#allocation4 + $0x38] sm:$0xff]
    %v835 = vld [vmem:[#allocation4 + $0x40] sm:$0xff]
    %v836 = vld [vmem:[#allocation4 + $0x48] sm:$0xff]
    %v837 = vld [vmem:[#allocation4 + $0x50] sm:$0xff]
    %v838 = vld [vmem:[#allocation4 + $0x58] sm:$0xff]
    %v839 = vld [vmem:[#allocation4 + $0x60] sm:$0xff]
    %v840 = vld [vmem:[#allocation4 + $0x68] sm:$0xff]
    %v841 = vld [vmem:[#allocation4 + $0x70] sm:$0xff]
    %v842 = vld [vmem:[#allocation4 + $0x78] sm:$0xff]
    %v843 = vld [vmem:[#allocation4 + $0x80] sm:$0xff]
    %v844 = vld [vmem:[#allocation4 + $0x88] sm:$0xff]
    %v845 = vld [vmem:[#allocation4 + $0x90] sm:$0xff]
    %v846 = vld [vmem:[#allocation4 + $0x98] sm:$0xff]
    %v847 = vld [vmem:[#allocation4 + $0xa0] sm:$0xff]
    %v848 = vld [vmem:[#allocation4 + $0xa8] sm:$0xff]
    %v849 = vld [vmem:[#allocation4 + $0xb0] sm:$0xff]
    %v850 = vld [vmem:[#allocation4 + $0xb8] sm:$0xff]
    %v851 = vld [vmem:[#allocation4 + $0xc0] sm:$0xff]
    %v852 = vld [vmem:[#allocation4 + $0xc8] sm:$0xff]
    %v853 = vld [vmem:[#allocation4 + $0xd0] sm:$0xff]
    %v854 = vld [vmem:[#allocation4 + $0xd8] sm:$0xff]
    %v855 = vld [vmem:[#allocation4 + $0xe0] sm:$0xff]
    %v856 = vld [vmem:[#allocation4 + $0xe8] sm:$0xff]
    %v857 = vld [vmem:[#allocation4 + $0xf0] sm:$0xff]
    %v858 = vld [vmem:[#allocation4 + $0xf8] sm:$0xff]
    %v859 = vld [vmem:[#allocation4 + $0x100] sm:$0xff]
    %v860 = vld [vmem:[#allocation4 + $0x108] sm:$0xff]
    %v861 = vld [vmem:[#allocation4 + $0x110] sm:$0xff]
    %v862 = vld [vmem:[#allocation4 + $0x118] sm:$0xff]
    %v863 = vld [vmem:[#allocation4 + $0x120] sm:$0xff]
    %v864 = vld [vmem:[#allocation4 + $0x128] sm:$0xff]
    %v865 = vld [vmem:[#allocation4 + $0x130] sm:$0xff]
    %v866 = vld [vmem:[#allocation4 + $0x138] sm:$0xff]
    %v867 = vld [vmem:[#allocation4 + $0x140] sm:$0xff]
    %v868 = vld [vmem:[#allocation4 + $0x148] sm:$0xff]
    %v869 = vld [vmem:[#allocation4 + $0x150] sm:$0xff]
    %v870 = vld [vmem:[#allocation4 + $0x158] sm:$0xff]
    %v871 = vld [vmem:[#allocation4 + $0x160] sm:$0xff]
    %v872 = vld [vmem:[#allocation4 + $0x168] sm:$0xff]
    %v873 = vld [vmem:[#allocation4 + $0x170] sm:$0xff]
    %v874 = vld [vmem:[#allocation4 + $0x178] sm:$0xff]
    %v875 = vld [vmem:[#allocation4 + $0x180] sm:$0xff]
    %v876 = vld [vmem:[#allocation4 + $0x188] sm:$0xff]
    %v877 = vld [vmem:[#allocation4 + $0x190] sm:$0xff]
    %v878 = vld [vmem:[#allocation4 + $0x198] sm:$0xff]
    %v879 = vld [vmem:[#allocation4 + $0x1a0] sm:$0xff]
    %v880 = vld [vmem:[#allocation4 + $0x1a8] sm:$0xff]
    %v881 = vld [vmem:[#allocation4 + $0x1b0] sm:$0xff]
    %v882 = vld [vmem:[#allocation4 + $0x1b8] sm:$0xff]
    %v883 = vld [vmem:[#allocation4 + $0x1c0] sm:$0xff]
    %v884 = vld [vmem:[#allocation4 + $0x1c8] sm:$0xff]
    %v885 = vld [vmem:[#allocation4 + $0x1d0] sm:$0xff]
    %v886 = vld [vmem:[#allocation4 + $0x1d8] sm:$0xff]
    %v887 = vld [vmem:[#allocation4 + $0x1e0] sm:$0xff]
    %v888 = vld [vmem:[#allocation4 + $0x1e8] sm:$0xff]
    %v889 = vld [vmem:[#allocation4 + $0x1f0] sm:$0xff]
    %v890 = vld [vmem:[#allocation4 + $0x1f8] sm:$0xff]
    %v891 = vld [vmem:[#allocation4 + $0x200] sm:$0xff]
    %v892 = vld [vmem:[#allocation4 + $0x208] sm:$0xff]
    %v893 = vld [vmem:[#allocation4 + $0x210] sm:$0xff]
    %v894 = vld [vmem:[#allocation4 + $0x218] sm:$0xff]
    %v895 = vld [vmem:[#allocation4 + $0x220] sm:$0xff]
    %v896 = vld [vmem:[#allocation4 + $0x228] sm:$0xff]
    %v897 = vld [vmem:[#allocation4 + $0x230] sm:$0xff]
    %v898 = vld [vmem:[#allocation4 + $0x238] sm:$0xff]
    %v899 = vld [vmem:[#allocation4 + $0x240] sm:$0xff]
    %v900 = vld [vmem:[#allocation4 + $0x248] sm:$0xff]
    %v901 = vld [vmem:[#allocation4 + $0x250] sm:$0xff]
    %v902 = vld [vmem:[#allocation4 + $0x258] sm:$0xff]
    %v903 = vld [vmem:[#allocation4 + $0x260] sm:$0xff]
    %v904 = vld [vmem:[#allocation4 + $0x268] sm:$0xff]
    %v905 = vld [vmem:[#allocation4 + $0x270] sm:$0xff]
    %v906 = vld [vmem:[#allocation4 + $0x278] sm:$0xff]
    %v907 = vld [vmem:[#allocation4 + $0x280] sm:$0xff]
    %v908 = vld [vmem:[#allocation4 + $0x288] sm:$0xff]
    %v909 = vld [vmem:[#allocation4 + $0x290] sm:$0xff]
    %v910 = vld [vmem:[#allocation4 + $0x298] sm:$0xff]
    %v911 = vld [vmem:[#allocation4 + $0x2a0] sm:$0xff]
    %v912 = vld [vmem:[#allocation4 + $0x2a8] sm:$0xff]
    %v913 = vld [vmem:[#allocation4 + $0x2b0] sm:$0xff]
    %v914 = vld [vmem:[#allocation4 + $0x2b8] sm:$0xff]
    %v915 = vld [vmem:[#allocation4 + $0x2c0] sm:$0xff]
    %v916 = vld [vmem:[#allocation4 + $0x2c8] sm:$0xff]
    %v917 = vld [vmem:[#allocation4 + $0x2d0] sm:$0xff]
    %v918 = vld [vmem:[#allocation4 + $0x2d8] sm:$0xff]
    %v919 = vld [vmem:[#allocation4 + $0x2e0] sm:$0xff]
    %v920 = vld [vmem:[#allocation4 + $0x2e8] sm:$0xff]
    %v921 = vld [vmem:[#allocation4 + $0x2f0] sm:$0xff]
    %v922 = vld [vmem:[#allocation4 + $0x2f8] sm:$0xff]
    %v923 = vld [vmem:[#allocation4 + $0x300] sm:$0xff]
    %v924 = vld [vmem:[#allocation4 + $0x308] sm:$0xff]
    %v925 = vld [vmem:[#allocation4 + $0x310] sm:$0xff]
    %v926 = vld [vmem:[#allocation4 + $0x318] sm:$0xff]
    %v927 = vld [vmem:[#allocation4 + $0x320] sm:$0xff]
    %v928 = vld [vmem:[#allocation4 + $0x328] sm:$0xff]
    %v929 = vld [vmem:[#allocation4 + $0x330] sm:$0xff]
    %v930 = vld [vmem:[#allocation4 + $0x338] sm:$0xff]
    %v931 = vld [vmem:[#allocation4 + $0x340] sm:$0xff]
    %v932 = vld [vmem:[#allocation4 + $0x348] sm:$0xff]
    %v933 = vld [vmem:[#allocation4 + $0x350] sm:$0xff]
    %v934 = vld [vmem:[#allocation4 + $0x358] sm:$0xff]
    %v935 = vld [vmem:[#allocation4 + $0x360] sm:$0xff]
    %v936 = vld [vmem:[#allocation4 + $0x368] sm:$0xff]
    %v937 = vld [vmem:[#allocation4 + $0x370] sm:$0xff]
    %v938 = vld [vmem:[#allocation4 + $0x378] sm:$0xff]
    %v939 = vld [vmem:[#allocation4 + $0x380] sm:$0xff]
    %v940 = vld [vmem:[#allocation4 + $0x388] sm:$0xff]
    %v941 = vld [vmem:[#allocation4 + $0x390] sm:$0xff]
    %v942 = vld [vmem:[#allocation4 + $0x398] sm:$0xff]
    %v943 = vld [vmem:[#allocation4 + $0x3a0] sm:$0xff]
    %v944 = vld [vmem:[#allocation4 + $0x3a8] sm:$0xff]
    %v945 = vld [vmem:[#allocation4 + $0x3b0] sm:$0xff]
    %v946 = vld [vmem:[#allocation4 + $0x3b8] sm:$0xff]
    %v947 = vld [vmem:[#allocation4 + $0x3c0] sm:$0xff]
    %v948 = vld [vmem:[#allocation4 + $0x3c8] sm:$0xff]
    %v949 = vld [vmem:[#allocation4 + $0x3d0] sm:$0xff]
    %v950 = vld [vmem:[#allocation4 + $0x3d8] sm:$0xff]
    %v951 = vld [vmem:[#allocation4 + $0x3e0] sm:$0xff]
    %v952 = vld [vmem:[#allocation4 + $0x3e8] sm:$0xff]
    %v953 = vld [vmem:[#allocation4 + $0x3f0] sm:$0xff]
    %v954 = vld [vmem:[#allocation4 + $0x3f8] sm:$0xff]
    %v955 = vld [vmem:[#allocation4 + $0x400] sm:$0xff]
    %v956 = vld [vmem:[#allocation4 + $0x408] sm:$0xff]
    %v957 = vld [vmem:[#allocation4 + $0x410] sm:$0xff]
    %v958 = vld [vmem:[#allocation4 + $0x418] sm:$0xff]
    %v959 = vld [vmem:[#allocation4 + $0x420] sm:$0xff]
    %v960 = vld [vmem:[#allocation4 + $0x428] sm:$0xff]
    %v961 = vld [vmem:[#allocation4 + $0x430] sm:$0xff]
    %v962 = vld [vmem:[#allocation4 + $0x438] sm:$0xff]
    %v963 = vld [vmem:[#allocation4 + $0x440] sm:$0xff]
    %v964 = vld [vmem:[#allocation4 + $0x448] sm:$0xff]
    %v965 = vld [vmem:[#allocation4 + $0x450] sm:$0xff]
    %v966 = vld [vmem:[#allocation4 + $0x458] sm:$0xff]
    %v967 = vld [vmem:[#allocation4 + $0x460] sm:$0xff]
    %v968 = vld [vmem:[#allocation4 + $0x468] sm:$0xff]
    %v969 = vld [vmem:[#allocation4 + $0x470] sm:$0xff]
    %v970 = vld [vmem:[#allocation4 + $0x478] sm:$0xff]
    %v971 = vld [vmem:[%s5] sm:$0x3f]
    %v973 = vlaneseq
    %v974 = vshrl.u32 %v973, 7
    %v975 = vsub.s32 0, %v974
    %v976 = vrot.slane %v971, %v975
    %v977 = vlaneseq
    %v978 = vshrl.u32 %v977, 7
    %v979 = vsub.s32 1, %v978
    %v980 = vrot.slane %v971, %v979
    %v981 = vlaneseq
    %v982 = vshrl.u32 %v981, 7
    %v983 = vsub.s32 2, %v982
    %v984 = vrot.slane %v971, %v983
    %v985 = vlaneseq
    %v986 = vshrl.u32 %v985, 7
    %v987 = vsub.s32 3, %v986
    %v988 = vrot.slane %v971, %v987
    %v989 = vlaneseq
    %v990 = vshrl.u32 %v989, 7
    %v991 = vsub.s32 4, %v990
    %v992 = vrot.slane %v971, %v991
    %v993 = vlaneseq
    %v994 = vshrl.u32 %v993, 7
    %v995 = vsub.s32 5, %v994
    %v996 = vrot.slane %v971, %v995
    %v1147 = vunpack.c.l.b16 %v827
    %v1148 = vunpack.c.h.b16 %v827
    %v1149 = vunpack.c.l.b16 %v828
    %v1150 = vunpack.c.h.b16 %v828
    %v1151 = vunpack.c.l.b16 %v829
    %v1152 = vunpack.c.h.b16 %v829
    %v1153 = vunpack.c.l.b16 %v830
    %v1154 = vunpack.c.h.b16 %v830
    %v1155 = vunpack.c.l.b16 %v831
    %v1156 = vunpack.c.h.b16 %v831
    %v1157 = vunpack.c.l.b16 %v832
    %v1158 = vunpack.c.h.b16 %v832
    %v1159 = vunpack.c.l.b16 %v833
    %v1160 = vunpack.c.h.b16 %v833
    %v1161 = vunpack.c.l.b16 %v834
    %v1162 = vunpack.c.h.b16 %v834
    %v1163 = vunpack.c.l.b16 %v835
    %v1164 = vunpack.c.h.b16 %v835
    %v1165 = vunpack.c.l.b16 %v836
    %v1166 = vunpack.c.h.b16 %v836
    %v1167 = vunpack.c.l.b16 %v837
    %v1168 = vunpack.c.h.b16 %v837
    %v1169 = vunpack.c.l.b16 %v838
    %v1170 = vunpack.c.h.b16 %v838
    %v1171 = vunpack.c.l.b16 %v839
    %v1172 = vunpack.c.h.b16 %v839
    %v1173 = vunpack.c.l.b16 %v840
    %v1174 = vunpack.c.h.b16 %v840
    %v1175 = vunpack.c.l.b16 %v841
    %v1176 = vunpack.c.h.b16 %v841
    %v1177 = vunpack.c.l.b16 %v842
    %v1178 = vunpack.c.h.b16 %v842
    %v1179 = vunpack.c.l.b16 %v843
    %v1180 = vunpack.c.h.b16 %v843
    %v1181 = vunpack.c.l.b16 %v844
    %v1182 = vunpack.c.h.b16 %v844
    %v1183 = vunpack.c.l.b16 %v845
    %v1184 = vunpack.c.h.b16 %v845
    %v1185 = vunpack.c.l.b16 %v846
    %v1186 = vunpack.c.h.b16 %v846
    %v1187 = vunpack.c.l.b16 %v847
    %v1188 = vunpack.c.h.b16 %v847
    %v1189 = vunpack.c.l.b16 %v848
    %v1190 = vunpack.c.h.b16 %v848
    %v1191 = vunpack.c.l.b16 %v849
    %v1192 = vunpack.c.h.b16 %v849
    %v1193 = vunpack.c.l.b16 %v850
    %v1194 = vunpack.c.h.b16 %v850
    %v1195 = vunpack.c.l.b16 %v851
    %v1196 = vunpack.c.h.b16 %v851
    %v1197 = vunpack.c.l.b16 %v852
    %v1198 = vunpack.c.h.b16 %v852
    %v1199 = vunpack.c.l.b16 %v853
    %v1200 = vunpack.c.h.b16 %v853
    %v1201 = vunpack.c.l.b16 %v854
    %v1202 = vunpack.c.h.b16 %v854
    %v1203 = vunpack.c.l.b16 %v855
    %v1204 = vunpack.c.h.b16 %v855
    %v1205 = vunpack.c.l.b16 %v856
    %v1206 = vunpack.c.h.b16 %v856
    %v1207 = vunpack.c.l.b16 %v857
    %v1208 = vunpack.c.h.b16 %v857
    %v1209 = vunpack.c.l.b16 %v858
    %v1210 = vunpack.c.h.b16 %v858
    %v1211 = vunpack.c.l.b16 %v859
    %v1212 = vunpack.c.h.b16 %v859
    %v1213 = vunpack.c.l.b16 %v860
    %v1214 = vunpack.c.h.b16 %v860
    %v1215 = vunpack.c.l.b16 %v861
    %v1216 = vunpack.c.h.b16 %v861
    %v1217 = vunpack.c.l.b16 %v862
    %v1218 = vunpack.c.h.b16 %v862
    %v1219 = vunpack.c.l.b16 %v863
    %v1220 = vunpack.c.h.b16 %v863
    %v1221 = vunpack.c.l.b16 %v864
    %v1222 = vunpack.c.h.b16 %v864
    %v1223 = vunpack.c.l.b16 %v865
    %v1224 = vunpack.c.h.b16 %v865
    %v1225 = vunpack.c.l.b16 %v866
    %v1226 = vunpack.c.h.b16 %v866
    %v1227 = vunpack.c.l.b16 %v867
    %v1228 = vunpack.c.h.b16 %v867
    %v1229 = vunpack.c.l.b16 %v868
    %v1230 = vunpack.c.h.b16 %v868
    %v1231 = vunpack.c.l.b16 %v869
    %v1232 = vunpack.c.h.b16 %v869
    %v1233 = vunpack.c.l.b16 %v870
    %v1234 = vunpack.c.h.b16 %v870
    %v1235 = vunpack.c.l.b16 %v871
    %v1236 = vunpack.c.h.b16 %v871
    %v1237 = vunpack.c.l.b16 %v872
    %v1238 = vunpack.c.h.b16 %v872
    %v1239 = vunpack.c.l.b16 %v873
    %v1240 = vunpack.c.h.b16 %v873
    %v1241 = vunpack.c.l.b16 %v874
    %v1242 = vunpack.c.h.b16 %v874
    %v1243 = vunpack.c.l.b16 %v875
    %v1244 = vunpack.c.h.b16 %v875
    %v1245 = vunpack.c.l.b16 %v876
    %v1246 = vunpack.c.h.b16 %v876
    %v1247 = vunpack.c.l.b16 %v877
    %v1248 = vunpack.c.h.b16 %v877
    %v1249 = vunpack.c.l.b16 %v878
    %v1250 = vunpack.c.h.b16 %v878
    %v1251 = vunpack.c.l.b16 %v879
    %v1252 = vunpack.c.h.b16 %v879
    %v1253 = vunpack.c.l.b16 %v880
    %v1254 = vunpack.c.h.b16 %v880
    %v1255 = vunpack.c.l.b16 %v881
    %v1256 = vunpack.c.h.b16 %v881
    %v1257 = vunpack.c.l.b16 %v882
    %v1258 = vunpack.c.h.b16 %v882
    %v1259 = vunpack.c.l.b16 %v883
    %v1260 = vunpack.c.h.b16 %v883
    %v1261 = vunpack.c.l.b16 %v884
    %v1262 = vunpack.c.h.b16 %v884
    %v1263 = vunpack.c.l.b16 %v885
    %v1264 = vunpack.c.h.b16 %v885
    %v1265 = vunpack.c.l.b16 %v886
    %v1266 = vunpack.c.h.b16 %v886
    %v1267 = vunpack.c.l.b16 %v887
    %v1268 = vunpack.c.h.b16 %v887
    %v1269 = vunpack.c.l.b16 %v888
    %v1270 = vunpack.c.h.b16 %v888
    %v1271 = vunpack.c.l.b16 %v889
    %v1272 = vunpack.c.h.b16 %v889
    %v1273 = vunpack.c.l.b16 %v890
    %v1274 = vunpack.c.h.b16 %v890
    %v1275 = vunpack.c.l.b16 %v891
    %v1276 = vunpack.c.h.b16 %v891
    %v1277 = vunpack.c.l.b16 %v892
    %v1278 = vunpack.c.h.b16 %v892
    %v1279 = vunpack.c.l.b16 %v893
    %v1280 = vunpack.c.h.b16 %v893
    %v1281 = vunpack.c.l.b16 %v894
    %v1282 = vunpack.c.h.b16 %v894
    %v1283 = vunpack.c.l.b16 %v895
    %v1284 = vunpack.c.h.b16 %v895
    %v1285 = vunpack.c.l.b16 %v896
    %v1286 = vunpack.c.h.b16 %v896
    %v1287 = vunpack.c.l.b16 %v897
    %v1288 = vunpack.c.h.b16 %v897
    %v1289 = vunpack.c.l.b16 %v898
    %v1290 = vunpack.c.h.b16 %v898
    %v1291 = vunpack.c.l.b16 %v899
    %v1292 = vunpack.c.h.b16 %v899
    %v1293 = vunpack.c.l.b16 %v900
    %v1294 = vunpack.c.h.b16 %v900
    %v1295 = vunpack.c.l.b16 %v901
    %v1296 = vunpack.c.h.b16 %v901
    %v1297 = vunpack.c.l.b16 %v902
    %v1298 = vunpack.c.h.b16 %v902
    %v1299 = vunpack.c.l.b16 %v903
    %v1300 = vunpack.c.h.b16 %v903
    %v1301 = vunpack.c.l.b16 %v904
    %v1302 = vunpack.c.h.b16 %v904
    %v1303 = vunpack.c.l.b16 %v905
    %v1304 = vunpack.c.h.b16 %v905
    %v1305 = vunpack.c.l.b16 %v906
    %v1306 = vunpack.c.h.b16 %v906
    %v1307 = vunpack.c.l.b16 %v907
    %v1308 = vunpack.c.h.b16 %v907
    %v1309 = vunpack.c.l.b16 %v908
    %v1310 = vunpack.c.h.b16 %v908
    %v1311 = vunpack.c.l.b16 %v909
    %v1312 = vunpack.c.h.b16 %v909
    %v1313 = vunpack.c.l.b16 %v910
    %v1314 = vunpack.c.h.b16 %v910
    %v1315 = vunpack.c.l.b16 %v911
    %v1316 = vunpack.c.h.b16 %v911
    %v1317 = vunpack.c.l.b16 %v912
    %v1318 = vunpack.c.h.b16 %v912
    %v1319 = vunpack.c.l.b16 %v913
    %v1320 = vunpack.c.h.b16 %v913
    %v1321 = vunpack.c.l.b16 %v914
    %v1322 = vunpack.c.h.b16 %v914
    %v1323 = vunpack.c.l.b16 %v915
    %v1324 = vunpack.c.h.b16 %v915
    %v1325 = vunpack.c.l.b16 %v916
    %v1326 = vunpack.c.h.b16 %v916
    %v1327 = vunpack.c.l.b16 %v917
    %v1328 = vunpack.c.h.b16 %v917
    %v1329 = vunpack.c.l.b16 %v918
    %v1330 = vunpack.c.h.b16 %v918
    %v1331 = vunpack.c.l.b16 %v919
    %v1332 = vunpack.c.h.b16 %v919
    %v1333 = vunpack.c.l.b16 %v920
    %v1334 = vunpack.c.h.b16 %v920
    %v1335 = vunpack.c.l.b16 %v921
    %v1336 = vunpack.c.h.b16 %v921
    %v1337 = vunpack.c.l.b16 %v922
    %v1338 = vunpack.c.h.b16 %v922
    %v1339 = vunpack.c.l.b16 %v923
    %v1340 = vunpack.c.h.b16 %v923
    %v1341 = vunpack.c.l.b16 %v924
    %v1342 = vunpack.c.h.b16 %v924
    %v1343 = vunpack.c.l.b16 %v925
    %v1344 = vunpack.c.h.b16 %v925
    %v1345 = vunpack.c.l.b16 %v926
    %v1346 = vunpack.c.h.b16 %v926
    %v1347 = vunpack.c.l.b16 %v927
    %v1348 = vunpack.c.h.b16 %v927
    %v1349 = vunpack.c.l.b16 %v928
    %v1350 = vunpack.c.h.b16 %v928
    %v1351 = vunpack.c.l.b16 %v929
    %v1352 = vunpack.c.h.b16 %v929
    %v1353 = vunpack.c.l.b16 %v930
    %v1354 = vunpack.c.h.b16 %v930
    %v1355 = vunpack.c.l.b16 %v931
    %v1356 = vunpack.c.h.b16 %v931
    %v1357 = vunpack.c.l.b16 %v932
    %v1358 = vunpack.c.h.b16 %v932
    %v1359 = vunpack.c.l.b16 %v933
    %v1360 = vunpack.c.h.b16 %v933
    %v1361 = vunpack.c.l.b16 %v934
    %v1362 = vunpack.c.h.b16 %v934
    %v1363 = vunpack.c.l.b16 %v935
    %v1364 = vunpack.c.h.b16 %v935
    %v1365 = vunpack.c.l.b16 %v936
    %v1366 = vunpack.c.h.b16 %v936
    %v1367 = vunpack.c.l.b16 %v937
    %v1368 = vunpack.c.h.b16 %v937
    %v1369 = vunpack.c.l.b16 %v938
    %v1370 = vunpack.c.h.b16 %v938
    %v1371 = vunpack.c.l.b16 %v939
    %v1372 = vunpack.c.h.b16 %v939
    %v1373 = vunpack.c.l.b16 %v940
    %v1374 = vunpack.c.h.b16 %v940
    %v1375 = vunpack.c.l.b16 %v941
    %v1376 = vunpack.c.h.b16 %v941
    %v1377 = vunpack.c.l.b16 %v942
    %v1378 = vunpack.c.h.b16 %v942
    %v1379 = vunpack.c.l.b16 %v943
    %v1380 = vunpack.c.h.b16 %v943
    %v1381 = vunpack.c.l.b16 %v944
    %v1382 = vunpack.c.h.b16 %v944
    %v1383 = vunpack.c.l.b16 %v945
    %v1384 = vunpack.c.h.b16 %v945
    %v1385 = vunpack.c.l.b16 %v946
    %v1386 = vunpack.c.h.b16 %v946
    %v1387 = vunpack.c.l.b16 %v947
    %v1388 = vunpack.c.h.b16 %v947
    %v1389 = vunpack.c.l.b16 %v948
    %v1390 = vunpack.c.h.b16 %v948
    %v1391 = vunpack.c.l.b16 %v949
    %v1392 = vunpack.c.h.b16 %v949
    %v1393 = vunpack.c.l.b16 %v950
    %v1394 = vunpack.c.h.b16 %v950
    %v1395 = vunpack.c.l.b16 %v951
    %v1396 = vunpack.c.h.b16 %v951
    %v1397 = vunpack.c.l.b16 %v952
    %v1398 = vunpack.c.h.b16 %v952
    %v1399 = vunpack.c.l.b16 %v953
    %v1400 = vunpack.c.h.b16 %v953
    %v1401 = vunpack.c.l.b16 %v954
    %v1402 = vunpack.c.h.b16 %v954
    %v1403 = vunpack.c.l.b16 %v955
    %v1404 = vunpack.c.h.b16 %v955
    %v1405 = vunpack.c.l.b16 %v956
    %v1406 = vunpack.c.h.b16 %v956
    %v1407 = vunpack.c.l.b16 %v957
    %v1408 = vunpack.c.h.b16 %v957
    %v1409 = vunpack.c.l.b16 %v958
    %v1410 = vunpack.c.h.b16 %v958
    %v1411 = vunpack.c.l.b16 %v959
    %v1412 = vunpack.c.h.b16 %v959
    %v1413 = vunpack.c.l.b16 %v960
    %v1414 = vunpack.c.h.b16 %v960
    %v1415 = vunpack.c.l.b16 %v961
    %v1416 = vunpack.c.h.b16 %v961
    %v1417 = vunpack.c.l.b16 %v962
    %v1418 = vunpack.c.h.b16 %v962
    %v1419 = vunpack.c.l.b16 %v963
    %v1420 = vunpack.c.h.b16 %v963
    %v1421 = vunpack.c.l.b16 %v964
    %v1422 = vunpack.c.h.b16 %v964
    %v1423 = vunpack.c.l.b16 %v965
    %v1424 = vunpack.c.h.b16 %v965
    %v1425 = vunpack.c.l.b16 %v966
    %v1426 = vunpack.c.h.b16 %v966
    %v1427 = vunpack.c.l.b16 %v967
    %v1428 = vunpack.c.h.b16 %v967
    %v1429 = vunpack.c.l.b16 %v968
    %v1430 = vunpack.c.h.b16 %v968
    %v1431 = vunpack.c.l.b16 %v969
    %v1432 = vunpack.c.h.b16 %v969
    %v1433 = vunpack.c.l.b16 %v970
    %v1434 = vunpack.c.h.b16 %v970
    %v1435 = vpack.c.b16 %v1153, %v1147
    %v1436 = vpack.c.b16 %v1154, %v1148
    %v1437 = vpack.c.b16 %v1155, %v1149
    %v1438 = vpack.c.b16 %v1156, %v1150
    %v1439 = vpack.c.b16 %v1157, %v1151
    %v1440 = vpack.c.b16 %v1158, %v1152
    %v1441 = vpack.c.b16 %v1165, %v1159
    %v1442 = vpack.c.b16 %v1166, %v1160
    %v1443 = vpack.c.b16 %v1167, %v1161
    %v1444 = vpack.c.b16 %v1168, %v1162
    %v1445 = vpack.c.b16 %v1169, %v1163
    %v1446 = vpack.c.b16 %v1170, %v1164
    %v1447 = vpack.c.b16 %v1177, %v1171
    %v1448 = vpack.c.b16 %v1178, %v1172
    %v1449 = vpack.c.b16 %v1179, %v1173
    %v1450 = vpack.c.b16 %v1180, %v1174
    %v1451 = vpack.c.b16 %v1181, %v1175
    %v1452 = vpack.c.b16 %v1182, %v1176
    %v1453 = vpack.c.b16 %v1189, %v1183
    %v1454 = vpack.c.b16 %v1190, %v1184
    %v1455 = vpack.c.b16 %v1191, %v1185
    %v1456 = vpack.c.b16 %v1192, %v1186
    %v1457 = vpack.c.b16 %v1193, %v1187
    %v1458 = vpack.c.b16 %v1194, %v1188
    %v1459 = vpack.c.b16 %v1201, %v1195
    %v1460 = vpack.c.b16 %v1202, %v1196
    %v1461 = vpack.c.b16 %v1203, %v1197
    %v1462 = vpack.c.b16 %v1204, %v1198
    %v1463 = vpack.c.b16 %v1205, %v1199
    %v1464 = vpack.c.b16 %v1206, %v1200
    %v1465 = vpack.c.b16 %v1213, %v1207
    %v1466 = vpack.c.b16 %v1214, %v1208
    %v1467 = vpack.c.b16 %v1215, %v1209
    %v1468 = vpack.c.b16 %v1216, %v1210
    %v1469 = vpack.c.b16 %v1217, %v1211
    %v1470 = vpack.c.b16 %v1218, %v1212
    %v1471 = vpack.c.b16 %v1225, %v1219
    %v1472 = vpack.c.b16 %v1226, %v1220
    %v1473 = vpack.c.b16 %v1227, %v1221
    %v1474 = vpack.c.b16 %v1228, %v1222
    %v1475 = vpack.c.b16 %v1229, %v1223
    %v1476 = vpack.c.b16 %v1230, %v1224
    %v1477 = vpack.c.b16 %v1237, %v1231
    %v1478 = vpack.c.b16 %v1238, %v1232
    %v1479 = vpack.c.b16 %v1239, %v1233
    %v1480 = vpack.c.b16 %v1240, %v1234
    %v1481 = vpack.c.b16 %v1241, %v1235
    %v1482 = vpack.c.b16 %v1242, %v1236
    %v1483 = vpack.c.b16 %v1249, %v1243
    %v1484 = vpack.c.b16 %v1250, %v1244
    %v1485 = vpack.c.b16 %v1251, %v1245
    %v1486 = vpack.c.b16 %v1252, %v1246
    %v1487 = vpack.c.b16 %v1253, %v1247
    %v1488 = vpack.c.b16 %v1254, %v1248
    %v1489 = vpack.c.b16 %v1261, %v1255
    %v1490 = vpack.c.b16 %v1262, %v1256
    %v1491 = vpack.c.b16 %v1263, %v1257
    %v1492 = vpack.c.b16 %v1264, %v1258
    %v1493 = vpack.c.b16 %v1265, %v1259
    %v1494 = vpack.c.b16 %v1266, %v1260
    %v1495 = vpack.c.b16 %v1273, %v1267
    %v1496 = vpack.c.b16 %v1274, %v1268
    %v1497 = vpack.c.b16 %v1275, %v1269
    %v1498 = vpack.c.b16 %v1276, %v1270
    %v1499 = vpack.c.b16 %v1277, %v1271
    %v1500 = vpack.c.b16 %v1278, %v1272
    %v1501 = vpack.c.b16 %v1285, %v1279
    %v1502 = vpack.c.b16 %v1286, %v1280
    %v1503 = vpack.c.b16 %v1287, %v1281
    %v1504 = vpack.c.b16 %v1288, %v1282
    %v1505 = vpack.c.b16 %v1289, %v1283
    %v1506 = vpack.c.b16 %v1290, %v1284
    %v1507 = vpack.c.b16 %v1297, %v1291
    %v1508 = vpack.c.b16 %v1298, %v1292
    %v1509 = vpack.c.b16 %v1299, %v1293
    %v1510 = vpack.c.b16 %v1300, %v1294
    %v1511 = vpack.c.b16 %v1301, %v1295
    %v1512 = vpack.c.b16 %v1302, %v1296
    %v1513 = vpack.c.b16 %v1309, %v1303
    %v1514 = vpack.c.b16 %v1310, %v1304
    %v1515 = vpack.c.b16 %v1311, %v1305
    %v1516 = vpack.c.b16 %v1312, %v1306
    %v1517 = vpack.c.b16 %v1313, %v1307
    %v1518 = vpack.c.b16 %v1314, %v1308
    %v1519 = vpack.c.b16 %v1321, %v1315
    %v1520 = vpack.c.b16 %v1322, %v1316
    %v1521 = vpack.c.b16 %v1323, %v1317
    %v1522 = vpack.c.b16 %v1324, %v1318
    %v1523 = vpack.c.b16 %v1325, %v1319
    %v1524 = vpack.c.b16 %v1326, %v1320
    %v1525 = vpack.c.b16 %v1333, %v1327
    %v1526 = vpack.c.b16 %v1334, %v1328
    %v1527 = vpack.c.b16 %v1335, %v1329
    %v1528 = vpack.c.b16 %v1336, %v1330
    %v1529 = vpack.c.b16 %v1337, %v1331
    %v1530 = vpack.c.b16 %v1338, %v1332
    %v1531 = vpack.c.b16 %v1345, %v1339
    %v1532 = vpack.c.b16 %v1346, %v1340
    %v1533 = vpack.c.b16 %v1347, %v1341
    %v1534 = vpack.c.b16 %v1348, %v1342
    %v1535 = vpack.c.b16 %v1349, %v1343
    %v1536 = vpack.c.b16 %v1350, %v1344
    %v1537 = vpack.c.b16 %v1357, %v1351
    %v1538 = vpack.c.b16 %v1358, %v1352
    %v1539 = vpack.c.b16 %v1359, %v1353
    %v1540 = vpack.c.b16 %v1360, %v1354
    %v1541 = vpack.c.b16 %v1361, %v1355
    %v1542 = vpack.c.b16 %v1362, %v1356
    %v1543 = vpack.c.b16 %v1369, %v1363
    %v1544 = vpack.c.b16 %v1370, %v1364
    %v1545 = vpack.c.b16 %v1371, %v1365
    %v1546 = vpack.c.b16 %v1372, %v1366
    %v1547 = vpack.c.b16 %v1373, %v1367
    %v1548 = vpack.c.b16 %v1374, %v1368
    %v1549 = vpack.c.b16 %v1381, %v1375
    %v1550 = vpack.c.b16 %v1382, %v1376
    %v1551 = vpack.c.b16 %v1383, %v1377
    %v1552 = vpack.c.b16 %v1384, %v1378
    %v1553 = vpack.c.b16 %v1385, %v1379
    %v1554 = vpack.c.b16 %v1386, %v1380
    %v1555 = vpack.c.b16 %v1393, %v1387
    %v1556 = vpack.c.b16 %v1394, %v1388
    %v1557 = vpack.c.b16 %v1395, %v1389
    %v1558 = vpack.c.b16 %v1396, %v1390
    %v1559 = vpack.c.b16 %v1397, %v1391
    %v1560 = vpack.c.b16 %v1398, %v1392
    %v1561 = vpack.c.b16 %v1405, %v1399
    %v1562 = vpack.c.b16 %v1406, %v1400
    %v1563 = vpack.c.b16 %v1407, %v1401
    %v1564 = vpack.c.b16 %v1408, %v1402
    %v1565 = vpack.c.b16 %v1409, %v1403
    %v1566 = vpack.c.b16 %v1410, %v1404
    %v1567 = vpack.c.b16 %v1417, %v1411
    %v1568 = vpack.c.b16 %v1418, %v1412
    %v1569 = vpack.c.b16 %v1419, %v1413
    %v1570 = vpack.c.b16 %v1420, %v1414
    %v1571 = vpack.c.b16 %v1421, %v1415
    %v1572 = vpack.c.b16 %v1422, %v1416
    %v1573 = vpack.c.b16 %v1429, %v1423
    %v1574 = vpack.c.b16 %v1430, %v1424
    %v1575 = vpack.c.b16 %v1431, %v1425
    %v1576 = vpack.c.b16 %v1432, %v1426
    %v1577 = vpack.c.b16 %v1433, %v1427
    %v1578 = vpack.c.b16 %v1434, %v1428
    %1723 = vmatprep.subr.bf16.mxu0 %v1436
    %1724 = vmatpush1.bf16.msra.mxu0 %v1435
    %1725 = vmatprep.subr.bf16.mxu0 %v1442
    %1726 = vmatpush1.bf16.msra.mxu0 %v1441
    %1727 = vmatprep.subr.bf16.mxu0 %v1448
    %1728 = vmatpush1.bf16.msra.mxu0 %v1447
    %1729 = vmatprep.subr.bf16.mxu0 %v1454
    %1730 = vmatpush1.bf16.msra.mxu0 %v1453
    %1731 = vmatprep.subr.bf16.mxu0 %v1460
    %1732 = vmatpush1.bf16.msra.mxu0 %v1459
    %1733 = vmatprep.subr.bf16.mxu0 %v1466
    %1734 = vmatpush1.bf16.msra.mxu0 %v1465
    %1735 = vmatprep.subr.bf16.mxu0 %v1472
    %1736 = vmatpush1.bf16.msra.mxu0 %v1471
    %1737 = vmatprep.subr.bf16.mxu0 %v1478
    %1738 = vmatpush1.bf16.msra.mxu0 %v1477
    %1739 = vmatprep.subr.bf16.mxu0 %v1484
    %1740 = vmatpush1.bf16.msra.mxu0 %v1483
    %1741 = vmatprep.subr.bf16.mxu0 %v1490
    %1742 = vmatpush1.bf16.msra.mxu0 %v1489
    %1743 = vmatprep.subr.bf16.mxu0 %v1496
    %1744 = vmatpush1.bf16.msra.mxu0 %v1495
    %1745 = vmatprep.subr.bf16.mxu0 %v1502
    %1746 = vmatpush1.bf16.msra.mxu0 %v1501
    %1747 = vmatprep.subr.bf16.mxu0 %v1508
    %1748 = vmatpush1.bf16.msra.mxu0 %v1507
    %1749 = vmatprep.subr.bf16.mxu0 %v1514
    %1750 = vmatpush1.bf16.msra.mxu0 %v1513
    %1751 = vmatprep.subr.bf16.mxu0 %v1520
    %1752 = vmatpush1.bf16.msra.mxu0 %v1519
    %1753 = vmatprep.subr.bf16.mxu0 %v1526
    %1754 = vmatpush1.bf16.msra.mxu0 %v1525
    %1755 = vmatprep.mubr.bf16.mxu0 %v825
    %1756 = vmatmul.mubr.bf16.gmra.mrb[0].mxu0 %v824
    %v1757 = vpop.f32.mrb[0].mxu0
    %v1758 = vadd.f32 %v976, %v1757
    %v1759 = vpop.f32.mrb[0].mxu0
    %v1760 = vadd.f32 %v980, %v1759
    %v1761 = vpop.f32.mrb[0].mxu0
    %v1762 = vadd.f32 %v976, %v1761
    %v1763 = vpop.f32.mrb[0].mxu0
    %v1764 = vadd.f32 %v980, %v1763
    %1765 = vdwg.mxu0
    %1766 = vmatprep.subr.bf16.mxu0 %v1532
    %1767 = vmatpush1.bf16.msra.mxu0 %v1531
    %1768 = vmatprep.subr.bf16.mxu0 %v1538
    %1769 = vmatpush1.bf16.msra.mxu0 %v1537
    %1770 = vmatprep.subr.bf16.mxu0 %v1544
    %1771 = vmatpush1.bf16.msra.mxu0 %v1543
    %1772 = vmatprep.subr.bf16.mxu0 %v1550
    %1773 = vmatpush1.bf16.msra.mxu0 %v1549
    %1774 = vmatprep.subr.bf16.mxu0 %v1556
    %1775 = vmatpush1.bf16.msra.mxu0 %v1555
    %1776 = vmatprep.subr.bf16.mxu0 %v1562
    %1777 = vmatpush1.bf16.msra.mxu0 %v1561
    %1778 = vmatprep.subr.bf16.mxu0 %v1568
    %1779 = vmatpush1.bf16.msra.mxu0 %v1567
    %1780 = vmatprep.subr.bf16.mxu0 %v1574
    %1781 = vmatpush1.bf16.msra.mxu0 %v1573
    %1782 = vmatprep.subr.bf16.mxu0 0
    %1783 = vmatpush1.bf16.msra.mxu0 0
    %1784 = vmatprep.subr.bf16.mxu0 0
    %1785 = vmatpush1.bf16.msra.mxu0 0
    %1786 = vmatprep.subr.bf16.mxu0 0
    %1787 = vmatpush1.bf16.msra.mxu0 0
    %1788 = vmatprep.subr.bf16.mxu0 0
    %1789 = vmatpush1.bf16.msra.mxu0 0
    %1790 = vmatprep.subr.bf16.mxu0 0
    %1791 = vmatpush1.bf16.msra.mxu0 0
    %1792 = vmatprep.subr.bf16.mxu0 0
    %1793 = vmatpush1.bf16.msra.mxu0 0
    %1794 = vmatprep.subr.bf16.mxu0 0
    %1795 = vmatpush1.bf16.msra.mxu0 0
    %1796 = vmatprep.subr.bf16.mxu0 0
    %1797 = vmatpush1.bf16.msra.mxu0 0
    %1798 = vmatprep.mubr.bf16.mxu0 0
    %1799 = vmatmul.mubr.bf16.gmra.mrb[0].mxu0 %v826
    %v1800 = vpop.f32.mrb[0].mxu0
    %v1801 = vadd.f32 %v1758, %v1800
    %v1802 = vpop.f32.mrb[0].mxu0
    %v1803 = vadd.f32 %v1760, %v1802
    %v1804 = vpop.f32.mrb[0].mxu0
    %v1805 = vadd.f32 %v1762, %v1804
    %v1806 = vpop.f32.mrb[0].mxu0
    %v1807 = vadd.f32 %v1764, %v1806
    %1808 = vdwg.mxu0
    %1809 = vmatprep.subr.bf16.mxu0 %v1438
    %1810 = vmatpush1.bf16.msra.mxu0 %v1437
    %1811 = vmatprep.subr.bf16.mxu0 %v1444
    %1812 = vmatpush1.bf16.msra.mxu0 %v1443
    %1813 = vmatprep.subr.bf16.mxu0 %v1450
    %1814 = vmatpush1.bf16.msra.mxu0 %v1449
    %1815 = vmatprep.subr.bf16.mxu0 %v1456
    %1816 = vmatpush1.bf16.msra.mxu0 %v1455
    %1817 = vmatprep.subr.bf16.mxu0 %v1462
    %1818 = vmatpush1.bf16.msra.mxu0 %v1461
    %1819 = vmatprep.subr.bf16.mxu0 %v1468
    %1820 = vmatpush1.bf16.msra.mxu0 %v1467
    %1821 = vmatprep.subr.bf16.mxu0 %v1474
    %1822 = vmatpush1.bf16.msra.mxu0 %v1473
    %1823 = vmatprep.subr.bf16.mxu0 %v1480
    %1824 = vmatpush1.bf16.msra.mxu0 %v1479
    %1825 = vmatprep.subr.bf16.mxu0 %v1486
    %1826 = vmatpush1.bf16.msra.mxu0 %v1485
    %1827 = vmatprep.subr.bf16.mxu0 %v1492
    %1828 = vmatpush1.bf16.msra.mxu0 %v1491
    %1829 = vmatprep.subr.bf16.mxu0 %v1498
    %1830 = vmatpush1.bf16.msra.mxu0 %v1497
    %1831 = vmatprep.subr.bf16.mxu0 %v1504
    %1832 = vmatpush1.bf16.msra.mxu0 %v1503
    %1833 = vmatprep.subr.bf16.mxu0 %v1510
    %1834 = vmatpush1.bf16.msra.mxu0 %v1509
    %1835 = vmatprep.subr.bf16.mxu0 %v1516
    %1836 = vmatpush1.bf16.msra.mxu0 %v1515
    %1837 = vmatprep.subr.bf16.mxu0 %v1522
    %1838 = vmatpush1.bf16.msra.mxu0 %v1521
    %1839 = vmatprep.subr.bf16.mxu0 %v1528
    %1840 = vmatpush1.bf16.msra.mxu0 %v1527
    %1841 = vmatprep.mubr.bf16.mxu0 %v825
    %1842 = vmatmul.mubr.bf16.gmra.mrb[0].mxu0 %v824
    %v1843 = vpop.f32.mrb[0].mxu0
    %v1844 = vadd.f32 %v984, %v1843
    %v1845 = vpop.f32.mrb[0].mxu0
    %v1846 = vadd.f32 %v988, %v1845
    %v1847 = vpop.f32.mrb[0].mxu0
    %v1848 = vadd.f32 %v984, %v1847
    %v1849 = vpop.f32.mrb[0].mxu0
    %v1850 = vadd.f32 %v988, %v1849
    %1851 = vdwg.mxu0
    %1852 = vmatprep.subr.bf16.mxu0 %v1534
    %1853 = vmatpush1.bf16.msra.mxu0 %v1533
    %1854 = vmatprep.subr.bf16.mxu0 %v1540
    %1855 = vmatpush1.bf16.msra.mxu0 %v1539
    %1856 = vmatprep.subr.bf16.mxu0 %v1546
    %1857 = vmatpush1.bf16.msra.mxu0 %v1545
    %1858 = vmatprep.subr.bf16.mxu0 %v1552
    %1859 = vmatpush1.bf16.msra.mxu0 %v1551
    %1860 = vmatprep.subr.bf16.mxu0 %v1558
    %1861 = vmatpush1.bf16.msra.mxu0 %v1557
    %1862 = vmatprep.subr.bf16.mxu0 %v1564
    %1863 = vmatpush1.bf16.msra.mxu0 %v1563
    %1864 = vmatprep.subr.bf16.mxu0 %v1570
    %1865 = vmatpush1.bf16.msra.mxu0 %v1569
    %1866 = vmatprep.subr.bf16.mxu0 %v1576
    %1867 = vmatpush1.bf16.msra.mxu0 %v1575
    %1868 = vmatprep.subr.bf16.mxu0 0
    %1869 = vmatpush1.bf16.msra.mxu0 0
    %1870 = vmatprep.subr.bf16.mxu0 0
    %1871 = vmatpush1.bf16.msra.mxu0 0
    %1872 = vmatprep.subr.bf16.mxu0 0
    %1873 = vmatpush1.bf16.msra.mxu0 0
    %1874 = vmatprep.subr.bf16.mxu0 0
    %1875 = vmatpush1.bf16.msra.mxu0 0
    %1876 = vmatprep.subr.bf16.mxu0 0
    %1877 = vmatpush1.bf16.msra.mxu0 0
    %1878 = vmatprep.subr.bf16.mxu0 0
    %1879 = vmatpush1.bf16.msra.mxu0 0
    %1880 = vmatprep.subr.bf16.mxu0 0
    %1881 = vmatpush1.bf16.msra.mxu0 0
    %1882 = vmatprep.subr.bf16.mxu0 0
    %1883 = vmatpush1.bf16.msra.mxu0 0
    %1884 = vmatprep.mubr.bf16.mxu0 0
    %1885 = vmatmul.mubr.bf16.gmra.mrb[0].mxu0 %v826
    %v1886 = vpop.f32.mrb[0].mxu0
    %v1887 = vadd.f32 %v1844, %v1886
    %v1888 = vpop.f32.mrb[0].mxu0
    %v1889 = vadd.f32 %v1846, %v1888
    %v1890 = vpop.f32.mrb[0].mxu0
    %v1891 = vadd.f32 %v1848, %v1890
    %v1892 = vpop.f32.mrb[0].mxu0
    %v1893 = vadd.f32 %v1850, %v1892
    %1894 = vdwg.mxu0
    %1895 = vmatprep.subr.bf16.mxu0 %v1440
    %1896 = vmatpush1.bf16.msra.mxu0 %v1439
    %1897 = vmatprep.subr.bf16.mxu0 %v1446
    %1898 = vmatpush1.bf16.msra.mxu0 %v1445
    %1899 = vmatprep.subr.bf16.mxu0 %v1452
    %1900 = vmatpush1.bf16.msra.mxu0 %v1451
    %1901 = vmatprep.subr.bf16.mxu0 %v1458
    %1902 = vmatpush1.bf16.msra.mxu0 %v1457
    %1903 = vmatprep.subr.bf16.mxu0 %v1464
    %1904 = vmatpush1.bf16.msra.mxu0 %v1463
    %1905 = vmatprep.subr.bf16.mxu0 %v1470
    %1906 = vmatpush1.bf16.msra.mxu0 %v1469
    %1907 = vmatprep.subr.bf16.mxu0 %v1476
    %1908 = vmatpush1.bf16.msra.mxu0 %v1475
    %1909 = vmatprep.subr.bf16.mxu0 %v1482
    %1910 = vmatpush1.bf16.msra.mxu0 %v1481
    %1911 = vmatprep.subr.bf16.mxu0 %v1488
    %1912 = vmatpush1.bf16.msra.mxu0 %v1487
    %1913 = vmatprep.subr.bf16.mxu0 %v1494
    %1914 = vmatpush1.bf16.msra.mxu0 %v1493
    %1915 = vmatprep.subr.bf16.mxu0 %v1500
    %1916 = vmatpush1.bf16.msra.mxu0 %v1499
    %1917 = vmatprep.subr.bf16.mxu0 %v1506
    %1918 = vmatpush1.bf16.msra.mxu0 %v1505
    %1919 = vmatprep.subr.bf16.mxu0 %v1512
    %1920 = vmatpush1.bf16.msra.mxu0 %v1511
    %1921 = vmatprep.subr.bf16.mxu0 %v1518
    %1922 = vmatpush1.bf16.msra.mxu0 %v1517
    %1923 = vmatprep.subr.bf16.mxu0 %v1524
    %1924 = vmatpush1.bf16.msra.mxu0 %v1523
    %1925 = vmatprep.subr.bf16.mxu0 %v1530
    %1926 = vmatpush1.bf16.msra.mxu0 %v1529
    %1927 = vmatprep.mubr.bf16.mxu0 %v825
    %1928 = vmatmul.mubr.bf16.gmra.mrb[0].mxu0 %v824
    %v1929 = vpop.f32.mrb[0].mxu0
    %v1930 = vadd.f32 %v992, %v1929
    %v1931 = vpop.f32.mrb[0].mxu0
    %v1932 = vadd.f32 %v996, %v1931
    %v1933 = vpop.f32.mrb[0].mxu0
    %v1934 = vadd.f32 %v992, %v1933
    %v1935 = vpop.f32.mrb[0].mxu0
    %v1936 = vadd.f32 %v996, %v1935
    %1937 = vdwg.mxu0
    %1938 = vmatprep.subr.bf16.mxu0 %v1536
    %1939 = vmatpush1.bf16.msra.mxu0 %v1535
    %1940 = vmatprep.subr.bf16.mxu0 %v1542
    %1941 = vmatpush1.bf16.msra.mxu0 %v1541
    %1942 = vmatprep.subr.bf16.mxu0 %v1548
    %1943 = vmatpush1.bf16.msra.mxu0 %v1547
    %1944 = vmatprep.subr.bf16.mxu0 %v1554
    %1945 = vmatpush1.bf16.msra.mxu0 %v1553
    %1946 = vmatprep.subr.bf16.mxu0 %v1560
    %1947 = vmatpush1.bf16.msra.mxu0 %v1559
    %1948 = vmatprep.subr.bf16.mxu0 %v1566
    %1949 = vmatpush1.bf16.msra.mxu0 %v1565
    %1950 = vmatprep.subr.bf16.mxu0 %v1572
    %1951 = vmatpush1.bf16.msra.mxu0 %v1571
    %1952 = vmatprep.subr.bf16.mxu0 %v1578
    %1953 = vmatpush1.bf16.msra.mxu0 %v1577
    %1954 = vmatprep.subr.bf16.mxu0 0
    %1955 = vmatpush1.bf16.msra.mxu0 0
    %1956 = vmatprep.subr.bf16.mxu0 0
    %1957 = vmatpush1.bf16.msra.mxu0 0
    %1958 = vmatprep.subr.bf16.mxu0 0
    %1959 = vmatpush1.bf16.msra.mxu0 0
    %1960 = vmatprep.subr.bf16.mxu0 0
    %1961 = vmatpush1.bf16.msra.mxu0 0
    %1962 = vmatprep.subr.bf16.mxu0 0
    %1963 = vmatpush1.bf16.msra.mxu0 0
    %1964 = vmatprep.subr.bf16.mxu0 0
    %1965 = vmatpush1.bf16.msra.mxu0 0
    %1966 = vmatprep.subr.bf16.mxu0 0
    %1967 = vmatpush1.bf16.msra.mxu0 0
    %1968 = vmatprep.subr.bf16.mxu0 0
    %1969 = vmatpush1.bf16.msra.mxu0 0
    %1970 = vmatprep.mubr.bf16.mxu0 0
    %1971 = vmatmul.mubr.bf16.gmra.mrb[0].mxu0 %v826
    %v1972 = vpop.f32.mrb[0].mxu0
    %v1973 = vadd.f32 %v1930, %v1972
    %v1974 = vpop.f32.mrb[0].mxu0
    %v1975 = vadd.f32 %v1932, %v1974
    %v1976 = vpop.f32.mrb[0].mxu0
    %v1977 = vadd.f32 %v1934, %v1976
    %v1978 = vpop.f32.mrb[0].mxu0
    %v1979 = vadd.f32 %v1936, %v1978
    %1980 = vdwg.mxu0
    %v1981 = vmax.f32 %v1801, 0.0
    %v1982 = vmax.f32 %v1803, 0.0
    %v1983 = vmax.f32 %v1887, 0.0
    %v1984 = vmax.f32 %v1889, 0.0
    %v1985 = vmax.f32 %v1973, 0.0
    %v1986 = vmax.f32 %v1975, 0.0
    %v1987 = vmax.f32 %v1805, 0.0
    %v1988 = vmax.f32 %v1807, 0.0
    %v1989 = vmax.f32 %v1891, 0.0
    %v1990 = vmax.f32 %v1893, 0.0
    %v1991 = vmax.f32 %v1977, 0.0
    %v1992 = vmax.f32 %v1979, 0.0
    %v1993 = vpack.c.bf16 %v1987, %v1981
    %v1994 = vpack.c.bf16 %v1988, %v1982
    %v1995 = vpack.c.bf16 %v1989, %v1983
    %v1996 = vpack.c.bf16 %v1990, %v1984
    %v1997 = vpack.c.bf16 %v1991, %v1985
    %v1998 = vpack.c.bf16 %v1992, %v1986
    %v1999 = vld [vmem:[#allocation6] sm:$0xff]
    %v2000 = vld [vmem:[#allocation6 + $0x8] sm:$0xf]
    %v2001 = vld [vmem:[#allocation6 + $0xc] sm:$0xff]
    %v2002 = vld [vmem:[#allocation6 + $0x14] sm:$0xf]
    %v2003 = vld [vmem:[#allocation6 + $0x18] sm:$0xff]
    %v2004 = vld [vmem:[#allocation6 + $0x20] sm:$0xf]
    %v2005 = vld [vmem:[#allocation6 + $0x24] sm:$0xff]
    %v2006 = vld [vmem:[#allocation6 + $0x2c] sm:$0xf]
    %v2007 = vld [vmem:[#allocation6 + $0x30] sm:$0xff]
    %v2008 = vld [vmem:[#allocation6 + $0x38] sm:$0xf]
    %v2009 = vld [vmem:[#allocation6 + $0x3c] sm:$0xff]
    %v2010 = vld [vmem:[#allocation6 + $0x44] sm:$0xf]
    %v2011 = vld [vmem:[#allocation6 + $0x48] sm:$0xff]
    %v2012 = vld [vmem:[#allocation6 + $0x50] sm:$0xf]
    %v2013 = vld [vmem:[#allocation6 + $0x54] sm:$0xff]
    %v2014 = vld [vmem:[#allocation6 + $0x5c] sm:$0xf]
    %v2015 = vld [vmem:[#allocation6 + $0x60] sm:$0xff]
    %v2016 = vld [vmem:[#allocation6 + $0x68] sm:$0xf]
    %v2017 = vld [vmem:[#allocation6 + $0x6c] sm:$0xff]
    %v2018 = vld [vmem:[#allocation6 + $0x74] sm:$0xf]
    %v2019 = vld [vmem:[#allocation6 + $0x78] sm:$0xff]
    %v2020 = vld [vmem:[#allocation6 + $0x80] sm:$0xf]
    %v2021 = vld [vmem:[#allocation6 + $0x84] sm:$0xff]
    %v2022 = vld [vmem:[#allocation6 + $0x8c] sm:$0xf]
    %v2023 = vld [vmem:[#allocation6 + $0x90] sm:$0xff]
    %v2024 = vld [vmem:[#allocation6 + $0x98] sm:$0xf]
    %v2025 = vld [vmem:[#allocation6 + $0x9c] sm:$0xff]
    %v2026 = vld [vmem:[#allocation6 + $0xa4] sm:$0xf]
    %v2027 = vld [vmem:[#allocation6 + $0xa8] sm:$0xff]
    %v2028 = vld [vmem:[#allocation6 + $0xb0] sm:$0xf]
    %v2029 = vld [vmem:[#allocation6 + $0xb4] sm:$0xff]
    %v2030 = vld [vmem:[#allocation6 + $0xbc] sm:$0xf]
    %v2031 = vld [vmem:[#allocation6 + $0xc0] sm:$0xff]
    %v2032 = vld [vmem:[#allocation6 + $0xc8] sm:$0xf]
    %v2033 = vld [vmem:[#allocation6 + $0xcc] sm:$0xff]
    %v2034 = vld [vmem:[#allocation6 + $0xd4] sm:$0xf]
    %v2035 = vld [vmem:[#allocation6 + $0xd8] sm:$0xff]
    %v2036 = vld [vmem:[#allocation6 + $0xe0] sm:$0xf]
    %v2037 = vld [vmem:[#allocation6 + $0xe4] sm:$0xff]
    %v2038 = vld [vmem:[#allocation6 + $0xec] sm:$0xf]
    %v2039 = vld [vmem:[#allocation6 + $0xf0] sm:$0xff]
    %v2040 = vld [vmem:[#allocation6 + $0xf8] sm:$0xf]
    %v2041 = vld [vmem:[#allocation6 + $0xfc] sm:$0xff]
    %v2042 = vld [vmem:[#allocation6 + $0x104] sm:$0xf]
    %v2043 = vld [vmem:[#allocation6 + $0x108] sm:$0xff]
    %v2044 = vld [vmem:[#allocation6 + $0x110] sm:$0xf]
    %v2045 = vld [vmem:[#allocation6 + $0x114] sm:$0xff]
    %v2046 = vld [vmem:[#allocation6 + $0x11c] sm:$0xf]
    %v2047 = vld [vmem:[#allocation6 + $0x120] sm:$0xff]
    %v2048 = vld [vmem:[#allocation6 + $0x128] sm:$0xf]
    %v2049 = vld [vmem:[#allocation6 + $0x12c] sm:$0xff]
    %v2050 = vld [vmem:[#allocation6 + $0x134] sm:$0xf]
    %v2051 = vld [vmem:[#allocation6 + $0x138] sm:$0xff]
    %v2052 = vld [vmem:[#allocation6 + $0x140] sm:$0xf]
    %v2053 = vld [vmem:[#allocation6 + $0x144] sm:$0xff]
    %v2054 = vld [vmem:[#allocation6 + $0x14c] sm:$0xf]
    %v2055 = vld [vmem:[#allocation6 + $0x150] sm:$0xff]
    %v2056 = vld [vmem:[#allocation6 + $0x158] sm:$0xf]
    %v2057 = vld [vmem:[#allocation6 + $0x15c] sm:$0xff]
    %v2058 = vld [vmem:[#allocation6 + $0x164] sm:$0xf]
    %v2059 = vld [vmem:[#allocation6 + $0x168] sm:$0xff]
    %v2060 = vld [vmem:[#allocation6 + $0x170] sm:$0xf]
    %v2061 = vld [vmem:[#allocation6 + $0x174] sm:$0xff]
    %v2062 = vld [vmem:[#allocation6 + $0x17c] sm:$0xf]
    %v2063 = vld [vmem:[#allocation6 + $0x180] sm:$0xff]
    %v2064 = vld [vmem:[#allocation6 + $0x188] sm:$0xf]
    %v2065 = vld [vmem:[#allocation6 + $0x18c] sm:$0xff]
    %v2066 = vld [vmem:[#allocation6 + $0x194] sm:$0xf]
    %v2067 = vld [vmem:[#allocation6 + $0x198] sm:$0xff]
    %v2068 = vld [vmem:[#allocation6 + $0x1a0] sm:$0xf]
    %v2069 = vld [vmem:[#allocation6 + $0x1a4] sm:$0xff]
    %v2070 = vld [vmem:[#allocation6 + $0x1ac] sm:$0xf]
    %v2071 = vld [vmem:[#allocation6 + $0x1b0] sm:$0xff]
    %v2072 = vld [vmem:[#allocation6 + $0x1b8] sm:$0xf]
    %v2073 = vld [vmem:[#allocation6 + $0x1bc] sm:$0xff]
    %v2074 = vld [vmem:[#allocation6 + $0x1c4] sm:$0xf]
    %v2075 = vld [vmem:[#allocation6 + $0x1c8] sm:$0xff]
    %v2076 = vld [vmem:[#allocation6 + $0x1d0] sm:$0xf]
    %v2077 = vld [vmem:[#allocation6 + $0x1d4] sm:$0xff]
    %v2078 = vld [vmem:[#allocation6 + $0x1dc] sm:$0xf]
    %v2079 = vld [vmem:[#allocation6 + $0x1e0] sm:$0xff]
    %v2080 = vld [vmem:[#allocation6 + $0x1e8] sm:$0xf]
    %v2081 = vld [vmem:[#allocation6 + $0x1ec] sm:$0xff]
    %v2082 = vld [vmem:[#allocation6 + $0x1f4] sm:$0xf]
    %v2083 = vld [vmem:[#allocation6 + $0x1f8] sm:$0xff]
    %v2084 = vld [vmem:[#allocation6 + $0x200] sm:$0xf]
    %v2085 = vld [vmem:[#allocation6 + $0x204] sm:$0xff]
    %v2086 = vld [vmem:[#allocation6 + $0x20c] sm:$0xf]
    %v2087 = vld [vmem:[#allocation6 + $0x210] sm:$0xff]
    %v2088 = vld [vmem:[#allocation6 + $0x218] sm:$0xf]
    %v2089 = vld [vmem:[#allocation6 + $0x21c] sm:$0xff]
    %v2090 = vld [vmem:[#allocation6 + $0x224] sm:$0xf]
    %v2091 = vld [vmem:[#allocation6 + $0x228] sm:$0xff]
    %v2092 = vld [vmem:[#allocation6 + $0x230] sm:$0xf]
    %v2093 = vld [vmem:[#allocation6 + $0x234] sm:$0xff]
    %v2094 = vld [vmem:[#allocation6 + $0x23c] sm:$0xf]
    %v2095 = vld [vmem:[#allocation6 + $0x240] sm:$0xff]
    %v2096 = vld [vmem:[#allocation6 + $0x248] sm:$0xf]
    %v2097 = vld [vmem:[#allocation6 + $0x24c] sm:$0xff]
    %v2098 = vld [vmem:[#allocation6 + $0x254] sm:$0xf]
    %v2099 = vld [vmem:[#allocation6 + $0x258] sm:$0xff]
    %v2100 = vld [vmem:[#allocation6 + $0x260] sm:$0xf]
    %v2101 = vld [vmem:[#allocation6 + $0x264] sm:$0xff]
    %v2102 = vld [vmem:[#allocation6 + $0x26c] sm:$0xf]
    %v2103 = vld [vmem:[#allocation6 + $0x270] sm:$0xff]
    %v2104 = vld [vmem:[#allocation6 + $0x278] sm:$0xf]
    %v2105 = vld [vmem:[#allocation6 + $0x27c] sm:$0xff]
    %v2106 = vld [vmem:[#allocation6 + $0x284] sm:$0xf]
    %v2107 = vld [vmem:[#allocation6 + $0x288] sm:$0xff]
    %v2108 = vld [vmem:[#allocation6 + $0x290] sm:$0xf]
    %v2109 = vld [vmem:[#allocation6 + $0x294] sm:$0xff]
    %v2110 = vld [vmem:[#allocation6 + $0x29c] sm:$0xf]
    %v2111 = vld [vmem:[#allocation6 + $0x2a0] sm:$0xff]
    %v2112 = vld [vmem:[#allocation6 + $0x2a8] sm:$0xf]
    %v2113 = vld [vmem:[#allocation6 + $0x2ac] sm:$0xff]
    %v2114 = vld [vmem:[#allocation6 + $0x2b4] sm:$0xf]
    %v2115 = vld [vmem:[#allocation6 + $0x2b8] sm:$0xff]
    %v2116 = vld [vmem:[#allocation6 + $0x2c0] sm:$0xf]
    %v2117 = vld [vmem:[#allocation6 + $0x2c4] sm:$0xff]
    %v2118 = vld [vmem:[#allocation6 + $0x2cc] sm:$0xf]
    %v2119 = vld [vmem:[#allocation6 + $0x2d0] sm:$0xff]
    %v2120 = vld [vmem:[#allocation6 + $0x2d8] sm:$0xf]
    %v2121 = vld [vmem:[#allocation6 + $0x2dc] sm:$0xff]
    %v2122 = vld [vmem:[#allocation6 + $0x2e4] sm:$0xf]
    %v2123 = vld [vmem:[#allocation6 + $0x2e8] sm:$0xff]
    %v2124 = vld [vmem:[#allocation6 + $0x2f0] sm:$0xf]
    %v2125 = vld [vmem:[#allocation6 + $0x2f4] sm:$0xff]
    %v2126 = vld [vmem:[#allocation6 + $0x2fc] sm:$0xf]
    %v2127 = vld [vmem:[#allocation6 + $0x300] sm:$0xff]
    %v2128 = vld [vmem:[#allocation6 + $0x308] sm:$0xf]
    %v2129 = vld [vmem:[#allocation6 + $0x30c] sm:$0xff]
    %v2130 = vld [vmem:[#allocation6 + $0x314] sm:$0xf]
    %v2131 = vld [vmem:[#allocation6 + $0x318] sm:$0xff]
    %v2132 = vld [vmem:[#allocation6 + $0x320] sm:$0xf]
    %v2133 = vld [vmem:[#allocation6 + $0x324] sm:$0xff]
    %v2134 = vld [vmem:[#allocation6 + $0x32c] sm:$0xf]
    %v2135 = vld [vmem:[#allocation6 + $0x330] sm:$0xff]
    %v2136 = vld [vmem:[#allocation6 + $0x338] sm:$0xf]
    %v2137 = vld [vmem:[#allocation6 + $0x33c] sm:$0xff]
    %v2138 = vld [vmem:[#allocation6 + $0x344] sm:$0xf]
    %v2139 = vld [vmem:[#allocation6 + $0x348] sm:$0xff]
    %v2140 = vld [vmem:[#allocation6 + $0x350] sm:$0xf]
    %v2141 = vld [vmem:[#allocation6 + $0x354] sm:$0xff]
    %v2142 = vld [vmem:[#allocation6 + $0x35c] sm:$0xf]
    %v2143 = vld [vmem:[#allocation6 + $0x360] sm:$0xff]
    %v2144 = vld [vmem:[#allocation6 + $0x368] sm:$0xf]
    %v2145 = vld [vmem:[#allocation6 + $0x36c] sm:$0xff]
    %v2146 = vld [vmem:[#allocation6 + $0x374] sm:$0xf]
    %v2147 = vld [vmem:[#allocation6 + $0x378] sm:$0xff]
    %v2148 = vld [vmem:[#allocation6 + $0x380] sm:$0xf]
    %v2149 = vld [vmem:[#allocation6 + $0x384] sm:$0xff]
    %v2150 = vld [vmem:[#allocation6 + $0x38c] sm:$0xf]
    %v2151 = vld [vmem:[#allocation6 + $0x390] sm:$0xff]
    %v2152 = vld [vmem:[#allocation6 + $0x398] sm:$0xf]
    %v2153 = vld [vmem:[#allocation6 + $0x39c] sm:$0xff]
    %v2154 = vld [vmem:[#allocation6 + $0x3a4] sm:$0xf]
    %v2155 = vld [vmem:[#allocation6 + $0x3a8] sm:$0xff]
    %v2156 = vld [vmem:[#allocation6 + $0x3b0] sm:$0xf]
    %v2157 = vld [vmem:[#allocation6 + $0x3b4] sm:$0xff]
    %v2158 = vld [vmem:[#allocation6 + $0x3bc] sm:$0xf]
    %v2159 = vld [vmem:[#allocation6 + $0x3c0] sm:$0xff]
    %v2160 = vld [vmem:[#allocation6 + $0x3c8] sm:$0xf]
    %v2161 = vld [vmem:[#allocation6 + $0x3cc] sm:$0xff]
    %v2162 = vld [vmem:[#allocation6 + $0x3d4] sm:$0xf]
    %v2163 = vld [vmem:[#allocation6 + $0x3d8] sm:$0xff]
    %v2164 = vld [vmem:[#allocation6 + $0x3e0] sm:$0xf]
    %v2165 = vld [vmem:[#allocation6 + $0x3e4] sm:$0xff]
    %v2166 = vld [vmem:[#allocation6 + $0x3ec] sm:$0xf]
    %v2167 = vld [vmem:[#allocation6 + $0x3f0] sm:$0xff]
    %v2168 = vld [vmem:[#allocation6 + $0x3f8] sm:$0xf]
    %v2169 = vld [vmem:[#allocation6 + $0x3fc] sm:$0xff]
    %v2170 = vld [vmem:[#allocation6 + $0x404] sm:$0xf]
    %v2171 = vld [vmem:[#allocation6 + $0x408] sm:$0xff]
    %v2172 = vld [vmem:[#allocation6 + $0x410] sm:$0xf]
    %v2173 = vld [vmem:[#allocation6 + $0x414] sm:$0xff]
    %v2174 = vld [vmem:[#allocation6 + $0x41c] sm:$0xf]
    %v2175 = vld [vmem:[#allocation6 + $0x420] sm:$0xff]
    %v2176 = vld [vmem:[#allocation6 + $0x428] sm:$0xf]
    %v2177 = vld [vmem:[#allocation6 + $0x42c] sm:$0xff]
    %v2178 = vld [vmem:[#allocation6 + $0x434] sm:$0xf]
    %v2179 = vld [vmem:[#allocation6 + $0x438] sm:$0xff]
    %v2180 = vld [vmem:[#allocation6 + $0x440] sm:$0xf]
    %v2181 = vld [vmem:[#allocation6 + $0x444] sm:$0xff]
    %v2182 = vld [vmem:[#allocation6 + $0x44c] sm:$0xf]
    %v2183 = vld [vmem:[#allocation6 + $0x450] sm:$0xff]
    %v2184 = vld [vmem:[#allocation6 + $0x458] sm:$0xf]
    %v2185 = vld [vmem:[#allocation6 + $0x45c] sm:$0xff]
    %v2186 = vld [vmem:[#allocation6 + $0x464] sm:$0xf]
    %v2187 = vld [vmem:[#allocation6 + $0x468] sm:$0xff]
    %v2188 = vld [vmem:[#allocation6 + $0x470] sm:$0xf]
    %v2189 = vld [vmem:[#allocation6 + $0x474] sm:$0xff]
    %v2190 = vld [vmem:[#allocation6 + $0x47c] sm:$0xf]
    %v2191 = vld [vmem:[%s7] sm:$0x7]
    %v2193 = vlaneseq
    %v2194 = vshrl.u32 %v2193, 7
    %v2195 = vsub.s32 0, %v2194
    %v2196 = vrot.slane %v2191, %v2195
    %v2197 = vlaneseq
    %v2198 = vshrl.u32 %v2197, 7
    %v2199 = vsub.s32 1, %v2198
    %v2200 = vrot.slane %v2191, %v2199
    %v2201 = vlaneseq
    %v2202 = vshrl.u32 %v2201, 7
    %v2203 = vsub.s32 2, %v2202
    %v2204 = vrot.slane %v2191, %v2203
    %v2400 = vunpack.c.l.b16 %v1999
    %v2401 = vunpack.c.h.b16 %v1999
    %v2402 = vunpack.c.l.b16 %v2000
    %v2403 = vunpack.c.l.b16 %v2001
    %v2404 = vunpack.c.h.b16 %v2001
    %v2405 = vunpack.c.l.b16 %v2002
    %v2406 = vunpack.c.l.b16 %v2003
    %v2407 = vunpack.c.h.b16 %v2003
    %v2408 = vunpack.c.l.b16 %v2004
    %v2409 = vunpack.c.l.b16 %v2005
    %v2410 = vunpack.c.h.b16 %v2005
    %v2411 = vunpack.c.l.b16 %v2006
    %v2412 = vunpack.c.l.b16 %v2007
    %v2413 = vunpack.c.h.b16 %v2007
    %v2414 = vunpack.c.l.b16 %v2008
    %v2415 = vunpack.c.l.b16 %v2009
    %v2416 = vunpack.c.h.b16 %v2009
    %v2417 = vunpack.c.l.b16 %v2010
    %v2418 = vunpack.c.l.b16 %v2011
    %v2419 = vunpack.c.h.b16 %v2011
    %v2420 = vunpack.c.l.b16 %v2012
    %v2421 = vunpack.c.l.b16 %v2013
    %v2422 = vunpack.c.h.b16 %v2013
    %v2423 = vunpack.c.l.b16 %v2014
    %v2424 = vunpack.c.l.b16 %v2015
    %v2425 = vunpack.c.h.b16 %v2015
    %v2426 = vunpack.c.l.b16 %v2016
    %v2427 = vunpack.c.l.b16 %v2017
    %v2428 = vunpack.c.h.b16 %v2017
    %v2429 = vunpack.c.l.b16 %v2018
    %v2430 = vunpack.c.l.b16 %v2019
    %v2431 = vunpack.c.h.b16 %v2019
    %v2432 = vunpack.c.l.b16 %v2020
    %v2433 = vunpack.c.l.b16 %v2021
    %v2434 = vunpack.c.h.b16 %v2021
    %v2435 = vunpack.c.l.b16 %v2022
    %v2436 = vunpack.c.l.b16 %v2023
    %v2437 = vunpack.c.h.b16 %v2023
    %v2438 = vunpack.c.l.b16 %v2024
    %v2439 = vunpack.c.l.b16 %v2025
    %v2440 = vunpack.c.h.b16 %v2025
    %v2441 = vunpack.c.l.b16 %v2026
    %v2442 = vunpack.c.l.b16 %v2027
    %v2443 = vunpack.c.h.b16 %v2027
    %v2444 = vunpack.c.l.b16 %v2028
    %v2445 = vunpack.c.l.b16 %v2029
    %v2446 = vunpack.c.h.b16 %v2029
    %v2447 = vunpack.c.l.b16 %v2030
    %v2448 = vunpack.c.l.b16 %v2031
    %v2449 = vunpack.c.h.b16 %v2031
    %v2450 = vunpack.c.l.b16 %v2032
    %v2451 = vunpack.c.l.b16 %v2033
    %v2452 = vunpack.c.h.b16 %v2033
    %v2453 = vunpack.c.l.b16 %v2034
    %v2454 = vunpack.c.l.b16 %v2035
    %v2455 = vunpack.c.h.b16 %v2035
    %v2456 = vunpack.c.l.b16 %v2036
    %v2457 = vunpack.c.l.b16 %v2037
    %v2458 = vunpack.c.h.b16 %v2037
    %v2459 = vunpack.c.l.b16 %v2038
    %v2460 = vunpack.c.l.b16 %v2039
    %v2461 = vunpack.c.h.b16 %v2039
    %v2462 = vunpack.c.l.b16 %v2040
    %v2463 = vunpack.c.l.b16 %v2041
    %v2464 = vunpack.c.h.b16 %v2041
    %v2465 = vunpack.c.l.b16 %v2042
    %v2466 = vunpack.c.l.b16 %v2043
    %v2467 = vunpack.c.h.b16 %v2043
    %v2468 = vunpack.c.l.b16 %v2044
    %v2469 = vunpack.c.l.b16 %v2045
    %v2470 = vunpack.c.h.b16 %v2045
    %v2471 = vunpack.c.l.b16 %v2046
    %v2472 = vunpack.c.l.b16 %v2047
    %v2473 = vunpack.c.h.b16 %v2047
    %v2474 = vunpack.c.l.b16 %v2048
    %v2475 = vunpack.c.l.b16 %v2049
    %v2476 = vunpack.c.h.b16 %v2049
    %v2477 = vunpack.c.l.b16 %v2050
    %v2478 = vunpack.c.l.b16 %v2051
    %v2479 = vunpack.c.h.b16 %v2051
    %v2480 = vunpack.c.l.b16 %v2052
    %v2481 = vunpack.c.l.b16 %v2053
    %v2482 = vunpack.c.h.b16 %v2053
    %v2483 = vunpack.c.l.b16 %v2054
    %v2484 = vunpack.c.l.b16 %v2055
    %v2485 = vunpack.c.h.b16 %v2055
    %v2486 = vunpack.c.l.b16 %v2056
    %v2487 = vunpack.c.l.b16 %v2057
    %v2488 = vunpack.c.h.b16 %v2057
    %v2489 = vunpack.c.l.b16 %v2058
    %v2490 = vunpack.c.l.b16 %v2059
    %v2491 = vunpack.c.h.b16 %v2059
    %v2492 = vunpack.c.l.b16 %v2060
    %v2493 = vunpack.c.l.b16 %v2061
    %v2494 = vunpack.c.h.b16 %v2061
    %v2495 = vunpack.c.l.b16 %v2062
    %v2496 = vunpack.c.l.b16 %v2063
    %v2497 = vunpack.c.h.b16 %v2063
    %v2498 = vunpack.c.l.b16 %v2064
    %v2499 = vunpack.c.l.b16 %v2065
    %v2500 = vunpack.c.h.b16 %v2065
    %v2501 = vunpack.c.l.b16 %v2066
    %v2502 = vunpack.c.l.b16 %v2067
    %v2503 = vunpack.c.h.b16 %v2067
    %v2504 = vunpack.c.l.b16 %v2068
    %v2505 = vunpack.c.l.b16 %v2069
    %v2506 = vunpack.c.h.b16 %v2069
    %v2507 = vunpack.c.l.b16 %v2070
    %v2508 = vunpack.c.l.b16 %v2071
    %v2509 = vunpack.c.h.b16 %v2071
    %v2510 = vunpack.c.l.b16 %v2072
    %v2511 = vunpack.c.l.b16 %v2073
    %v2512 = vunpack.c.h.b16 %v2073
    %v2513 = vunpack.c.l.b16 %v2074
    %v2514 = vunpack.c.l.b16 %v2075
    %v2515 = vunpack.c.h.b16 %v2075
    %v2516 = vunpack.c.l.b16 %v2076
    %v2517 = vunpack.c.l.b16 %v2077
    %v2518 = vunpack.c.h.b16 %v2077
    %v2519 = vunpack.c.l.b16 %v2078
    %v2520 = vunpack.c.l.b16 %v2079
    %v2521 = vunpack.c.h.b16 %v2079
    %v2522 = vunpack.c.l.b16 %v2080
    %v2523 = vunpack.c.l.b16 %v2081
    %v2524 = vunpack.c.h.b16 %v2081
    %v2525 = vunpack.c.l.b16 %v2082
    %v2526 = vunpack.c.l.b16 %v2083
    %v2527 = vunpack.c.h.b16 %v2083
    %v2528 = vunpack.c.l.b16 %v2084
    %v2529 = vunpack.c.l.b16 %v2085
    %v2530 = vunpack.c.h.b16 %v2085
    %v2531 = vunpack.c.l.b16 %v2086
    %v2532 = vunpack.c.l.b16 %v2087
    %v2533 = vunpack.c.h.b16 %v2087
    %v2534 = vunpack.c.l.b16 %v2088
    %v2535 = vunpack.c.l.b16 %v2089
    %v2536 = vunpack.c.h.b16 %v2089
    %v2537 = vunpack.c.l.b16 %v2090
    %v2538 = vunpack.c.l.b16 %v2091
    %v2539 = vunpack.c.h.b16 %v2091
    %v2540 = vunpack.c.l.b16 %v2092
    %v2541 = vunpack.c.l.b16 %v2093
    %v2542 = vunpack.c.h.b16 %v2093
    %v2543 = vunpack.c.l.b16 %v2094
    %v2544 = vunpack.c.l.b16 %v2095
    %v2545 = vunpack.c.h.b16 %v2095
    %v2546 = vunpack.c.l.b16 %v2096
    %v2547 = vunpack.c.l.b16 %v2097
    %v2548 = vunpack.c.h.b16 %v2097
    %v2549 = vunpack.c.l.b16 %v2098
    %v2550 = vunpack.c.l.b16 %v2099
    %v2551 = vunpack.c.h.b16 %v2099
    %v2552 = vunpack.c.l.b16 %v2100
    %v2553 = vunpack.c.l.b16 %v2101
    %v2554 = vunpack.c.h.b16 %v2101
    %v2555 = vunpack.c.l.b16 %v2102
    %v2556 = vunpack.c.l.b16 %v2103
    %v2557 = vunpack.c.h.b16 %v2103
    %v2558 = vunpack.c.l.b16 %v2104
    %v2559 = vunpack.c.l.b16 %v2105
    %v2560 = vunpack.c.h.b16 %v2105
    %v2561 = vunpack.c.l.b16 %v2106
    %v2562 = vunpack.c.l.b16 %v2107
    %v2563 = vunpack.c.h.b16 %v2107
    %v2564 = vunpack.c.l.b16 %v2108
    %v2565 = vunpack.c.l.b16 %v2109
    %v2566 = vunpack.c.h.b16 %v2109
    %v2567 = vunpack.c.l.b16 %v2110
    %v2568 = vunpack.c.l.b16 %v2111
    %v2569 = vunpack.c.h.b16 %v2111
    %v2570 = vunpack.c.l.b16 %v2112
    %v2571 = vunpack.c.l.b16 %v2113
    %v2572 = vunpack.c.h.b16 %v2113
    %v2573 = vunpack.c.l.b16 %v2114
    %v2574 = vunpack.c.l.b16 %v2115
    %v2575 = vunpack.c.h.b16 %v2115
    %v2576 = vunpack.c.l.b16 %v2116
    %v2577 = vunpack.c.l.b16 %v2117
    %v2578 = vunpack.c.h.b16 %v2117
    %v2579 = vunpack.c.l.b16 %v2118
    %v2580 = vunpack.c.l.b16 %v2119
    %v2581 = vunpack.c.h.b16 %v2119
    %v2582 = vunpack.c.l.b16 %v2120
    %v2583 = vunpack.c.l.b16 %v2121
    %v2584 = vunpack.c.h.b16 %v2121
    %v2585 = vunpack.c.l.b16 %v2122
    %v2586 = vunpack.c.l.b16 %v2123
    %v2587 = vunpack.c.h.b16 %v2123
    %v2588 = vunpack.c.l.b16 %v2124
    %v2589 = vunpack.c.l.b16 %v2125
    %v2590 = vunpack.c.h.b16 %v2125
    %v2591 = vunpack.c.l.b16 %v2126
    %v2592 = vunpack.c.l.b16 %v2127
    %v2593 = vunpack.c.h.b16 %v2127
    %v2594 = vunpack.c.l.b16 %v2128
    %v2595 = vunpack.c.l.b16 %v2129
    %v2596 = vunpack.c.h.b16 %v2129
    %v2597 = vunpack.c.l.b16 %v2130
    %v2598 = vunpack.c.l.b16 %v2131
    %v2599 = vunpack.c.h.b16 %v2131
    %v2600 = vunpack.c.l.b16 %v2132
    %v2601 = vunpack.c.l.b16 %v2133
    %v2602 = vunpack.c.h.b16 %v2133
    %v2603 = vunpack.c.l.b16 %v2134
    %v2604 = vunpack.c.l.b16 %v2135
    %v2605 = vunpack.c.h.b16 %v2135
    %v2606 = vunpack.c.l.b16 %v2136
    %v2607 = vunpack.c.l.b16 %v2137
    %v2608 = vunpack.c.h.b16 %v2137
    %v2609 = vunpack.c.l.b16 %v2138
    %v2610 = vunpack.c.l.b16 %v2139
    %v2611 = vunpack.c.h.b16 %v2139
    %v2612 = vunpack.c.l.b16 %v2140
    %v2613 = vunpack.c.l.b16 %v2141
    %v2614 = vunpack.c.h.b16 %v2141
    %v2615 = vunpack.c.l.b16 %v2142
    %v2616 = vunpack.c.l.b16 %v2143
    %v2617 = vunpack.c.h.b16 %v2143
    %v2618 = vunpack.c.l.b16 %v2144
    %v2619 = vunpack.c.l.b16 %v2145
    %v2620 = vunpack.c.h.b16 %v2145
    %v2621 = vunpack.c.l.b16 %v2146
    %v2622 = vunpack.c.l.b16 %v2147
    %v2623 = vunpack.c.h.b16 %v2147
    %v2624 = vunpack.c.l.b16 %v2148
    %v2625 = vunpack.c.l.b16 %v2149
    %v2626 = vunpack.c.h.b16 %v2149
    %v2627 = vunpack.c.l.b16 %v2150
    %v2628 = vunpack.c.l.b16 %v2151
    %v2629 = vunpack.c.h.b16 %v2151
    %v2630 = vunpack.c.l.b16 %v2152
    %v2631 = vunpack.c.l.b16 %v2153
    %v2632 = vunpack.c.h.b16 %v2153
    %v2633 = vunpack.c.l.b16 %v2154
    %v2634 = vunpack.c.l.b16 %v2155
    %v2635 = vunpack.c.h.b16 %v2155
    %v2636 = vunpack.c.l.b16 %v2156
    %v2637 = vunpack.c.l.b16 %v2157
    %v2638 = vunpack.c.h.b16 %v2157
    %v2639 = vunpack.c.l.b16 %v2158
    %v2640 = vunpack.c.l.b16 %v2159
    %v2641 = vunpack.c.h.b16 %v2159
    %v2642 = vunpack.c.l.b16 %v2160
    %v2643 = vunpack.c.l.b16 %v2161
    %v2644 = vunpack.c.h.b16 %v2161
    %v2645 = vunpack.c.l.b16 %v2162
    %v2646 = vunpack.c.l.b16 %v2163
    %v2647 = vunpack.c.h.b16 %v2163
    %v2648 = vunpack.c.l.b16 %v2164
    %v2649 = vunpack.c.l.b16 %v2165
    %v2650 = vunpack.c.h.b16 %v2165
    %v2651 = vunpack.c.l.b16 %v2166
    %v2652 = vunpack.c.l.b16 %v2167
    %v2653 = vunpack.c.h.b16 %v2167
    %v2654 = vunpack.c.l.b16 %v2168
    %v2655 = vunpack.c.l.b16 %v2169
    %v2656 = vunpack.c.h.b16 %v2169
    %v2657 = vunpack.c.l.b16 %v2170
    %v2658 = vunpack.c.l.b16 %v2171
    %v2659 = vunpack.c.h.b16 %v2171
    %v2660 = vunpack.c.l.b16 %v2172
    %v2661 = vunpack.c.l.b16 %v2173
    %v2662 = vunpack.c.h.b16 %v2173
    %v2663 = vunpack.c.l.b16 %v2174
    %v2664 = vunpack.c.l.b16 %v2175
    %v2665 = vunpack.c.h.b16 %v2175
    %v2666 = vunpack.c.l.b16 %v2176
    %v2667 = vunpack.c.l.b16 %v2177
    %v2668 = vunpack.c.h.b16 %v2177
    %v2669 = vunpack.c.l.b16 %v2178
    %v2670 = vunpack.c.l.b16 %v2179
    %v2671 = vunpack.c.h.b16 %v2179
    %v2672 = vunpack.c.l.b16 %v2180
    %v2673 = vunpack.c.l.b16 %v2181
    %v2674 = vunpack.c.h.b16 %v2181
    %v2675 = vunpack.c.l.b16 %v2182
    %v2676 = vunpack.c.l.b16 %v2183
    %v2677 = vunpack.c.h.b16 %v2183
    %v2678 = vunpack.c.l.b16 %v2184
    %v2679 = vunpack.c.l.b16 %v2185
    %v2680 = vunpack.c.h.b16 %v2185
    %v2681 = vunpack.c.l.b16 %v2186
    %v2682 = vunpack.c.l.b16 %v2187
    %v2683 = vunpack.c.h.b16 %v2187
    %v2684 = vunpack.c.l.b16 %v2188
    %v2685 = vunpack.c.l.b16 %v2189
    %v2686 = vunpack.c.h.b16 %v2189
    %v2687 = vunpack.c.l.b16 %v2190
    %v2688 = vpack.c.b16 %v2403, %v2400
    %v2689 = vpack.c.b16 %v2404, %v2401
    %v2690 = vpack.c.b16 %v2405, %v2402
    %v2691 = vpack.c.b16 %v2409, %v2406
    %v2692 = vpack.c.b16 %v2410, %v2407
    %v2693 = vpack.c.b16 %v2411, %v2408
    %v2694 = vpack.c.b16 %v2415, %v2412
    %v2695 = vpack.c.b16 %v2416, %v2413
    %v2696 = vpack.c.b16 %v2417, %v2414
    %v2697 = vpack.c.b16 %v2421, %v2418
    %v2698 = vpack.c.b16 %v2422, %v2419
    %v2699 = vpack.c.b16 %v2423, %v2420
    %v2700 = vpack.c.b16 %v2427, %v2424
    %v2701 = vpack.c.b16 %v2428, %v2425
    %v2702 = vpack.c.b16 %v2429, %v2426
    %v2703 = vpack.c.b16 %v2433, %v2430
    %v2704 = vpack.c.b16 %v2434, %v2431
    %v2705 = vpack.c.b16 %v2435, %v2432
    %v2706 = vpack.c.b16 %v2439, %v2436
    %v2707 = vpack.c.b16 %v2440, %v2437
    %v2708 = vpack.c.b16 %v2441, %v2438
    %v2709 = vpack.c.b16 %v2445, %v2442
    %v2710 = vpack.c.b16 %v2446, %v2443
    %v2711 = vpack.c.b16 %v2447, %v2444
    %v2712 = vpack.c.b16 %v2451, %v2448
    %v2713 = vpack.c.b16 %v2452, %v2449
    %v2714 = vpack.c.b16 %v2453, %v2450
    %v2715 = vpack.c.b16 %v2457, %v2454
    %v2716 = vpack.c.b16 %v2458, %v2455
    %v2717 = vpack.c.b16 %v2459, %v2456
    %v2718 = vpack.c.b16 %v2463, %v2460
    %v2719 = vpack.c.b16 %v2464, %v2461
    %v2720 = vpack.c.b16 %v2465, %v2462
    %v2721 = vpack.c.b16 %v2469, %v2466
    %v2722 = vpack.c.b16 %v2470, %v2467
    %v2723 = vpack.c.b16 %v2471, %v2468
    %v2724 = vpack.c.b16 %v2475, %v2472
    %v2725 = vpack.c.b16 %v2476, %v2473
    %v2726 = vpack.c.b16 %v2477, %v2474
    %v2727 = vpack.c.b16 %v2481, %v2478
    %v2728 = vpack.c.b16 %v2482, %v2479
    %v2729 = vpack.c.b16 %v2483, %v2480
    %v2730 = vpack.c.b16 %v2487, %v2484
    %v2731 = vpack.c.b16 %v2488, %v2485
    %v2732 = vpack.c.b16 %v2489, %v2486
    %v2733 = vpack.c.b16 %v2493, %v2490
    %v2734 = vpack.c.b16 %v2494, %v2491
    %v2735 = vpack.c.b16 %v2495, %v2492
    %v2736 = vpack.c.b16 %v2499, %v2496
    %v2737 = vpack.c.b16 %v2500, %v2497
    %v2738 = vpack.c.b16 %v2501, %v2498
    %v2739 = vpack.c.b16 %v2505, %v2502
    %v2740 = vpack.c.b16 %v2506, %v2503
    %v2741 = vpack.c.b16 %v2507, %v2504
    %v2742 = vpack.c.b16 %v2511, %v2508
    %v2743 = vpack.c.b16 %v2512, %v2509
    %v2744 = vpack.c.b16 %v2513, %v2510
    %v2745 = vpack.c.b16 %v2517, %v2514
    %v2746 = vpack.c.b16 %v2518, %v2515
    %v2747 = vpack.c.b16 %v2519, %v2516
    %v2748 = vpack.c.b16 %v2523, %v2520
    %v2749 = vpack.c.b16 %v2524, %v2521
    %v2750 = vpack.c.b16 %v2525, %v2522
    %v2751 = vpack.c.b16 %v2529, %v2526
    %v2752 = vpack.c.b16 %v2530, %v2527
    %v2753 = vpack.c.b16 %v2531, %v2528
    %v2754 = vpack.c.b16 %v2535, %v2532
    %v2755 = vpack.c.b16 %v2536, %v2533
    %v2756 = vpack.c.b16 %v2537, %v2534
    %v2757 = vpack.c.b16 %v2541, %v2538
    %v2758 = vpack.c.b16 %v2542, %v2539
    %v2759 = vpack.c.b16 %v2543, %v2540
    %v2760 = vpack.c.b16 %v2547, %v2544
    %v2761 = vpack.c.b16 %v2548, %v2545
    %v2762 = vpack.c.b16 %v2549, %v2546
    %v2763 = vpack.c.b16 %v2553, %v2550
    %v2764 = vpack.c.b16 %v2554, %v2551
    %v2765 = vpack.c.b16 %v2555, %v2552
    %v2766 = vpack.c.b16 %v2559, %v2556
    %v2767 = vpack.c.b16 %v2560, %v2557
    %v2768 = vpack.c.b16 %v2561, %v2558
    %v2769 = vpack.c.b16 %v2565, %v2562
    %v2770 = vpack.c.b16 %v2566, %v2563
    %v2771 = vpack.c.b16 %v2567, %v2564
    %v2772 = vpack.c.b16 %v2571, %v2568
    %v2773 = vpack.c.b16 %v2572, %v2569
    %v2774 = vpack.c.b16 %v2573, %v2570
    %v2775 = vpack.c.b16 %v2577, %v2574
    %v2776 = vpack.c.b16 %v2578, %v2575
    %v2777 = vpack.c.b16 %v2579, %v2576
    %v2778 = vpack.c.b16 %v2583, %v2580
    %v2779 = vpack.c.b16 %v2584, %v2581
    %v2780 = vpack.c.b16 %v2585, %v2582
    %v2781 = vpack.c.b16 %v2589, %v2586
    %v2782 = vpack.c.b16 %v2590, %v2587
    %v2783 = vpack.c.b16 %v2591, %v2588
    %v2784 = vpack.c.b16 %v2595, %v2592
    %v2785 = vpack.c.b16 %v2596, %v2593
    %v2786 = vpack.c.b16 %v2597, %v2594
    %v2787 = vpack.c.b16 %v2601, %v2598
    %v2788 = vpack.c.b16 %v2602, %v2599
    %v2789 = vpack.c.b16 %v2603, %v2600
    %v2790 = vpack.c.b16 %v2607, %v2604
    %v2791 = vpack.c.b16 %v2608, %v2605
    %v2792 = vpack.c.b16 %v2609, %v2606
    %v2793 = vpack.c.b16 %v2613, %v2610
    %v2794 = vpack.c.b16 %v2614, %v2611
    %v2795 = vpack.c.b16 %v2615, %v2612
    %v2796 = vpack.c.b16 %v2619, %v2616
    %v2797 = vpack.c.b16 %v2620, %v2617
    %v2798 = vpack.c.b16 %v2621, %v2618
    %v2799 = vpack.c.b16 %v2625, %v2622
    %v2800 = vpack.c.b16 %v2626, %v2623
    %v2801 = vpack.c.b16 %v2627, %v2624
    %v2802 = vpack.c.b16 %v2631, %v2628
    %v2803 = vpack.c.b16 %v2632, %v2629
    %v2804 = vpack.c.b16 %v2633, %v2630
    %v2805 = vpack.c.b16 %v2637, %v2634
    %v2806 = vpack.c.b16 %v2638, %v2635
    %v2807 = vpack.c.b16 %v2639, %v2636
    %v2808 = vpack.c.b16 %v2643, %v2640
    %v2809 = vpack.c.b16 %v2644, %v2641
    %v2810 = vpack.c.b16 %v2645, %v2642
    %v2811 = vpack.c.b16 %v2649, %v2646
    %v2812 = vpack.c.b16 %v2650, %v2647
    %v2813 = vpack.c.b16 %v2651, %v2648
    %v2814 = vpack.c.b16 %v2655, %v2652
    %v2815 = vpack.c.b16 %v2656, %v2653
    %v2816 = vpack.c.b16 %v2657, %v2654
    %v2817 = vpack.c.b16 %v2661, %v2658
    %v2818 = vpack.c.b16 %v2662, %v2659
    %v2819 = vpack.c.b16 %v2663, %v2660
    %v2820 = vpack.c.b16 %v2667, %v2664
    %v2821 = vpack.c.b16 %v2668, %v2665
    %v2822 = vpack.c.b16 %v2669, %v2666
    %v2823 = vpack.c.b16 %v2673, %v2670
    %v2824 = vpack.c.b16 %v2674, %v2671
    %v2825 = vpack.c.b16 %v2675, %v2672
    %v2826 = vpack.c.b16 %v2679, %v2676
    %v2827 = vpack.c.b16 %v2680, %v2677
    %v2828 = vpack.c.b16 %v2681, %v2678
    %v2829 = vpack.c.b16 %v2685, %v2682
    %v2830 = vpack.c.b16 %v2686, %v2683
    %v2831 = vpack.c.b16 %v2687, %v2684
    %2976 = vmatprep.subr.bf16.mxu0 %v2689
    %2977 = vmatpush1.bf16.msra.mxu0 %v2688
    %2978 = vmatprep.subr.bf16.mxu0 %v2692
    %2979 = vmatpush1.bf16.msra.mxu0 %v2691
    %2980 = vmatprep.subr.bf16.mxu0 %v2695
    %2981 = vmatpush1.bf16.msra.mxu0 %v2694
    %2982 = vmatprep.subr.bf16.mxu0 %v2698
    %2983 = vmatpush1.bf16.msra.mxu0 %v2697
    %2984 = vmatprep.subr.bf16.mxu0 %v2701
    %2985 = vmatpush1.bf16.msra.mxu0 %v2700
    %2986 = vmatprep.subr.bf16.mxu0 %v2704
    %2987 = vmatpush1.bf16.msra.mxu0 %v2703
    %2988 = vmatprep.subr.bf16.mxu0 %v2707
    %2989 = vmatpush1.bf16.msra.mxu0 %v2706
    %2990 = vmatprep.subr.bf16.mxu0 %v2710
    %2991 = vmatpush1.bf16.msra.mxu0 %v2709
    %2992 = vmatprep.subr.bf16.mxu0 %v2713
    %2993 = vmatpush1.bf16.msra.mxu0 %v2712
    %2994 = vmatprep.subr.bf16.mxu0 %v2716
    %2995 = vmatpush1.bf16.msra.mxu0 %v2715
    %2996 = vmatprep.subr.bf16.mxu0 %v2719
    %2997 = vmatpush1.bf16.msra.mxu0 %v2718
    %2998 = vmatprep.subr.bf16.mxu0 %v2722
    %2999 = vmatpush1.bf16.msra.mxu0 %v2721
    %3000 = vmatprep.subr.bf16.mxu0 %v2725
    %3001 = vmatpush1.bf16.msra.mxu0 %v2724
    %3002 = vmatprep.subr.bf16.mxu0 %v2728
    %3003 = vmatpush1.bf16.msra.mxu0 %v2727
    %3004 = vmatprep.subr.bf16.mxu0 %v2731
    %3005 = vmatpush1.bf16.msra.mxu0 %v2730
    %3006 = vmatprep.subr.bf16.mxu0 %v2734
    %3007 = vmatpush1.bf16.msra.mxu0 %v2733
    %3008 = vmatprep.mubr.bf16.mxu0 %v1994
    %3009 = vmatmul.mubr.bf16.gmra.mrb[0].mxu0 %v1993
    %v3010 = vpop.f32.mrb[0].mxu0
    %v3011 = vadd.f32 %v2196, %v3010
    %v3012 = vpop.f32.mrb[0].mxu0
    %v3013 = vadd.f32 %v2200, %v3012
    %v3014 = vpop.f32.mrb[0].mxu0
    %v3015 = vadd.f32 %v2196, %v3014
    %v3016 = vpop.f32.mrb[0].mxu0
    %v3017 = vadd.f32 %v2200, %v3016
    %3018 = vdwg.mxu0
    %3019 = vmatprep.subr.bf16.mxu0 %v2737
    %3020 = vmatpush1.bf16.msra.mxu0 %v2736
    %3021 = vmatprep.subr.bf16.mxu0 %v2740
    %3022 = vmatpush1.bf16.msra.mxu0 %v2739
    %3023 = vmatprep.subr.bf16.mxu0 %v2743
    %3024 = vmatpush1.bf16.msra.mxu0 %v2742
    %3025 = vmatprep.subr.bf16.mxu0 %v2746
    %3026 = vmatpush1.bf16.msra.mxu0 %v2745
    %3027 = vmatprep.subr.bf16.mxu0 %v2749
    %3028 = vmatpush1.bf16.msra.mxu0 %v2748
    %3029 = vmatprep.subr.bf16.mxu0 %v2752
    %3030 = vmatpush1.bf16.msra.mxu0 %v2751
    %3031 = vmatprep.subr.bf16.mxu0 %v2755
    %3032 = vmatpush1.bf16.msra.mxu0 %v2754
    %3033 = vmatprep.subr.bf16.mxu0 %v2758
    %3034 = vmatpush1.bf16.msra.mxu0 %v2757
    %3035 = vmatprep.subr.bf16.mxu0 %v2761
    %3036 = vmatpush1.bf16.msra.mxu0 %v2760
    %3037 = vmatprep.subr.bf16.mxu0 %v2764
    %3038 = vmatpush1.bf16.msra.mxu0 %v2763
    %3039 = vmatprep.subr.bf16.mxu0 %v2767
    %3040 = vmatpush1.bf16.msra.mxu0 %v2766
    %3041 = vmatprep.subr.bf16.mxu0 %v2770
    %3042 = vmatpush1.bf16.msra.mxu0 %v2769
    %3043 = vmatprep.subr.bf16.mxu0 %v2773
    %3044 = vmatpush1.bf16.msra.mxu0 %v2772
    %3045 = vmatprep.subr.bf16.mxu0 %v2776
    %3046 = vmatpush1.bf16.msra.mxu0 %v2775
    %3047 = vmatprep.subr.bf16.mxu0 %v2779
    %3048 = vmatpush1.bf16.msra.mxu0 %v2778
    %3049 = vmatprep.subr.bf16.mxu0 %v2782
    %3050 = vmatpush1.bf16.msra.mxu0 %v2781
    %3051 = vmatprep.mubr.bf16.mxu0 %v1996
    %3052 = vmatmul.mubr.bf16.gmra.mrb[0].mxu0 %v1995
    %v3053 = vpop.f32.mrb[0].mxu0
    %v3054 = vadd.f32 %v3011, %v3053
    %v3055 = vpop.f32.mrb[0].mxu0
    %v3056 = vadd.f32 %v3013, %v3055
    %v3057 = vpop.f32.mrb[0].mxu0
    %v3058 = vadd.f32 %v3015, %v3057
    %v3059 = vpop.f32.mrb[0].mxu0
    %v3060 = vadd.f32 %v3017, %v3059
    %3061 = vdwg.mxu0
    %3062 = vmatprep.subr.bf16.mxu0 %v2785
    %3063 = vmatpush1.bf16.msra.mxu0 %v2784
    %3064 = vmatprep.subr.bf16.mxu0 %v2788
    %3065 = vmatpush1.bf16.msra.mxu0 %v2787
    %3066 = vmatprep.subr.bf16.mxu0 %v2791
    %3067 = vmatpush1.bf16.msra.mxu0 %v2790
    %3068 = vmatprep.subr.bf16.mxu0 %v2794
    %3069 = vmatpush1.bf16.msra.mxu0 %v2793
    %3070 = vmatprep.subr.bf16.mxu0 %v2797
    %3071 = vmatpush1.bf16.msra.mxu0 %v2796
    %3072 = vmatprep.subr.bf16.mxu0 %v2800
    %3073 = vmatpush1.bf16.msra.mxu0 %v2799
    %3074 = vmatprep.subr.bf16.mxu0 %v2803
    %3075 = vmatpush1.bf16.msra.mxu0 %v2802
    %3076 = vmatprep.subr.bf16.mxu0 %v2806
    %3077 = vmatpush1.bf16.msra.mxu0 %v2805
    %3078 = vmatprep.subr.bf16.mxu0 %v2809
    %3079 = vmatpush1.bf16.msra.mxu0 %v2808
    %3080 = vmatprep.subr.bf16.mxu0 %v2812
    %3081 = vmatpush1.bf16.msra.mxu0 %v2811
    %3082 = vmatprep.subr.bf16.mxu0 %v2815
    %3083 = vmatpush1.bf16.msra.mxu0 %v2814
    %3084 = vmatprep.subr.bf16.mxu0 %v2818
    %3085 = vmatpush1.bf16.msra.mxu0 %v2817
    %3086 = vmatprep.subr.bf16.mxu0 %v2821
    %3087 = vmatpush1.bf16.msra.mxu0 %v2820
    %3088 = vmatprep.subr.bf16.mxu0 %v2824
    %3089 = vmatpush1.bf16.msra.mxu0 %v2823
    %3090 = vmatprep.subr.bf16.mxu0 %v2827
    %3091 = vmatpush1.bf16.msra.mxu0 %v2826
    %3092 = vmatprep.subr.bf16.mxu0 %v2830
    %3093 = vmatpush1.bf16.msra.mxu0 %v2829
    %3094 = vmatprep.mubr.bf16.mxu0 %v1998
    %3095 = vmatmul.mubr.bf16.gmra.mrb[0].mxu0 %v1997
    %v3096 = vpop.f32.mrb[0].mxu0
    %v3097 = vadd.f32 %v3054, %v3096
    %v3098 = vpop.f32.mrb[0].mxu0
    %v3099 = vadd.f32 %v3056, %v3098
    %v3100 = vpop.f32.mrb[0].mxu0
    %v3101 = vadd.f32 %v3058, %v3100
    %v3102 = vpop.f32.mrb[0].mxu0
    %v3103 = vadd.f32 %v3060, %v3102
    %3104 = vdwg.mxu0
    %3105 = vmatprep.subr.bf16.mxu0 0
    %3106 = vmatpush1.bf16.msra.mxu0 %v2690
    %3107 = vmatprep.subr.bf16.mxu0 0
    %3108 = vmatpush1.bf16.msra.mxu0 %v2693
    %3109 = vmatprep.subr.bf16.mxu0 0
    %3110 = vmatpush1.bf16.msra.mxu0 %v2696
    %3111 = vmatprep.subr.bf16.mxu0 0
    %3112 = vmatpush1.bf16.msra.mxu0 %v2699
    %3113 = vmatprep.subr.bf16.mxu0 0
    %3114 = vmatpush1.bf16.msra.mxu0 %v2702
    %3115 = vmatprep.subr.bf16.mxu0 0
    %3116 = vmatpush1.bf16.msra.mxu0 %v2705
    %3117 = vmatprep.subr.bf16.mxu0 0
    %3118 = vmatpush1.bf16.msra.mxu0 %v2708
    %3119 = vmatprep.subr.bf16.mxu0 0
    %3120 = vmatpush1.bf16.msra.mxu0 %v2711
    %3121 = vmatprep.subr.bf16.mxu0 0
    %3122 = vmatpush1.bf16.msra.mxu0 %v2714
    %3123 = vmatprep.subr.bf16.mxu0 0
    %3124 = vmatpush1.bf16.msra.mxu0 %v2717
    %3125 = vmatprep.subr.bf16.mxu0 0
    %3126 = vmatpush1.bf16.msra.mxu0 %v2720
    %3127 = vmatprep.subr.bf16.mxu0 0
    %3128 = vmatpush1.bf16.msra.mxu0 %v2723
    %3129 = vmatprep.subr.bf16.mxu0 0
    %3130 = vmatpush1.bf16.msra.mxu0 %v2726
    %3131 = vmatprep.subr.bf16.mxu0 0
    %3132 = vmatpush1.bf16.msra.mxu0 %v2729
    %3133 = vmatprep.subr.bf16.mxu0 0
    %3134 = vmatpush1.bf16.msra.mxu0 %v2732
    %3135 = vmatprep.subr.bf16.mxu0 0
    %3136 = vmatpush1.bf16.msra.mxu0 %v2735
    %3137 = vmatprep.mubr.bf16.mxu0 %v1994
    %3138 = vmatmul.mubr.bf16.gmra.mrb[0].mxu0 %v1993
    %v3139 = vpop.f32.mrb[0].mxu0
    %v3140 = vadd.f32 %v2204, %v3139
    %v3141 = vpop.f32.mrb[0].mxu0
    %v3142 = vpop.f32.mrb[0].mxu0
    %v3143 = vadd.f32 %v2204, %v3142
    %v3144 = vpop.f32.mrb[0].mxu0
    %3145 = vdwg.mxu0
    %3146 = vmatprep.subr.bf16.mxu0 0
    %3147 = vmatpush1.bf16.msra.mxu0 %v2738
    %3148 = vmatprep.subr.bf16.mxu0 0
    %3149 = vmatpush1.bf16.msra.mxu0 %v2741
    %3150 = vmatprep.subr.bf16.mxu0 0
    %3151 = vmatpush1.bf16.msra.mxu0 %v2744
    %3152 = vmatprep.subr.bf16.mxu0 0
    %3153 = vmatpush1.bf16.msra.mxu0 %v2747
    %3154 = vmatprep.subr.bf16.mxu0 0
    %3155 = vmatpush1.bf16.msra.mxu0 %v2750
    %3156 = vmatprep.subr.bf16.mxu0 0
    %3157 = vmatpush1.bf16.msra.mxu0 %v2753
    %3158 = vmatprep.subr.bf16.mxu0 0
    %3159 = vmatpush1.bf16.msra.mxu0 %v2756
    %3160 = vmatprep.subr.bf16.mxu0 0
    %3161 = vmatpush1.bf16.msra.mxu0 %v2759
    %3162 = vmatprep.subr.bf16.mxu0 0
    %3163 = vmatpush1.bf16.msra.mxu0 %v2762
    %3164 = vmatprep.subr.bf16.mxu0 0
    %3165 = vmatpush1.bf16.msra.mxu0 %v2765
    %3166 = vmatprep.subr.bf16.mxu0 0
    %3167 = vmatpush1.bf16.msra.mxu0 %v2768
    %3168 = vmatprep.subr.bf16.mxu0 0
    %3169 = vmatpush1.bf16.msra.mxu0 %v2771
    %3170 = vmatprep.subr.bf16.mxu0 0
    %3171 = vmatpush1.bf16.msra.mxu0 %v2774
    %3172 = vmatprep.subr.bf16.mxu0 0
    %3173 = vmatpush1.bf16.msra.mxu0 %v2777
    %3174 = vmatprep.subr.bf16.mxu0 0
    %3175 = vmatpush1.bf16.msra.mxu0 %v2780
    %3176 = vmatprep.subr.bf16.mxu0 0
    %3177 = vmatpush1.bf16.msra.mxu0 %v2783
    %3178 = vmatprep.mubr.bf16.mxu0 %v1996
    %3179 = vmatmul.mubr.bf16.gmra.mrb[0].mxu0 %v1995
    %v3180 = vpop.f32.mrb[0].mxu0
    %v3181 = vadd.f32 %v3140, %v3180
    %v3182 = vpop.f32.mrb[0].mxu0
    %v3183 = vpop.f32.mrb[0].mxu0
    %v3184 = vadd.f32 %v3143, %v3183
    %v3185 = vpop.f32.mrb[0].mxu0
    %3186 = vdwg.mxu0
    %3187 = vmatprep.subr.bf16.mxu0 0
    %3188 = vmatpush1.bf16.msra.mxu0 %v2786
    %3189 = vmatprep.subr.bf16.mxu0 0
    %3190 = vmatpush1.bf16.msra.mxu0 %v2789
    %3191 = vmatprep.subr.bf16.mxu0 0
    %3192 = vmatpush1.bf16.msra.mxu0 %v2792
    %3193 = vmatprep.subr.bf16.mxu0 0
    %3194 = vmatpush1.bf16.msra.mxu0 %v2795
    %3195 = vmatprep.subr.bf16.mxu0 0
    %3196 = vmatpush1.bf16.msra.mxu0 %v2798
    %3197 = vmatprep.subr.bf16.mxu0 0
    %3198 = vmatpush1.bf16.msra.mxu0 %v2801
    %3199 = vmatprep.subr.bf16.mxu0 0
    %3200 = vmatpush1.bf16.msra.mxu0 %v2804
    %3201 = vmatprep.subr.bf16.mxu0 0
    %3202 = vmatpush1.bf16.msra.mxu0 %v2807
    %3203 = vmatprep.subr.bf16.mxu0 0
    %3204 = vmatpush1.bf16.msra.mxu0 %v2810
    %3205 = vmatprep.subr.bf16.mxu0 0
    %3206 = vmatpush1.bf16.msra.mxu0 %v2813
    %3207 = vmatprep.subr.bf16.mxu0 0
    %3208 = vmatpush1.bf16.msra.mxu0 %v2816
    %3209 = vmatprep.subr.bf16.mxu0 0
    %3210 = vmatpush1.bf16.msra.mxu0 %v2819
    %3211 = vmatprep.subr.bf16.mxu0 0
    %3212 = vmatpush1.bf16.msra.mxu0 %v2822
    %3213 = vmatprep.subr.bf16.mxu0 0
    %3214 = vmatpush1.bf16.msra.mxu0 %v2825
    %3215 = vmatprep.subr.bf16.mxu0 0
    %3216 = vmatpush1.bf16.msra.mxu0 %v2828
    %3217 = vmatprep.subr.bf16.mxu0 0
    %3218 = vmatpush1.bf16.msra.mxu0 %v2831
    %3219 = vmatprep.mubr.bf16.mxu0 %v1998
    %3220 = vmatmul.mubr.bf16.gmra.mrb[0].mxu0 %v1997
    %v3221 = vpop.f32.mrb[0].mxu0
    %v3222 = vadd.f32 %v3181, %v3221
    %v3223 = vpop.f32.mrb[0].mxu0
    %v3224 = vpop.f32.mrb[0].mxu0
    %v3225 = vadd.f32 %v3184, %v3224
    %v3226 = vpop.f32.mrb[0].mxu0
    %3227 = vdwg.mxu0
    %v3228 = vmax.f32 %v3097, 0.0
    %v3229 = vmax.f32 %v3099, 0.0
    %v3230 = vmax.f32 %v3222, 0.0
    %v3231 = vmax.f32 %v3101, 0.0
    %v3232 = vmax.f32 %v3103, 0.0
    %v3233 = vmax.f32 %v3225, 0.0
    %v3234 = vpack.c.bf16 %v3231, %v3228
    %v3235 = vpack.c.bf16 %v3232, %v3229
    %v3236 = vpack.c.bf16 %v3233, %v3230
    %v3237 = vld [vmem:[#allocation7] sm:$0xff]
    %v3238 = vld [vmem:[#allocation7 + $0x8] sm:$0xff]
    %v3239 = vld [vmem:[#allocation7 + $0x10] sm:$0xff]
    %v3240 = vld [vmem:[#allocation7 + $0x18] sm:$0xff]
    %v3241 = vld [vmem:[#allocation7 + $0x20] sm:$0xff]
    %v3242 = vld [vmem:[#allocation7 + $0x28] sm:$0xff]
    %v3243 = vld [vmem:[#allocation7 + $0x30] sm:$0xff]
    %v3244 = vld [vmem:[#allocation7 + $0x38] sm:$0xff]
    %v3245 = vld [vmem:[#allocation7 + $0x40] sm:$0xff]
    %v3246 = vld [vmem:[#allocation7 + $0x48] sm:$0xff]
    %v3247 = vld [vmem:[#allocation7 + $0x50] sm:$0xff]
    %v3248 = vld [vmem:[#allocation7 + $0x58] sm:$0xff]
    %v3249 = vld [vmem:[#allocation7 + $0x60] sm:$0xff]
    %v3250 = vld [vmem:[#allocation7 + $0x68] sm:$0xff]
    %v3251 = vld [vmem:[#allocation7 + $0x70] sm:$0xff]
    %v3252 = vld [vmem:[#allocation7 + $0x78] sm:$0xff]
    %v3253 = vld [vmem:[#allocation7 + $0x80] sm:$0xff]
    %v3254 = vld [vmem:[#allocation7 + $0x88] sm:$0xff]
    %v3255 = vld [vmem:[#allocation7 + $0x90] sm:$0xff]
    %v3256 = vld [vmem:[#allocation7 + $0x98] sm:$0xff]
    %v3257 = vld [vmem:[#allocation7 + $0xa0] sm:$0xff]
    %v3258 = vld [vmem:[#allocation7 + $0xa8] sm:$0xff]
    %v3259 = vld [vmem:[#allocation7 + $0xb0] sm:$0xff]
    %v3260 = vld [vmem:[#allocation7 + $0xb8] sm:$0xff]
    %v3261 = vld [vmem:[#allocation7 + $0xc0] sm:$0xff]
    %v3262 = vld [vmem:[#allocation7 + $0xc8] sm:$0xff]
    %v3263 = vld [vmem:[#allocation7 + $0xd0] sm:$0xff]
    %v3264 = vld [vmem:[#allocation7 + $0xd8] sm:$0xff]
    %v3265 = vld [vmem:[#allocation7 + $0xe0] sm:$0xff]
    %v3266 = vld [vmem:[#allocation7 + $0xe8] sm:$0xff]
    %v3267 = vld [vmem:[#allocation7 + $0xf0] sm:$0xff]
    %v3268 = vld [vmem:[#allocation7 + $0xf8] sm:$0xff]
    %v3269 = vld [vmem:[#allocation7 + $0x100] sm:$0xff]
    %v3270 = vld [vmem:[#allocation7 + $0x108] sm:$0xff]
    %v3271 = vld [vmem:[#allocation7 + $0x110] sm:$0xff]
    %v3272 = vld [vmem:[#allocation7 + $0x118] sm:$0xff]
    %v3273 = vld [vmem:[#allocation7 + $0x120] sm:$0xff]
    %v3274 = vld [vmem:[#allocation7 + $0x128] sm:$0xff]
    %v3275 = vld [vmem:[#allocation7 + $0x130] sm:$0xff]
    %v3276 = vld [vmem:[#allocation7 + $0x138] sm:$0xff]
    %v3277 = vld [vmem:[#allocation7 + $0x140] sm:$0xff]
    %v3278 = vld [vmem:[#allocation7 + $0x148] sm:$0xff]
    %v3279 = vld [vmem:[#allocation7 + $0x150] sm:$0xff]
    %v3280 = vld [vmem:[#allocation7 + $0x158] sm:$0xff]
    %v3281 = vld [vmem:[#allocation7 + $0x160] sm:$0xff]
    %v3282 = vld [vmem:[#allocation7 + $0x168] sm:$0xff]
    %v3283 = vld [vmem:[#allocation7 + $0x170] sm:$0xff]
    %v3284 = vld [vmem:[#allocation7 + $0x178] sm:$0xff]
    %v3285 = vld [vmem:[%s9] sm:$0x3]
    %v3287 = vlaneseq
    %v3288 = vshrl.u32 %v3287, 7
    %v3289 = vsub.s32 0, %v3288
    %v3290 = vrot.slane %v3285, %v3289
    %v3291 = vlaneseq
    %v3292 = vshrl.u32 %v3291, 7
    %v3293 = vsub.s32 1, %v3292
    %v3294 = vrot.slane %v3285, %v3293
    %v3345 = vunpack.c.l.b16 %v3237
    %v3346 = vunpack.c.h.b16 %v3237
    %v3347 = vunpack.c.l.b16 %v3238
    %v3348 = vunpack.c.h.b16 %v3238
    %v3349 = vunpack.c.l.b16 %v3239
    %v3350 = vunpack.c.h.b16 %v3239
    %v3351 = vunpack.c.l.b16 %v3240
    %v3352 = vunpack.c.h.b16 %v3240
    %v3353 = vunpack.c.l.b16 %v3241
    %v3354 = vunpack.c.h.b16 %v3241
    %v3355 = vunpack.c.l.b16 %v3242
    %v3356 = vunpack.c.h.b16 %v3242
    %v3357 = vunpack.c.l.b16 %v3243
    %v3358 = vunpack.c.h.b16 %v3243
    %v3359 = vunpack.c.l.b16 %v3244
    %v3360 = vunpack.c.h.b16 %v3244
    %v3361 = vunpack.c.l.b16 %v3245
    %v3362 = vunpack.c.h.b16 %v3245
    %v3363 = vunpack.c.l.b16 %v3246
    %v3364 = vunpack.c.h.b16 %v3246
    %v3365 = vunpack.c.l.b16 %v3247
    %v3366 = vunpack.c.h.b16 %v3247
    %v3367 = vunpack.c.l.b16 %v3248
    %v3368 = vunpack.c.h.b16 %v3248
    %v3369 = vunpack.c.l.b16 %v3249
    %v3370 = vunpack.c.h.b16 %v3249
    %v3371 = vunpack.c.l.b16 %v3250
    %v3372 = vunpack.c.h.b16 %v3250
    %v3373 = vunpack.c.l.b16 %v3251
    %v3374 = vunpack.c.h.b16 %v3251
    %v3375 = vunpack.c.l.b16 %v3252
    %v3376 = vunpack.c.h.b16 %v3252
    %v3377 = vunpack.c.l.b16 %v3253
    %v3378 = vunpack.c.h.b16 %v3253
    %v3379 = vunpack.c.l.b16 %v3254
    %v3380 = vunpack.c.h.b16 %v3254
    %v3381 = vunpack.c.l.b16 %v3255
    %v3382 = vunpack.c.h.b16 %v3255
    %v3383 = vunpack.c.l.b16 %v3256
    %v3384 = vunpack.c.h.b16 %v3256
    %v3385 = vunpack.c.l.b16 %v3257
    %v3386 = vunpack.c.h.b16 %v3257
    %v3387 = vunpack.c.l.b16 %v3258
    %v3388 = vunpack.c.h.b16 %v3258
    %v3389 = vunpack.c.l.b16 %v3259
    %v3390 = vunpack.c.h.b16 %v3259
    %v3391 = vunpack.c.l.b16 %v3260
    %v3392 = vunpack.c.h.b16 %v3260
    %v3393 = vunpack.c.l.b16 %v3261
    %v3394 = vunpack.c.h.b16 %v3261
    %v3395 = vunpack.c.l.b16 %v3262
    %v3396 = vunpack.c.h.b16 %v3262
    %v3397 = vunpack.c.l.b16 %v3263
    %v3398 = vunpack.c.h.b16 %v3263
    %v3399 = vunpack.c.l.b16 %v3264
    %v3400 = vunpack.c.h.b16 %v3264
    %v3401 = vunpack.c.l.b16 %v3265
    %v3402 = vunpack.c.h.b16 %v3265
    %v3403 = vunpack.c.l.b16 %v3266
    %v3404 = vunpack.c.h.b16 %v3266
    %v3405 = vunpack.c.l.b16 %v3267
    %v3406 = vunpack.c.h.b16 %v3267
    %v3407 = vunpack.c.l.b16 %v3268
    %v3408 = vunpack.c.h.b16 %v3268
    %v3409 = vunpack.c.l.b16 %v3269
    %v3410 = vunpack.c.h.b16 %v3269
    %v3411 = vunpack.c.l.b16 %v3270
    %v3412 = vunpack.c.h.b16 %v3270
    %v3413 = vunpack.c.l.b16 %v3271
    %v3414 = vunpack.c.h.b16 %v3271
    %v3415 = vunpack.c.l.b16 %v3272
    %v3416 = vunpack.c.h.b16 %v3272
    %v3417 = vunpack.c.l.b16 %v3273
    %v3418 = vunpack.c.h.b16 %v3273
    %v3419 = vunpack.c.l.b16 %v3274
    %v3420 = vunpack.c.h.b16 %v3274
    %v3421 = vunpack.c.l.b16 %v3275
    %v3422 = vunpack.c.h.b16 %v3275
    %v3423 = vunpack.c.l.b16 %v3276
    %v3424 = vunpack.c.h.b16 %v3276
    %v3425 = vunpack.c.l.b16 %v3277
    %v3426 = vunpack.c.h.b16 %v3277
    %v3427 = vunpack.c.l.b16 %v3278
    %v3428 = vunpack.c.h.b16 %v3278
    %v3429 = vunpack.c.l.b16 %v3279
    %v3430 = vunpack.c.h.b16 %v3279
    %v3431 = vunpack.c.l.b16 %v3280
    %v3432 = vunpack.c.h.b16 %v3280
    %v3433 = vunpack.c.l.b16 %v3281
    %v3434 = vunpack.c.h.b16 %v3281
    %v3435 = vunpack.c.l.b16 %v3282
    %v3436 = vunpack.c.h.b16 %v3282
    %v3437 = vunpack.c.l.b16 %v3283
    %v3438 = vunpack.c.h.b16 %v3283
    %v3439 = vunpack.c.l.b16 %v3284
    %v3440 = vunpack.c.h.b16 %v3284
    %v3441 = vpack.c.b16 %v3347, %v3345
    %v3442 = vpack.c.b16 %v3348, %v3346
    %v3443 = vpack.c.b16 %v3351, %v3349
    %v3444 = vpack.c.b16 %v3352, %v3350
    %v3445 = vpack.c.b16 %v3355, %v3353
    %v3446 = vpack.c.b16 %v3356, %v3354
    %v3447 = vpack.c.b16 %v3359, %v3357
    %v3448 = vpack.c.b16 %v3360, %v3358
    %v3449 = vpack.c.b16 %v3363, %v3361
    %v3450 = vpack.c.b16 %v3364, %v3362
    %v3451 = vpack.c.b16 %v3367, %v3365
    %v3452 = vpack.c.b16 %v3368, %v3366
    %v3453 = vpack.c.b16 %v3371, %v3369
    %v3454 = vpack.c.b16 %v3372, %v3370
    %v3455 = vpack.c.b16 %v3375, %v3373
    %v3456 = vpack.c.b16 %v3376, %v3374
    %v3457 = vpack.c.b16 %v3379, %v3377
    %v3458 = vpack.c.b16 %v3380, %v3378
    %v3459 = vpack.c.b16 %v3383, %v3381
    %v3460 = vpack.c.b16 %v3384, %v3382
    %v3461 = vpack.c.b16 %v3387, %v3385
    %v3462 = vpack.c.b16 %v3388, %v3386
    %v3463 = vpack.c.b16 %v3391, %v3389
    %v3464 = vpack.c.b16 %v3392, %v3390
    %v3465 = vpack.c.b16 %v3395, %v3393
    %v3466 = vpack.c.b16 %v3396, %v3394
    %v3467 = vpack.c.b16 %v3399, %v3397
    %v3468 = vpack.c.b16 %v3400, %v3398
    %v3469 = vpack.c.b16 %v3403, %v3401
    %v3470 = vpack.c.b16 %v3404, %v3402
    %v3471 = vpack.c.b16 %v3407, %v3405
    %v3472 = vpack.c.b16 %v3408, %v3406
    %v3473 = vpack.c.b16 %v3411, %v3409
    %v3474 = vpack.c.b16 %v3412, %v3410
    %v3475 = vpack.c.b16 %v3415, %v3413
    %v3476 = vpack.c.b16 %v3416, %v3414
    %v3477 = vpack.c.b16 %v3419, %v3417
    %v3478 = vpack.c.b16 %v3420, %v3418
    %v3479 = vpack.c.b16 %v3423, %v3421
    %v3480 = vpack.c.b16 %v3424, %v3422
    %v3481 = vpack.c.b16 %v3427, %v3425
    %v3482 = vpack.c.b16 %v3428, %v3426
    %v3483 = vpack.c.b16 %v3431, %v3429
    %v3484 = vpack.c.b16 %v3432, %v3430
    %v3485 = vpack.c.b16 %v3435, %v3433
    %v3486 = vpack.c.b16 %v3436, %v3434
    %v3487 = vpack.c.b16 %v3439, %v3437
    %v3488 = vpack.c.b16 %v3440, %v3438
    %3537 = vmatprep.subr.bf16.mxu0 %v3442
    %3538 = vmatpush1.bf16.msra.mxu0 %v3441
    %3539 = vmatprep.subr.bf16.mxu0 %v3444
    %3540 = vmatpush1.bf16.msra.mxu0 %v3443
    %3541 = vmatprep.subr.bf16.mxu0 %v3446
    %3542 = vmatpush1.bf16.msra.mxu0 %v3445
    %3543 = vmatprep.subr.bf16.mxu0 %v3448
    %3544 = vmatpush1.bf16.msra.mxu0 %v3447
    %3545 = vmatprep.subr.bf16.mxu0 %v3450
    %3546 = vmatpush1.bf16.msra.mxu0 %v3449
    %3547 = vmatprep.subr.bf16.mxu0 %v3452
    %3548 = vmatpush1.bf16.msra.mxu0 %v3451
    %3549 = vmatprep.subr.bf16.mxu0 %v3454
    %3550 = vmatpush1.bf16.msra.mxu0 %v3453
    %3551 = vmatprep.subr.bf16.mxu0 %v3456
    %3552 = vmatpush1.bf16.msra.mxu0 %v3455
    %3553 = vmatprep.subr.bf16.mxu0 %v3458
    %3554 = vmatpush1.bf16.msra.mxu0 %v3457
    %3555 = vmatprep.subr.bf16.mxu0 %v3460
    %3556 = vmatpush1.bf16.msra.mxu0 %v3459
    %3557 = vmatprep.subr.bf16.mxu0 %v3462
    %3558 = vmatpush1.bf16.msra.mxu0 %v3461
    %3559 = vmatprep.subr.bf16.mxu0 %v3464
    %3560 = vmatpush1.bf16.msra.mxu0 %v3463
    %3561 = vmatprep.subr.bf16.mxu0 %v3466
    %3562 = vmatpush1.bf16.msra.mxu0 %v3465
    %3563 = vmatprep.subr.bf16.mxu0 %v3468
    %3564 = vmatpush1.bf16.msra.mxu0 %v3467
    %3565 = vmatprep.subr.bf16.mxu0 %v3470
    %3566 = vmatpush1.bf16.msra.mxu0 %v3469
    %3567 = vmatprep.subr.bf16.mxu0 %v3472
    %3568 = vmatpush1.bf16.msra.mxu0 %v3471
    %3569 = vmatprep.mubr.bf16.mxu0 %v3235
    %3570 = vmatmul.mubr.bf16.gmra.mrb[0].mxu0 %v3234
    %v3571 = vpop.f32.mrb[0].mxu0
    %v3572 = vadd.f32 %v3290, %v3571
    %v3573 = vpop.f32.mrb[0].mxu0
    %v3574 = vadd.f32 %v3294, %v3573
    %v3575 = vpop.f32.mrb[0].mxu0
    %v3576 = vadd.f32 %v3290, %v3575
    %v3577 = vpop.f32.mrb[0].mxu0
    %v3578 = vadd.f32 %v3294, %v3577
    %3579 = vdwg.mxu0
    %3580 = vmatprep.subr.bf16.mxu0 %v3474
    %3581 = vmatpush1.bf16.msra.mxu0 %v3473
    %3582 = vmatprep.subr.bf16.mxu0 %v3476
    %3583 = vmatpush1.bf16.msra.mxu0 %v3475
    %3584 = vmatprep.subr.bf16.mxu0 %v3478
    %3585 = vmatpush1.bf16.msra.mxu0 %v3477
    %3586 = vmatprep.subr.bf16.mxu0 %v3480
    %3587 = vmatpush1.bf16.msra.mxu0 %v3479
    %3588 = vmatprep.subr.bf16.mxu0 %v3482
    %3589 = vmatpush1.bf16.msra.mxu0 %v3481
    %3590 = vmatprep.subr.bf16.mxu0 %v3484
    %3591 = vmatpush1.bf16.msra.mxu0 %v3483
    %3592 = vmatprep.subr.bf16.mxu0 %v3486
    %3593 = vmatpush1.bf16.msra.mxu0 %v3485
    %3594 = vmatprep.subr.bf16.mxu0 %v3488
    %3595 = vmatpush1.bf16.msra.mxu0 %v3487
    %3596 = vmatprep.subr.bf16.mxu0 0
    %3597 = vmatpush1.bf16.msra.mxu0 0
    %3598 = vmatprep.subr.bf16.mxu0 0
    %3599 = vmatpush1.bf16.msra.mxu0 0
    %3600 = vmatprep.subr.bf16.mxu0 0
    %3601 = vmatpush1.bf16.msra.mxu0 0
    %3602 = vmatprep.subr.bf16.mxu0 0
    %3603 = vmatpush1.bf16.msra.mxu0 0
    %3604 = vmatprep.subr.bf16.mxu0 0
    %3605 = vmatpush1.bf16.msra.mxu0 0
    %3606 = vmatprep.subr.bf16.mxu0 0
    %3607 = vmatpush1.bf16.msra.mxu0 0
    %3608 = vmatprep.subr.bf16.mxu0 0
    %3609 = vmatpush1.bf16.msra.mxu0 0
    %3610 = vmatprep.subr.bf16.mxu0 0
    %3611 = vmatpush1.bf16.msra.mxu0 0
    %3612 = vmatprep.mubr.bf16.mxu0 0
    %3613 = vmatmul.mubr.bf16.gmra.mrb[0].mxu0 %v3236
    %v3614 = vpop.f32.mrb[0].mxu0
    %v3615 = vadd.f32 %v3572, %v3614
    %v3616 = vpop.f32.mrb[0].mxu0
    %v3617 = vadd.f32 %v3574, %v3616
    %v3618 = vpop.f32.mrb[0].mxu0
    %v3619 = vadd.f32 %v3576, %v3618
    %v3620 = vpop.f32.mrb[0].mxu0
    %v3621 = vadd.f32 %v3578, %v3620
    %3622 = vdwg.mxu0
    %v3623 = vmax.f32 %v3615, 0.0
    %v3624 = vmax.f32 %v3617, 0.0
    %v3625 = vmax.f32 %v3619, 0.0
    %v3626 = vmax.f32 %v3621, 0.0
    %v3627 = vpack.c.bf16 %v3625, %v3623
    %v3628 = vpack.c.bf16 %v3626, %v3624
    %v3629 = vld [vmem:[%s10] sm:$0xf]
    %v3630 = vld [vmem:[%s10 + $0x4] sm:$0xf]
    %v3631 = vld [vmem:[%s10 + $0x8] sm:$0xf]
    %v3632 = vld [vmem:[%s10 + $0xc] sm:$0xf]
    %v3633 = vld [vmem:[%s10 + $0x10] sm:$0xf]
    %v3634 = vld [vmem:[%s10 + $0x14] sm:$0xf]
    %v3635 = vld [vmem:[%s10 + $0x18] sm:$0xf]
    %v3636 = vld [vmem:[%s10 + $0x1c] sm:$0xf]
    %v3637 = vld [vmem:[%s10 + $0x20] sm:$0xf]
    %v3638 = vld [vmem:[%s10 + $0x24] sm:$0xf]
    %v3639 = vld [vmem:[%s10 + $0x28] sm:$0xf]
    %v3640 = vld [vmem:[%s10 + $0x2c] sm:$0xf]
    %v3641 = vld [vmem:[%s10 + $0x30] sm:$0xf]
    %v3642 = vld [vmem:[%s10 + $0x34] sm:$0xf]
    %v3643 = vld [vmem:[%s10 + $0x38] sm:$0xf]
    %v3644 = vld [vmem:[%s10 + $0x3c] sm:$0xf]
    %v3645 = vld [vmem:[%s10 + $0x40] sm:$0xf]
    %v3646 = vld [vmem:[%s10 + $0x44] sm:$0xf]
    %v3647 = vld [vmem:[%s10 + $0x48] sm:$0xf]
    %v3648 = vld [vmem:[%s10 + $0x4c] sm:$0xf]
    %v3649 = vld [vmem:[%s10 + $0x50] sm:$0xf]
    %v3650 = vld [vmem:[%s10 + $0x54] sm:$0xf]
    %v3651 = vld [vmem:[%s10 + $0x58] sm:$0xf]
    %v3652 = vld [vmem:[%s10 + $0x5c] sm:$0xf]
    %v3653 = vld [vmem:[%s10 + $0x60] sm:$0xf]
    %v3654 = vld [vmem:[%s10 + $0x64] sm:$0xf]
    %v3655 = vld [vmem:[%s10 + $0x68] sm:$0xf]
    %v3656 = vld [vmem:[%s10 + $0x6c] sm:$0xf]
    %v3657 = vld [vmem:[%s10 + $0x70] sm:$0xf]
    %v3658 = vld [vmem:[%s10 + $0x74] sm:$0xf]
    %v3659 = vld [vmem:[%s10 + $0x78] sm:$0xf]
    %v3660 = vld [vmem:[%s10 + $0x7c] sm:$0xf]
    %v3661 = vld [vmem:[%s11] sm:$0x1]
    %v3663 = vlaneseq
    %v3664 = vshrl.u32 %v3663, 7
    %v3665 = vsub.s32 0, %v3664
    %v3666 = vrot.slane %v3661, %v3665
    %v3700 = vunpack.c.l.b16 %v3629
    %v3701 = vunpack.c.l.b16 %v3630
    %v3702 = vunpack.c.l.b16 %v3631
    %v3703 = vunpack.c.l.b16 %v3632
    %v3704 = vunpack.c.l.b16 %v3633
    %v3705 = vunpack.c.l.b16 %v3634
    %v3706 = vunpack.c.l.b16 %v3635
    %v3707 = vunpack.c.l.b16 %v3636
    %v3708 = vunpack.c.l.b16 %v3637
    %v3709 = vunpack.c.l.b16 %v3638
    %v3710 = vunpack.c.l.b16 %v3639
    %v3711 = vunpack.c.l.b16 %v3640
    %v3712 = vunpack.c.l.b16 %v3641
    %v3713 = vunpack.c.l.b16 %v3642
    %v3714 = vunpack.c.l.b16 %v3643
    %v3715 = vunpack.c.l.b16 %v3644
    %v3716 = vunpack.c.l.b16 %v3645
    %v3717 = vunpack.c.l.b16 %v3646
    %v3718 = vunpack.c.l.b16 %v3647
    %v3719 = vunpack.c.l.b16 %v3648
    %v3720 = vunpack.c.l.b16 %v3649
    %v3721 = vunpack.c.l.b16 %v3650
    %v3722 = vunpack.c.l.b16 %v3651
    %v3723 = vunpack.c.l.b16 %v3652
    %v3724 = vunpack.c.l.b16 %v3653
    %v3725 = vunpack.c.l.b16 %v3654
    %v3726 = vunpack.c.l.b16 %v3655
    %v3727 = vunpack.c.l.b16 %v3656
    %v3728 = vunpack.c.l.b16 %v3657
    %v3729 = vunpack.c.l.b16 %v3658
    %v3730 = vunpack.c.l.b16 %v3659
    %v3731 = vunpack.c.l.b16 %v3660
    %v3732 = vpack.c.b16 %v3701, %v3700
    %v3733 = vpack.c.b16 %v3703, %v3702
    %v3734 = vpack.c.b16 %v3705, %v3704
    %v3735 = vpack.c.b16 %v3707, %v3706
    %v3736 = vpack.c.b16 %v3709, %v3708
    %v3737 = vpack.c.b16 %v3711, %v3710
    %v3738 = vpack.c.b16 %v3713, %v3712
    %v3739 = vpack.c.b16 %v3715, %v3714
    %v3740 = vpack.c.b16 %v3717, %v3716
    %v3741 = vpack.c.b16 %v3719, %v3718
    %v3742 = vpack.c.b16 %v3721, %v3720
    %v3743 = vpack.c.b16 %v3723, %v3722
    %v3744 = vpack.c.b16 %v3725, %v3724
    %v3745 = vpack.c.b16 %v3727, %v3726
    %v3746 = vpack.c.b16 %v3729, %v3728
    %v3747 = vpack.c.b16 %v3731, %v3730
    %3764 = vmatprep.subr.bf16.mxu0 0
    %3765 = vmatpush1.bf16.msra.mxu0 %v3732
    %3766 = vmatprep.subr.bf16.mxu0 0
    %3767 = vmatpush1.bf16.msra.mxu0 %v3733
    %3768 = vmatprep.subr.bf16.mxu0 0
    %3769 = vmatpush1.bf16.msra.mxu0 %v3734
    %3770 = vmatprep.subr.bf16.mxu0 0
    %3771 = vmatpush1.bf16.msra.mxu0 %v3735
    %3772 = vmatprep.subr.bf16.mxu0 0
    %3773 = vmatpush1.bf16.msra.mxu0 %v3736
    %3774 = vmatprep.subr.bf16.mxu0 0
    %3775 = vmatpush1.bf16.msra.mxu0 %v3737
    %3776 = vmatprep.subr.bf16.mxu0 0
    %3777 = vmatpush1.bf16.msra.mxu0 %v3738
    %3778 = vmatprep.subr.bf16.mxu0 0
    %3779 = vmatpush1.bf16.msra.mxu0 %v3739
    %3780 = vmatprep.subr.bf16.mxu0 0
    %3781 = vmatpush1.bf16.msra.mxu0 %v3740
    %3782 = vmatprep.subr.bf16.mxu0 0
    %3783 = vmatpush1.bf16.msra.mxu0 %v3741
    %3784 = vmatprep.subr.bf16.mxu0 0
    %3785 = vmatpush1.bf16.msra.mxu0 %v3742
    %3786 = vmatprep.subr.bf16.mxu0 0
    %3787 = vmatpush1.bf16.msra.mxu0 %v3743
    %3788 = vmatprep.subr.bf16.mxu0 0
    %3789 = vmatpush1.bf16.msra.mxu0 %v3744
    %3790 = vmatprep.subr.bf16.mxu0 0
    %3791 = vmatpush1.bf16.msra.mxu0 %v3745
    %3792 = vmatprep.subr.bf16.mxu0 0
    %3793 = vmatpush1.bf16.msra.mxu0 %v3746
    %3794 = vmatprep.subr.bf16.mxu0 0
    %3795 = vmatpush1.bf16.msra.mxu0 %v3747
    %3796 = vmatprep.mubr.bf16.mxu0 %v3628
    %3797 = vmatmul.mubr.bf16.gmra.mrb[0].mxu0 %v3627
    %v3798 = vpop.f32.mrb[0].mxu0
    %v3799 = vadd.f32 %v3666, %v3798
    %v3800 = vpop.f32.mrb[0].mxu0
    %v3801 = vpop.f32.mrb[0].mxu0
    %v3802 = vadd.f32 %v3666, %v3801
    %v3803 = vpop.f32.mrb[0].mxu0
    %3804 = vdwg.mxu0
    %v3805 = vld [vmem:[%s1] sm:$0xf]
    %v3806 = vld [vmem:[%s1 + $0x4] sm:$0xf]
    %v3807 = vld [vmem:[#allocation9] sm:$0xf]
    %v3808 = vld [vmem:[#allocation9 + $0x4] sm:$0xf]
    %v3809 = vld [vmem:[#allocation9 + $0x8] sm:$0xf]
    %v3810 = vld [vmem:[#allocation9 + $0xc] sm:$0xf]
    %v3811 = vld [vmem:[#allocation9 + $0x10] sm:$0xf]
    %v3812 = vld [vmem:[#allocation9 + $0x14] sm:$0xf]
    %v3813 = vld [vmem:[#allocation9 + $0x18] sm:$0xf]
    %v3814 = vld [vmem:[#allocation9 + $0x1c] sm:$0xf]
    %v3815 = vld [vmem:[#allocation9 + $0x20] sm:$0xf]
    %v3816 = vld [vmem:[#allocation9 + $0x24] sm:$0xf]
    %v3817 = vld [vmem:[#allocation9 + $0x28] sm:$0xf]
    %v3818 = vld [vmem:[#allocation9 + $0x2c] sm:$0xf]
    %v3819 = vld [vmem:[#allocation9 + $0x30] sm:$0xf]
    %v3820 = vld [vmem:[#allocation9 + $0x34] sm:$0xf]
    %v3821 = vld [vmem:[#allocation9 + $0x38] sm:$0xf]
    %v3822 = vld [vmem:[#allocation9 + $0x3c] sm:$0xf]
    %v3825 = vunpack.c.l.b16 %v3805
    %v3826 = vunpack.c.l.b16 %v3806
    %v3827 = vpack.c.b16 %v3826, %v3825
    %v3845 = vunpack.c.l.b16 %v3807
    %v3846 = vunpack.c.l.b16 %v3808
    %v3847 = vunpack.c.l.b16 %v3809
    %v3848 = vunpack.c.l.b16 %v3810
    %v3849 = vunpack.c.l.b16 %v3811
    %v3850 = vunpack.c.l.b16 %v3812
    %v3851 = vunpack.c.l.b16 %v3813
    %v3852 = vunpack.c.l.b16 %v3814
    %v3853 = vunpack.c.l.b16 %v3815
    %v3854 = vunpack.c.l.b16 %v3816
    %v3855 = vunpack.c.l.b16 %v3817
    %v3856 = vunpack.c.l.b16 %v3818
    %v3857 = vunpack.c.l.b16 %v3819
    %v3858 = vunpack.c.l.b16 %v3820
    %v3859 = vunpack.c.l.b16 %v3821
    %v3860 = vunpack.c.l.b16 %v3822
    %v3861 = vpack.c.b16 %v3846, %v3845
    %v3862 = vpack.c.b16 %v3848, %v3847
    %v3863 = vpack.c.b16 %v3850, %v3849
    %v3864 = vpack.c.b16 %v3852, %v3851
    %v3865 = vpack.c.b16 %v3854, %v3853
    %v3866 = vpack.c.b16 %v3856, %v3855
    %v3867 = vpack.c.b16 %v3858, %v3857
    %v3868 = vpack.c.b16 %v3860, %v3859
    %3877 = vmatprep.subr.bf16.mxu0 0
    %3878 = vmatpush1.bf16.msra.mxu0 %v3861
    %3879 = vmatprep.subr.bf16.mxu0 0
    %3880 = vmatpush1.bf16.msra.mxu0 %v3862
    %3881 = vmatprep.subr.bf16.mxu0 0
    %3882 = vmatpush1.bf16.msra.mxu0 %v3863
    %3883 = vmatprep.subr.bf16.mxu0 0
    %3884 = vmatpush1.bf16.msra.mxu0 %v3864
    %3885 = vmatprep.subr.bf16.mxu0 0
    %3886 = vmatpush1.bf16.msra.mxu0 %v3865
    %3887 = vmatprep.subr.bf16.mxu0 0
    %3888 = vmatpush1.bf16.msra.mxu0 %v3866
    %3889 = vmatprep.subr.bf16.mxu0 0
    %3890 = vmatpush1.bf16.msra.mxu0 %v3867
    %3891 = vmatprep.subr.bf16.mxu0 0
    %3892 = vmatpush1.bf16.msra.mxu0 %v3868
    %3893 = vmatprep.subr.bf16.mxu0 0
    %3894 = vmatpush1.bf16.msra.mxu0 0
    %3895 = vmatprep.subr.bf16.mxu0 0
    %3896 = vmatpush1.bf16.msra.mxu0 0
    %3897 = vmatprep.subr.bf16.mxu0 0
    %3898 = vmatpush1.bf16.msra.mxu0 0
    %3899 = vmatprep.subr.bf16.mxu0 0
    %3900 = vmatpush1.bf16.msra.mxu0 0
    %3901 = vmatprep.subr.bf16.mxu0 0
    %3902 = vmatpush1.bf16.msra.mxu0 0
    %3903 = vmatprep.subr.bf16.mxu0 0
    %3904 = vmatpush1.bf16.msra.mxu0 0
    %3905 = vmatprep.subr.bf16.mxu0 0
    %3906 = vmatpush1.bf16.msra.mxu0 0
    %3907 = vmatprep.subr.bf16.mxu0 0
    %3908 = vmatpush1.bf16.msra.mxu0 0
    %3909 = vmatprep.mubr.bf16.mxu0 0
    %3910 = vmatmul.mubr.bf16.gmra.mrb[0].mxu0 %v3827
    %v3911 = vpop.f32.mrb[0].mxu0
    %v3912 = vadd.f32 0.0, %v3911
    %v3913 = vpop.f32.mrb[0].mxu0
    %v3914 = vpop.f32.mrb[0].mxu0
    %v3915 = vadd.f32 0.0, %v3914
    %v3916 = vpop.f32.mrb[0].mxu0
    %3917 = vdwg.mxu0
    %v3918 = vld [vmem:[%s13] sm:$0x1]
    %v3920 = vlaneseq
    %v3921 = vshrl.u32 %v3920, 7
    %v3922 = vsub.s32 0, %v3921
    %v3923 = vrot.slane %v3918, %v3922
    %vm3925 = vcmp.gt.f32.partialorder %v3912, %v3923
    %vm3926 = vcmp.gt.f32.partialorder %v3915, %v3923
    %v3927 = vsel %vm3925, 1, 0
    %v3928 = vsel %vm3926, 1, 0
    %v3929 = vcvt.s32.f32 %v3927
    %v3930 = vcvt.s32.f32 %v3928
    %v3931 = vpack.c.bf16 %v3930, %v3929
    %v3932 = vld [vmem:[#allocation10] sm:$0xf]
    %v3933 = vld [vmem:[#allocation10 + $0x4] sm:$0xf]
    %v3934 = vld [vmem:[#allocation10 + $0x8] sm:$0xf]
    %v3935 = vld [vmem:[#allocation10 + $0xc] sm:$0xf]
    %v3936 = vld [vmem:[#allocation10 + $0x10] sm:$0xf]
    %v3937 = vld [vmem:[#allocation10 + $0x14] sm:$0xf]
    %v3938 = vld [vmem:[#allocation10 + $0x18] sm:$0xf]
    %v3939 = vld [vmem:[#allocation10 + $0x1c] sm:$0xf]
    %v3940 = vld [vmem:[#allocation10 + $0x20] sm:$0xf]
    %v3941 = vld [vmem:[#allocation10 + $0x24] sm:$0xf]
    %v3942 = vld [vmem:[#allocation10 + $0x28] sm:$0xf]
    %v3943 = vld [vmem:[#allocation10 + $0x2c] sm:$0xf]
    %v3944 = vld [vmem:[#allocation10 + $0x30] sm:$0xf]
    %v3945 = vld [vmem:[#allocation10 + $0x34] sm:$0xf]
    %v3946 = vld [vmem:[#allocation10 + $0x38] sm:$0xf]
    %v3947 = vld [vmem:[#allocation10 + $0x3c] sm:$0xf]
    %v3964 = vunpack.c.l.b16 %v3932
    %v3965 = vunpack.c.l.b16 %v3933
    %v3966 = vunpack.c.l.b16 %v3934
    %v3967 = vunpack.c.l.b16 %v3935
    %v3968 = vunpack.c.l.b16 %v3936
    %v3969 = vunpack.c.l.b16 %v3937
    %v3970 = vunpack.c.l.b16 %v3938
    %v3971 = vunpack.c.l.b16 %v3939
    %v3972 = vunpack.c.l.b16 %v3940
    %v3973 = vunpack.c.l.b16 %v3941
    %v3974 = vunpack.c.l.b16 %v3942
    %v3975 = vunpack.c.l.b16 %v3943
    %v3976 = vunpack.c.l.b16 %v3944
    %v3977 = vunpack.c.l.b16 %v3945
    %v3978 = vunpack.c.l.b16 %v3946
    %v3979 = vunpack.c.l.b16 %v3947
    %v3980 = vpack.c.b16 %v3965, %v3964
    %v3981 = vpack.c.b16 %v3967, %v3966
    %v3982 = vpack.c.b16 %v3969, %v3968
    %v3983 = vpack.c.b16 %v3971, %v3970
    %v3984 = vpack.c.b16 %v3973, %v3972
    %v3985 = vpack.c.b16 %v3975, %v3974
    %v3986 = vpack.c.b16 %v3977, %v3976
    %v3987 = vpack.c.b16 %v3979, %v3978
    %3996 = vmatprep.subr.bf16.mxu0 0
    %3997 = vmatpush1.bf16.msra.mxu0 %v3980
    %3998 = vmatprep.subr.bf16.mxu0 0
    %3999 = vmatpush1.bf16.msra.mxu0 %v3981
    %4000 = vmatprep.subr.bf16.mxu0 0
    %4001 = vmatpush1.bf16.msra.mxu0 %v3982
    %4002 = vmatprep.subr.bf16.mxu0 0
    %4003 = vmatpush1.bf16.msra.mxu0 %v3983
    %4004 = vmatprep.subr.bf16.mxu0 0
    %4005 = vmatpush1.bf16.msra.mxu0 %v3984
    %4006 = vmatprep.subr.bf16.mxu0 0
    %4007 = vmatpush1.bf16.msra.mxu0 %v3985
    %4008 = vmatprep.subr.bf16.mxu0 0
    %4009 = vmatpush1.bf16.msra.mxu0 %v3986
    %4010 = vmatprep.subr.bf16.mxu0 0
    %4011 = vmatpush1.bf16.msra.mxu0 %v3987
    %4012 = vmatprep.subr.bf16.mxu0 0
    %4013 = vmatpush1.bf16.msra.mxu0 0
    %4014 = vmatprep.subr.bf16.mxu0 0
    %4015 = vmatpush1.bf16.msra.mxu0 0
    %4016 = vmatprep.subr.bf16.mxu0 0
    %4017 = vmatpush1.bf16.msra.mxu0 0
    %4018 = vmatprep.subr.bf16.mxu0 0
    %4019 = vmatpush1.bf16.msra.mxu0 0
    %4020 = vmatprep.subr.bf16.mxu0 0
    %4021 = vmatpush1.bf16.msra.mxu0 0
    %4022 = vmatprep.subr.bf16.mxu0 0
    %4023 = vmatpush1.bf16.msra.mxu0 0
    %4024 = vmatprep.subr.bf16.mxu0 0
    %4025 = vmatpush1.bf16.msra.mxu0 0
    %4026 = vmatprep.subr.bf16.mxu0 0
    %4027 = vmatpush1.bf16.msra.mxu0 0
    %4028 = vmatprep.mubr.bf16.mxu0 0
    %4029 = vmatmul.mubr.bf16.gmra.mrb[0].mxu0 %v3931
    %v4030 = vpop.f32.mrb[0].mxu0
    %v4031 = vadd.f32 0.0, %v4030
    %v4032 = vpop.f32.mrb[0].mxu0
    %v4033 = vpop.f32.mrb[0].mxu0
    %v4034 = vadd.f32 0.0, %v4033
    %v4035 = vpop.f32.mrb[0].mxu0
    %4036 = vdwg.mxu0
    %v4037 = vunpack.c.l.bf16 %v3805
    %v4038 = vunpack.c.l.bf16 %v3806
    %v4039 = vadd.f32 %v4037, %v4031
    %v4040 = vadd.f32 %v4038, %v4034
    %vm4041 = vcmp.gt.f32.partialorder %v4039, 0.5
    %vm4042 = vcmp.gt.f32.partialorder %v4040, 0.5
    %v4043 = vsel %vm4041, -inf, %v3799
    %v4044 = vsel %vm4042, -inf, %v3802
    %4045 = vst [vmem:[%s15] sm:$0xff] %v4043
    %4046 = vst [vmem:[%s15 + $0x8] sm:$0xff] %v4044
    // Predicated region
    $region86: #{cnn_forward.1} parent=1 // pred_check
      _
    $region87: #{cnn_forward.1} parent=1 // pred_check_branch
      %4048 = sbr.rel (0) target = $region89
    $region88: #{cnn_forward.1} parent=1 // pred_region
      _
    $region89: #{cnn_forward.1} parent=1 // pred_fallthru
      _
    // Predicated region
    $region90: #{cnn_forward.1} parent=1 // pred_check
      _
    $region91: #{cnn_forward.1} parent=1 // pred_check_branch
      %4050 = sbr.rel (0) target = $region93
    $region92: #{cnn_forward.1} parent=1 // pred_region
      _
    $region93: #{cnn_forward.1} parent=1 // pred_fallthru
      _
    %4051 = vsyncpa [#allocation3], 1
    %4052 = vsyncpa [#allocation5], 1
    %4053 = vsyncpa [#allocation8], 1
    %4054 = vsyncpa [#allocation11], 1

</llo_original>
